<compile_context>
chip_gen: v7x
topology: tpu7x:2x2x1
jax: 0.10.0
libtpu: 0.0.40
codegen_flags: <defaults>
</compile_context>

<pallas_src>
import functools

import jax
import jax.numpy as jnp
from jax import lax
from jax.experimental import pallas as pl
from jax.experimental.pallas import tpu as pltpu

# ---------------------------------------------------------------- config ----
B = 8         # batch
F = 8         # n_features (sender input dim == receiver output dim)
V = 16        # vocab size
E_S = 8       # sender embedding dim
H_S = 16      # sender LSTM hidden
MAX_LEN = 8   # sender max message length
T = MAX_LEN + 1   # +1 forced-eos column appended by RnnSenderReinforce
E_R = 16      # receiver embedding dim
H_R = 8       # receiver RNN hidden

SENDER_ENTROPY_COEFF = 0.1
RECEIVER_ENTROPY_COEFF = 0.0
LENGTH_COST = 1e-2

_VMEM = pltpu.MemorySpace.VMEM
_LANES = 128
_ROWS = 48


# ----------------------------------------------------------- param packing --
def _pack_params(params):
    """Fold embeddings into recurrence weights and pack everything into one
    (48, 128) f32 slab.  Returns (slab, layout) with
    layout[name] = (row_start, col_start, n_rows, n_cols); all row starts are
    sublane-aligned (multiples of 8)."""
    sp, rp = params["sender"], params["receiver"]

    def perm_gates(w):  # reorder 4H columns from torch (i,f,g,o) -> (i,f,o,g)
        i, f, g, o = jnp.split(w, 4, axis=-1)
        return jnp.concatenate([i, f, o, g], axis=-1)

    # ---- sender: fold embedding / sos into the gate weights ----
    wih_t = sp["w_ih"].T                                     # (E_S, 4H_S)
    whh_t = sp["w_hh"].T                                     # (H_S, 4H_S)
    wemb_ih = sp["w_emb"] @ wih_t                            # (V, 4H_S)
    wgate = perm_gates(jnp.concatenate([wemb_ih, whh_t], 0))  # (V+H_S, 4H_S)
    bgate = perm_gates(sp["b_ih"] + sp["b_hh"])               # (1, 4H_S)
    b0gate = perm_gates(sp["sos"] @ wih_t + sp["b_ih"] + sp["b_hh"])  # step-0

    # ---- receiver: fold embedding into the input->hidden weight ----
    wihr_t = rp["w_ih"].T                                    # (E_R, H_R)
    whhr_t = rp["w_hh"].T                                    # (H_R, H_R)
    wembr_ih = rp["w_emb"] @ wihr_t                          # (V, H_R)
    wrecv = jnp.concatenate([wembr_ih, whhr_t], 0)           # (V+H_R, H_R)
    brecv = rp["b_ih"] + rp["b_hh"]                          # (1, H_R)

    entries = {
        # name: (array (in,out), row_start, col_start)
        "wgate":  (wgate,            0,   0),   # (32, 64)
        "wrecv":  (wrecv,            0,  64),   # (24, 8)
        "wout":   (sp["w_out"].T,    0,  72),   # (16, 16)
        "wa":     (sp["w_agent"].T,  0,  88),   # (8, 16)
        "wfcr":   (rp["w_fc"].T,     0, 104),   # (8, 8)
        "bgate":  (bgate,           32,   0),   # (1, 64)
        "brecv":  (brecv,           32,  64),   # (1, 8)
        "bout":   (sp["b_out"],     32,  72),   # (1, 16)
        "ba":     (sp["b_agent"],   32,  88),   # (1, 16)
        "bfcr":   (rp["b_fc"],      32, 104),   # (1, 8)
        "b0gate": (b0gate,          40,   0),   # (1, 64)
    }
    slab = jnp.zeros((_ROWS, _LANES), jnp.float32)
    layout = {}
    for name, (arr, r, c) in entries.items():
        arr = arr.astype(jnp.float32)
        nr, nc = arr.shape
        slab = slab.at[r:r + nr, c:c + nc].set(arr)
        layout[name] = (r, c, nr, nc)
    return slab, layout


# -------------------------------------------------------------- fused kernel --
def _fused_kernel(layout, x_ref, p_ref,
                  msg_ref, ent_ref, recv_ref, loss_ref, len_ref, opt_ref):
    slab = p_ref[...]                                        # (48, 128) once

    def W(name):
        r, c, nr, nc = layout[name]
        return slab[r:r + nr, c:c + nc]

    x = x_ref[...]                                           # (B, F)

    # ---- weights (already (in, out), embeddings folded, gates (i,f,o,g)) ----
    wgate = W("wgate")                # (V+H_S, 4H_S)
    whh = wgate[V:V + H_S, :]         # (H_S, 4H_S)  step-0 only
    wrecv = W("wrecv")                # (V+H_R, H_R)
    whhr = wrecv[V:V + H_R, :]        # (H_R, H_R)   forced-eos step only
    eos_row = wrecv[0:1, :]           # folded embedding row of symbol 0
    wout = W("wout")                  # (H_S, V)
    wa = W("wa")                      # (F, H_S)
    wfcr = W("wfcr")                  # (H_R, F)

    # ---- bias broadcasts hoisted out of the unrolled loop ----
    b_gates = jnp.broadcast_to(W("bgate"), (B, 4 * H_S))
    b0_gates = jnp.broadcast_to(W("b0gate"), (B, 4 * H_S))
    b_out = jnp.broadcast_to(W("bout"), (B, V))
    b_r = jnp.broadcast_to(W("brecv"), (B, H_R))
    b_fcr = jnp.broadcast_to(W("bfcr"), (B, F))
    eos_plus_br = jnp.broadcast_to(eos_row, (B, H_R)) + b_r

    # ---- sender init: hidden = agent(sender_input), cell = 0 ----
    h = jnp.dot(x, wa, preferred_element_type=jnp.float32) + W("ba")
    c = jnp.zeros((B, H_S), jnp.float32)

    # ---- fused receiver / REINFORCE online state ----
    h_r = jnp.zeros((B, H_R), jnp.float32)
    not_eosed = jnp.ones((B, 1), jnp.float32)       # == (t < message_length)
    eff_ent = jnp.zeros((B, 1), jnp.float32)
    eff_lp = jnp.zeros((B, 1), jnp.float32)
    length = jnp.zeros((B, 1), jnp.float32)

    vocab_iota = lax.broadcasted_iota(jnp.int32, (B, V), 1)
    col_iota = lax.broadcasted_iota(jnp.int32, (B, T), 1)
    msg_acc = jnp.zeros((B, T), jnp.int32)      # forced-eos column stays 0
    ent_acc = jnp.zeros((B, T), jnp.float32)

    onehot = None
    for t in range(MAX_LEN):
        # LSTM gates: one fused matmul over concat([onehot_prev, h]); step 0
        # uses the sos-folded bias instead of an embedded input.
        if t == 0:
            gates = (jnp.dot(h, whh, preferred_element_type=jnp.float32)
                     + b0_gates)                                      # (B, 4H)
        else:
            xin = jnp.concatenate([onehot, h], axis=1)                # (B, V+H)
            gates = (jnp.dot(xin, wgate, preferred_element_type=jnp.float32)
                     + b_gates)
        sig = jax.nn.sigmoid(gates[:, :3 * H_S])      # one sigmoid: i | f | o
        i_g = sig[:, 0 * H_S:1 * H_S]
        f_g = sig[:, 1 * H_S:2 * H_S]
        o_g = sig[:, 2 * H_S:3 * H_S]
        g_g = jnp.tanh(gates[:, 3 * H_S:])            # one tanh: g
        c = f_g * c + i_g * g_g
        h = o_g * jnp.tanh(c)

        # symbol distribution: shared exponentials, approx-reciprocal denom
        logits = jnp.dot(h, wout, preferred_element_type=jnp.float32) + b_out
        m = jnp.max(logits, axis=-1, keepdims=True)
        exps = jnp.exp(logits - m)
        s = jnp.sum(exps, axis=-1, keepdims=True)
        inv_s = pl.reciprocal(s, approx=True)
        log_s = jnp.log(s)
        ent_t = log_s - inv_s * jnp.sum(exps * (logits - m),
                                        axis=-1, keepdims=True)       # (B, 1)
        lp_t = -log_s        # greedy: chosen logit == m, so logp = m - lse

        # greedy symbol (first argmax, eval-mode path)
        # TODO(synk): training-mode Categorical.sample (torch RNG) has no
        #             deterministic Pallas equivalent; greedy eval path used.
        sym = jnp.min(jnp.where(logits >= m, vocab_iota, V),
                      axis=-1, keepdims=True)                         # (B, 1)
        onehot = (vocab_iota == sym).astype(jnp.float32)              # (B, V)

        # per-step outputs accumulated in registers (stored once after loop)
        msg_acc = jnp.where(col_iota == t, sym, msg_acc)
        ent_acc = jnp.where(col_iota == t, ent_t, ent_acc)

        # REINFORCE accumulators; mask == (t < message_length)
        eff_ent = eff_ent + ent_t * not_eosed
        eff_lp = eff_lp + lp_t * not_eosed
        length = length + not_eosed

        # receiver tanh-RNN step (folded embedding + operand concat), fused
        # here; packed-sequence mask == the same not_eosed mask
        xr = jnp.concatenate([onehot, h_r], axis=1)                   # (B,V+Hr)
        h_new = jnp.tanh(jnp.dot(xr, wrecv, preferred_element_type=jnp.float32)
                         + b_r)
        h_r = not_eosed * h_new + (1.0 - not_eosed) * h_r

        # eos bookkeeping for the next step
        not_eosed = not_eosed * (sym != 0).astype(jnp.float32)

    # forced-eos column appended by RnnSenderReinforce (symbol 0, zero lp/ent:
    # msg_acc/ent_acc column MAX_LEN already hold zeros)
    length = length + not_eosed          # step MAX_LEN counts iff no earlier eos

    # receiver step for the forced eos symbol (embedding row pre-folded)
    h_new = jnp.tanh(eos_plus_br
                     + jnp.dot(h_r, whhr, preferred_element_type=jnp.float32))
    h_r = not_eosed * h_new + (1.0 - not_eosed) * h_r

    # receiver head + per-sample MSE game loss
    recv_out = jnp.dot(h_r, wfcr, preferred_element_type=jnp.float32) + b_fcr
    loss = jnp.mean((x - recv_out) ** 2, axis=-1, keepdims=True)      # (B, 1)

    # ---- CommunicationRnnReinforce REINFORCE reduction ----
    eff_ent_s = eff_ent / length
    # RnnReceiverDeterministic: entropy_r == log_prob_r == 0
    weighted_entropy = (jnp.mean(eff_ent_s) * SENDER_ENTROPY_COEFF
                        + 0.0 * RECEIVER_ENTROPY_COEFF)
    log_prob = eff_lp                                   # + log_prob_r (== 0)
    length_loss = length * LENGTH_COST
    # TODO(synk): MeanBaseline running state not threaded; predict() == 0.0
    #             as on the first forward pass.
    policy_length_loss = jnp.mean(length_loss * eff_lp)
    policy_loss = jnp.mean(loss * log_prob)
    optimized = policy_length_loss + policy_loss - weighted_entropy + jnp.mean(loss)

    msg_ref[...] = msg_acc
    ent_ref[...] = ent_acc
    recv_ref[...] = recv_out
    loss_ref[...] = loss
    len_ref[...] = length
    opt_ref[...] = jnp.reshape(optimized, (1, 1))


# ------------------------------------------------------------------ wrapper --
def game_forward(sender_input, params):
    slab, layout = _pack_params(params)
    kernel = functools.partial(_fused_kernel, layout)

    out_shapes = (
        jax.ShapeDtypeStruct((B, T), jnp.int32),     # message
        jax.ShapeDtypeStruct((B, T), jnp.float32),   # per-step sender entropy
        jax.ShapeDtypeStruct((B, F), jnp.float32),   # receiver_output
        jax.ShapeDtypeStruct((B, 1), jnp.float32),   # per-sample game loss
        jax.ShapeDtypeStruct((B, 1), jnp.float32),   # message_length
        jax.ShapeDtypeStruct((1, 1), jnp.float32),   # optimized_loss
    )
    msg, ent_s, recv_out, loss, lengths, opt = pl.pallas_call(
        kernel,
        out_shape=out_shapes,
        in_specs=[pl.BlockSpec(memory_space=_VMEM),
                  pl.BlockSpec(memory_space=_VMEM)],
        out_specs=tuple(pl.BlockSpec(memory_space=_VMEM) for _ in range(6)),
    )(sender_input, slab)

    interaction = {
        "sender_input": sender_input,
        "message": msg,
        "receiver_output": recv_out,
        "message_length": lengths[:, 0],
        "aux": {
            "sender_entropy": ent_s,
            "receiver_entropy": jnp.zeros((B,), jnp.float32),
            "length": lengths[:, 0],
            "loss": loss[:, 0],
        },
    }
    return opt[0, 0], interaction


# ------------------------------------------------------------------- params --
def init_params(key):
    ks = list(jax.random.split(key, 16))

    def u(k, shape, fan_in):
        s = 1.0 / jnp.sqrt(jnp.float32(fan_in))
        return jax.random.uniform(k, shape, jnp.float32, -s, s)

    sender = {
        "w_agent": u(ks[0], (H_S, F), F),
        "b_agent": u(ks[1], (1, H_S), F),
        "w_ih": u(ks[2], (4 * H_S, E_S), H_S),
        "b_ih": u(ks[3], (1, 4 * H_S), H_S),
        "w_hh": u(ks[4], (4 * H_S, H_S), H_S),
        "b_hh": u(ks[5], (1, 4 * H_S), H_S),
        "w_out": u(ks[6], (V, H_S), H_S),
        "b_out": u(ks[7], (1, V), H_S),
        "w_emb": jax.random.normal(ks[8], (V, E_S), jnp.float32),
        "sos": jax.random.normal(ks[9], (1, E_S), jnp.float32),
    }
    receiver = {
        "w_emb": jax.random.normal(ks[10], (V, E_R), jnp.float32),
        "w_ih": u(ks[11], (H_R, E_R), H_R),
        "b_ih": u(ks[12], (1, H_R), H_R),
        "w_hh": u(ks[13], (H_R, H_R), H_R),
        "b_hh": u(ks[14], (1, H_R), H_R),
        "w_fc": u(ks[15], (F, H_R), H_R),
        "b_fc": jnp.zeros((1, F), jnp.float32),
    }
    return {"sender": sender, "receiver": receiver}


# --------------------------------------------------------------------- main --
if __name__ == "__main__":
    key = jax.random.PRNGKey(0)
    k_x, k_p = jax.random.split(key)
    sender_input = jax.random.normal(k_x, (B, F), jnp.float32)
    params = init_params(k_p)

    fwd = jax.jit(game_forward)
    optimized_loss, interaction = fwd(sender_input, params)
    jax.block_until_ready(optimized_loss)
    print("KERNEL_OK")
</pallas_src>

<mosaic_0001>
module attributes {stable_mosaic.version = 11 : i64} {
  func.func @_fused_kernel(%arg0: memref<8x8xf32, #tpu.memory_space<vmem>>, %arg1: memref<48x128xf32, #tpu.memory_space<vmem>>, %arg2: memref<8x9xi32, #tpu.memory_space<vmem>>, %arg3: memref<8x9xf32, #tpu.memory_space<vmem>>, %arg4: memref<8x8xf32, #tpu.memory_space<vmem>>, %arg5: memref<8x1xf32, #tpu.memory_space<vmem>>, %arg6: memref<8x1xf32, #tpu.memory_space<vmem>>, %arg7: memref<1x1xf32, #tpu.memory_space<vmem>>) attributes {dimension_semantics = [], scalar_prefetch = 0 : i64, scratch_operands = 0 : i64, tpu.core_type = #tpu.core_type<tc>} {
    %c0 = arith.constant 0 : index
    %c0_0 = arith.constant 0 : index
    %0 = vector.load %arg1[%c0, %c0_0] : memref<48x128xf32, #tpu.memory_space<vmem>>, vector<48x128xf32>
    %c0_1 = arith.constant 0 : index
    %c0_2 = arith.constant 0 : index
    %1 = vector.load %arg0[%c0_1, %c0_2] : memref<8x8xf32, #tpu.memory_space<vmem>>, vector<8x8xf32>
    %2 = vector.extract_strided_slice %0 {offsets = [0, 0], sizes = [32, 64], strides = [1, 1]} : vector<48x128xf32> to vector<32x64xf32>
    %3 = vector.extract_strided_slice %2 {offsets = [16, 0], sizes = [16, 64], strides = [1, 1]} : vector<32x64xf32> to vector<16x64xf32>
    %4 = vector.extract_strided_slice %0 {offsets = [0, 64], sizes = [24, 8], strides = [1, 1]} : vector<48x128xf32> to vector<24x8xf32>
    %5 = vector.extract_strided_slice %4 {offsets = [16, 0], sizes = [8, 8], strides = [1, 1]} : vector<24x8xf32> to vector<8x8xf32>
    %6 = vector.extract_strided_slice %4 {offsets = [0, 0], sizes = [1, 8], strides = [1, 1]} : vector<24x8xf32> to vector<1x8xf32>
    %7 = vector.extract_strided_slice %0 {offsets = [0, 72], sizes = [16, 16], strides = [1, 1]} : vector<48x128xf32> to vector<16x16xf32>
    %8 = vector.extract_strided_slice %0 {offsets = [0, 88], sizes = [8, 16], strides = [1, 1]} : vector<48x128xf32> to vector<8x16xf32>
    %9 = vector.extract_strided_slice %0 {offsets = [0, 104], sizes = [8, 8], strides = [1, 1]} : vector<48x128xf32> to vector<8x8xf32>
    %10 = vector.extract_strided_slice %0 {offsets = [32, 0], sizes = [1, 64], strides = [1, 1]} : vector<48x128xf32> to vector<1x64xf32>
    %11 = vector.shape_cast %10 : vector<1x64xf32> to vector<1x64xf32>
    %12 = vector.broadcast %11 : vector<1x64xf32> to vector<8x64xf32>
    %13 = vector.extract_strided_slice %0 {offsets = [40, 0], sizes = [1, 64], strides = [1, 1]} : vector<48x128xf32> to vector<1x64xf32>
    %14 = vector.shape_cast %13 : vector<1x64xf32> to vector<1x64xf32>
    %15 = vector.broadcast %14 : vector<1x64xf32> to vector<8x64xf32>
    %16 = vector.extract_strided_slice %0 {offsets = [32, 72], sizes = [1, 16], strides = [1, 1]} : vector<48x128xf32> to vector<1x16xf32>
    %17 = vector.shape_cast %16 : vector<1x16xf32> to vector<1x16xf32>
    %18 = vector.broadcast %17 : vector<1x16xf32> to vector<8x16xf32>
    %19 = vector.extract_strided_slice %0 {offsets = [32, 64], sizes = [1, 8], strides = [1, 1]} : vector<48x128xf32> to vector<1x8xf32>
    %20 = vector.shape_cast %19 : vector<1x8xf32> to vector<1x8xf32>
    %21 = vector.broadcast %20 : vector<1x8xf32> to vector<8x8xf32>
    %22 = vector.extract_strided_slice %0 {offsets = [32, 104], sizes = [1, 8], strides = [1, 1]} : vector<48x128xf32> to vector<1x8xf32>
    %23 = vector.shape_cast %22 : vector<1x8xf32> to vector<1x8xf32>
    %24 = vector.broadcast %23 : vector<1x8xf32> to vector<8x8xf32>
    %25 = vector.shape_cast %6 : vector<1x8xf32> to vector<1x8xf32>
    %26 = vector.broadcast %25 : vector<1x8xf32> to vector<8x8xf32>
    %27 = arith.addf %26, %21 : vector<8x8xf32>
    %cst = arith.constant dense<0.000000e+00> : vector<8x16xf32>
    %28 = tpu.matmul %1, %8, %cst {dimension_numbers = #tpu.dot_dimension_numbers<[1], [0], [0], [1], [0, 0, 1, 1], [], []>} : vector<8x8xf32>, vector<8x16xf32>, vector<8x16xf32> -> vector<8x16xf32>
    %29 = vector.extract_strided_slice %0 {offsets = [32, 88], sizes = [1, 16], strides = [1, 1]} : vector<48x128xf32> to vector<1x16xf32>
    %30 = vector.broadcast %29 : vector<1x16xf32> to vector<8x16xf32>
    %31 = arith.addf %28, %30 : vector<8x16xf32>
    %cst_3 = arith.constant 0.000000e+00 : f32
    %32 = vector.broadcast %cst_3 : f32 to vector<8x16xf32>
    %cst_4 = arith.constant 0.000000e+00 : f32
    %33 = vector.broadcast %cst_4 : f32 to vector<8x8xf32>
    %cst_5 = arith.constant 1.000000e+00 : f32
    %34 = vector.broadcast %cst_5 : f32 to vector<8x1xf32>
    %cst_6 = arith.constant 0.000000e+00 : f32
    %35 = vector.broadcast %cst_6 : f32 to vector<8x1xf32>
    %cst_7 = arith.constant 0.000000e+00 : f32
    %36 = vector.broadcast %cst_7 : f32 to vector<8x1xf32>
    %cst_8 = arith.constant 0.000000e+00 : f32
    %37 = vector.broadcast %cst_8 : f32 to vector<8x1xf32>
    %38 = tpu.iota {dimensions = array<i32: 1>} : vector<8x16xi32>
    %39 = tpu.iota {dimensions = array<i32: 1>} : vector<8x9xi32>
    %c0_i32 = arith.constant 0 : i32
    %40 = vector.broadcast %c0_i32 : i32 to vector<8x9xi32>
    %cst_9 = arith.constant 0.000000e+00 : f32
    %41 = vector.broadcast %cst_9 : f32 to vector<8x9xf32>
    %cst_10 = arith.constant dense<0.000000e+00> : vector<8x64xf32>
    %42 = tpu.matmul %31, %3, %cst_10 {dimension_numbers = #tpu.dot_dimension_numbers<[1], [0], [0], [1], [0, 0, 1, 1], [], []>} : vector<8x16xf32>, vector<16x64xf32>, vector<8x64xf32> -> vector<8x64xf32>
    %43 = arith.addf %42, %15 : vector<8x64xf32>
    %44 = vector.extract_strided_slice %43 {offsets = [0, 0], sizes = [8, 48], strides = [1, 1]} : vector<8x64xf32> to vector<8x48xf32>
    %45 = arith.negf %44 : vector<8x48xf32>
    %46 = math.exp %45 : vector<8x48xf32>
    %cst_11 = arith.constant 1.000000e+00 : f32
    %47 = vector.broadcast %cst_11 : f32 to vector<8x48xf32>
    %48 = arith.addf %47, %46 : vector<8x48xf32>
    %49 = arith.divf %47, %48 : vector<8x48xf32>
    %50 = vector.extract_strided_slice %49 {offsets = [0, 0], sizes = [8, 16], strides = [1, 1]} : vector<8x48xf32> to vector<8x16xf32>
    %51 = vector.extract_strided_slice %49 {offsets = [0, 16], sizes = [8, 16], strides = [1, 1]} : vector<8x48xf32> to vector<8x16xf32>
    %52 = vector.extract_strided_slice %49 {offsets = [0, 32], sizes = [8, 16], strides = [1, 1]} : vector<8x48xf32> to vector<8x16xf32>
    %53 = vector.extract_strided_slice %43 {offsets = [0, 48], sizes = [8, 16], strides = [1, 1]} : vector<8x64xf32> to vector<8x16xf32>
    %54 = math.tanh %53 : vector<8x16xf32>
    %55 = arith.mulf %51, %32 : vector<8x16xf32>
    %56 = arith.mulf %50, %54 : vector<8x16xf32>
    %57 = arith.addf %55, %56 : vector<8x16xf32>
    %58 = math.tanh %57 : vector<8x16xf32>
    %59 = arith.mulf %52, %58 : vector<8x16xf32>
    %cst_12 = arith.constant dense<0.000000e+00> : vector<8x16xf32>
    %60 = tpu.matmul %59, %7, %cst_12 {dimension_numbers = #tpu.dot_dimension_numbers<[1], [0], [0], [1], [0, 0, 1, 1], [], []>} : vector<8x16xf32>, vector<16x16xf32>, vector<8x16xf32> -> vector<8x16xf32>
    %61 = arith.addf %60, %18 : vector<8x16xf32>
    %cst_13 = arith.constant dense<0xFF800000> : vector<8xf32>
    %62 = vector.multi_reduction <maximumf>, %61, %cst_13 [1] : vector<8x16xf32> to vector<8xf32>
    %63 = vector.shape_cast %62 : vector<8xf32> to vector<8x1xf32>
    %64 = vector.broadcast %63 : vector<8x1xf32> to vector<8x16xf32>
    %65 = arith.subf %61, %64 : vector<8x16xf32>
    %66 = math.exp %65 : vector<8x16xf32>
    %cst_14 = arith.constant dense<0.000000e+00> : vector<8xf32>
    %67 = vector.multi_reduction <add>, %66, %cst_14 [1] : vector<8x16xf32> to vector<8xf32>
    %68 = vector.shape_cast %67 : vector<8xf32> to vector<8x1xf32>
    %69 = tpu.reciprocal %68 {approx = true} : vector<8x1xf32> -> vector<8x1xf32>
    %70 = math.log %68 : vector<8x1xf32>
    %71 = vector.broadcast %63 : vector<8x1xf32> to vector<8x16xf32>
    %72 = arith.subf %61, %71 : vector<8x16xf32>
    %73 = arith.mulf %66, %72 : vector<8x16xf32>
    %cst_15 = arith.constant dense<0.000000e+00> : vector<8xf32>
    %74 = vector.multi_reduction <add>, %73, %cst_15 [1] : vector<8x16xf32> to vector<8xf32>
    %75 = vector.shape_cast %74 : vector<8xf32> to vector<8x1xf32>
    %76 = arith.mulf %69, %75 : vector<8x1xf32>
    %77 = arith.subf %70, %76 : vector<8x1xf32>
    %cst_16 = arith.constant 0.000000e+00 : f32
    %78 = vector.broadcast %cst_16 : f32 to vector<8x1xf32>
    %79 = arith.subf %78, %70 : vector<8x1xf32>
    %80 = vector.broadcast %63 : vector<8x1xf32> to vector<8x16xf32>
    %81 = arith.cmpf oge, %61, %80 : vector<8x16xf32>
    %c16_i32 = arith.constant 16 : i32
    %82 = vector.broadcast %c16_i32 : i32 to vector<8x16xi32>
    %83 = arith.select %81, %38, %82 : vector<8x16xi1>, vector<8x16xi32>
    %cst_17 = arith.constant dense<2147483647> : vector<8xi32>
    %84 = vector.multi_reduction <minsi>, %83, %cst_17 [1] : vector<8x16xi32> to vector<8xi32>
    %85 = vector.shape_cast %84 : vector<8xi32> to vector<8x1xi32>
    %86 = vector.broadcast %85 : vector<8x1xi32> to vector<8x16xi32>
    %87 = arith.cmpi eq, %38, %86 : vector<8x16xi32>
    %88 = arith.extui %87 : vector<8x16xi1> to vector<8x16xi32>
    %89 = arith.sitofp %88 : vector<8x16xi32> to vector<8x16xf32>
    %c0_i32_18 = arith.constant 0 : i32
    %90 = vector.broadcast %c0_i32_18 : i32 to vector<8x9xi32>
    %91 = arith.cmpi eq, %39, %90 : vector<8x9xi32>
    %92 = vector.shape_cast %85 : vector<8x1xi32> to vector<8x1xi32>
    %93 = vector.broadcast %92 : vector<8x1xi32> to vector<8x9xi32>
    %94 = arith.select %91, %93, %40 : vector<8x9xi1>, vector<8x9xi32>
    %c0_i32_19 = arith.constant 0 : i32
    %95 = vector.broadcast %c0_i32_19 : i32 to vector<8x9xi32>
    %96 = arith.cmpi eq, %39, %95 : vector<8x9xi32>
    %97 = vector.shape_cast %77 : vector<8x1xf32> to vector<8x1xf32>
    %98 = vector.broadcast %97 : vector<8x1xf32> to vector<8x9xf32>
    %99 = arith.select %96, %98, %41 : vector<8x9xi1>, vector<8x9xf32>
    %100 = arith.mulf %77, %34 : vector<8x1xf32>
    %101 = arith.addf %35, %100 : vector<8x1xf32>
    %102 = arith.mulf %79, %34 : vector<8x1xf32>
    %103 = arith.addf %36, %102 : vector<8x1xf32>
    %104 = arith.addf %37, %34 : vector<8x1xf32>
    %105 = tpu.concatenate %89, %33 in 1 : vector<8x16xf32>, vector<8x8xf32> -> vector<8x24xf32>
    %cst_20 = arith.constant dense<0.000000e+00> : vector<8x8xf32>
    %106 = tpu.matmul %105, %4, %cst_20 {dimension_numbers = #tpu.dot_dimension_numbers<[1], [0], [0], [1], [0, 0, 1, 1], [], []>} : vector<8x24xf32>, vector<24x8xf32>, vector<8x8xf32> -> vector<8x8xf32>
    %107 = arith.addf %106, %21 : vector<8x8xf32>
    %108 = math.tanh %107 : vector<8x8xf32>
    %109 = vector.broadcast %34 : vector<8x1xf32> to vector<8x8xf32>
    %110 = arith.mulf %109, %108 : vector<8x8xf32>
    %cst_21 = arith.constant 1.000000e+00 : f32
    %111 = vector.broadcast %cst_21 : f32 to vector<8x1xf32>
    %112 = arith.subf %111, %34 : vector<8x1xf32>
    %113 = vector.broadcast %112 : vector<8x1xf32> to vector<8x8xf32>
    %114 = arith.mulf %113, %33 : vector<8x8xf32>
    %115 = arith.addf %110, %114 : vector<8x8xf32>
    %c0_i32_22 = arith.constant 0 : i32
    %116 = vector.broadcast %c0_i32_22 : i32 to vector<8x1xi32>
    %117 = arith.cmpi ne, %85, %116 : vector<8x1xi32>
    %118 = arith.extui %117 : vector<8x1xi1> to vector<8x1xi32>
    %119 = arith.sitofp %118 : vector<8x1xi32> to vector<8x1xf32>
    %120 = arith.mulf %34, %119 : vector<8x1xf32>
    %121 = tpu.concatenate %89, %59 in 1 : vector<8x16xf32>, vector<8x16xf32> -> vector<8x32xf32>
    %cst_23 = arith.constant dense<0.000000e+00> : vector<8x64xf32>
    %122 = tpu.matmul %121, %2, %cst_23 {dimension_numbers = #tpu.dot_dimension_numbers<[1], [0], [0], [1], [0, 0, 1, 1], [], []>} : vector<8x32xf32>, vector<32x64xf32>, vector<8x64xf32> -> vector<8x64xf32>
    %123 = arith.addf %122, %12 : vector<8x64xf32>
    %124 = vector.extract_strided_slice %123 {offsets = [0, 0], sizes = [8, 48], strides = [1, 1]} : vector<8x64xf32> to vector<8x48xf32>
    %125 = arith.negf %124 : vector<8x48xf32>
    %126 = math.exp %125 : vector<8x48xf32>
    %cst_24 = arith.constant 1.000000e+00 : f32
    %127 = vector.broadcast %cst_24 : f32 to vector<8x48xf32>
    %128 = arith.addf %127, %126 : vector<8x48xf32>
    %129 = arith.divf %127, %128 : vector<8x48xf32>
    %130 = vector.extract_strided_slice %129 {offsets = [0, 0], sizes = [8, 16], strides = [1, 1]} : vector<8x48xf32> to vector<8x16xf32>
    %131 = vector.extract_strided_slice %129 {offsets = [0, 16], sizes = [8, 16], strides = [1, 1]} : vector<8x48xf32> to vector<8x16xf32>
    %132 = vector.extract_strided_slice %129 {offsets = [0, 32], sizes = [8, 16], strides = [1, 1]} : vector<8x48xf32> to vector<8x16xf32>
    %133 = vector.extract_strided_slice %123 {offsets = [0, 48], sizes = [8, 16], strides = [1, 1]} : vector<8x64xf32> to vector<8x16xf32>
    %134 = math.tanh %133 : vector<8x16xf32>
    %135 = arith.mulf %131, %57 : vector<8x16xf32>
    %136 = arith.mulf %130, %134 : vector<8x16xf32>
    %137 = arith.addf %135, %136 : vector<8x16xf32>
    %138 = math.tanh %137 : vector<8x16xf32>
    %139 = arith.mulf %132, %138 : vector<8x16xf32>
    %cst_25 = arith.constant dense<0.000000e+00> : vector<8x16xf32>
    %140 = tpu.matmul %139, %7, %cst_25 {dimension_numbers = #tpu.dot_dimension_numbers<[1], [0], [0], [1], [0, 0, 1, 1], [], []>} : vector<8x16xf32>, vector<16x16xf32>, vector<8x16xf32> -> vector<8x16xf32>
    %141 = arith.addf %140, %18 : vector<8x16xf32>
    %cst_26 = arith.constant dense<0xFF800000> : vector<8xf32>
    %142 = vector.multi_reduction <maximumf>, %141, %cst_26 [1] : vector<8x16xf32> to vector<8xf32>
    %143 = vector.shape_cast %142 : vector<8xf32> to vector<8x1xf32>
    %144 = vector.broadcast %143 : vector<8x1xf32> to vector<8x16xf32>
    %145 = arith.subf %141, %144 : vector<8x16xf32>
    %146 = math.exp %145 : vector<8x16xf32>
    %cst_27 = arith.constant dense<0.000000e+00> : vector<8xf32>
    %147 = vector.multi_reduction <add>, %146, %cst_27 [1] : vector<8x16xf32> to vector<8xf32>
    %148 = vector.shape_cast %147 : vector<8xf32> to vector<8x1xf32>
    %149 = tpu.reciprocal %148 {approx = true} : vector<8x1xf32> -> vector<8x1xf32>
    %150 = math.log %148 : vector<8x1xf32>
    %151 = vector.broadcast %143 : vector<8x1xf32> to vector<8x16xf32>
    %152 = arith.subf %141, %151 : vector<8x16xf32>
    %153 = arith.mulf %146, %152 : vector<8x16xf32>
    %cst_28 = arith.constant dense<0.000000e+00> : vector<8xf32>
    %154 = vector.multi_reduction <add>, %153, %cst_28 [1] : vector<8x16xf32> to vector<8xf32>
    %155 = vector.shape_cast %154 : vector<8xf32> to vector<8x1xf32>
    %156 = arith.mulf %149, %155 : vector<8x1xf32>
    %157 = arith.subf %150, %156 : vector<8x1xf32>
    %cst_29 = arith.constant 0.000000e+00 : f32
    %158 = vector.broadcast %cst_29 : f32 to vector<8x1xf32>
    %159 = arith.subf %158, %150 : vector<8x1xf32>
    %160 = vector.broadcast %143 : vector<8x1xf32> to vector<8x16xf32>
    %161 = arith.cmpf oge, %141, %160 : vector<8x16xf32>
    %c16_i32_30 = arith.constant 16 : i32
    %162 = vector.broadcast %c16_i32_30 : i32 to vector<8x16xi32>
    %163 = arith.select %161, %38, %162 : vector<8x16xi1>, vector<8x16xi32>
    %cst_31 = arith.constant dense<2147483647> : vector<8xi32>
    %164 = vector.multi_reduction <minsi>, %163, %cst_31 [1] : vector<8x16xi32> to vector<8xi32>
    %165 = vector.shape_cast %164 : vector<8xi32> to vector<8x1xi32>
    %166 = vector.broadcast %165 : vector<8x1xi32> to vector<8x16xi32>
    %167 = arith.cmpi eq, %38, %166 : vector<8x16xi32>
    %168 = arith.extui %167 : vector<8x16xi1> to vector<8x16xi32>
    %169 = arith.sitofp %168 : vector<8x16xi32> to vector<8x16xf32>
    %c1_i32 = arith.constant 1 : i32
    %170 = vector.broadcast %c1_i32 : i32 to vector<8x9xi32>
    %171 = arith.cmpi eq, %39, %170 : vector<8x9xi32>
    %172 = vector.shape_cast %165 : vector<8x1xi32> to vector<8x1xi32>
    %173 = vector.broadcast %172 : vector<8x1xi32> to vector<8x9xi32>
    %174 = arith.select %171, %173, %94 : vector<8x9xi1>, vector<8x9xi32>
    %c1_i32_32 = arith.constant 1 : i32
    %175 = vector.broadcast %c1_i32_32 : i32 to vector<8x9xi32>
    %176 = arith.cmpi eq, %39, %175 : vector<8x9xi32>
    %177 = vector.shape_cast %157 : vector<8x1xf32> to vector<8x1xf32>
    %178 = vector.broadcast %177 : vector<8x1xf32> to vector<8x9xf32>
    %179 = arith.select %176, %178, %99 : vector<8x9xi1>, vector<8x9xf32>
    %180 = arith.mulf %157, %120 : vector<8x1xf32>
    %181 = arith.addf %101, %180 : vector<8x1xf32>
    %182 = arith.mulf %159, %120 : vector<8x1xf32>
    %183 = arith.addf %103, %182 : vector<8x1xf32>
    %184 = arith.addf %104, %120 : vector<8x1xf32>
    %185 = tpu.concatenate %169, %115 in 1 : vector<8x16xf32>, vector<8x8xf32> -> vector<8x24xf32>
    %cst_33 = arith.constant dense<0.000000e+00> : vector<8x8xf32>
    %186 = tpu.matmul %185, %4, %cst_33 {dimension_numbers = #tpu.dot_dimension_numbers<[1], [0], [0], [1], [0, 0, 1, 1], [], []>} : vector<8x24xf32>, vector<24x8xf32>, vector<8x8xf32> -> vector<8x8xf32>
    %187 = arith.addf %186, %21 : vector<8x8xf32>
    %188 = math.tanh %187 : vector<8x8xf32>
    %189 = vector.broadcast %120 : vector<8x1xf32> to vector<8x8xf32>
    %190 = arith.mulf %189, %188 : vector<8x8xf32>
    %cst_34 = arith.constant 1.000000e+00 : f32
    %191 = vector.broadcast %cst_34 : f32 to vector<8x1xf32>
    %192 = arith.subf %191, %120 : vector<8x1xf32>
    %193 = vector.broadcast %192 : vector<8x1xf32> to vector<8x8xf32>
    %194 = arith.mulf %193, %115 : vector<8x8xf32>
    %195 = arith.addf %190, %194 : vector<8x8xf32>
    %c0_i32_35 = arith.constant 0 : i32
    %196 = vector.broadcast %c0_i32_35 : i32 to vector<8x1xi32>
    %197 = arith.cmpi ne, %165, %196 : vector<8x1xi32>
    %198 = arith.extui %197 : vector<8x1xi1> to vector<8x1xi32>
    %199 = arith.sitofp %198 : vector<8x1xi32> to vector<8x1xf32>
    %200 = arith.mulf %120, %199 : vector<8x1xf32>
    %201 = tpu.concatenate %169, %139 in 1 : vector<8x16xf32>, vector<8x16xf32> -> vector<8x32xf32>
    %cst_36 = arith.constant dense<0.000000e+00> : vector<8x64xf32>
    %202 = tpu.matmul %201, %2, %cst_36 {dimension_numbers = #tpu.dot_dimension_numbers<[1], [0], [0], [1], [0, 0, 1, 1], [], []>} : vector<8x32xf32>, vector<32x64xf32>, vector<8x64xf32> -> vector<8x64xf32>
    %203 = arith.addf %202, %12 : vector<8x64xf32>
    %204 = vector.extract_strided_slice %203 {offsets = [0, 0], sizes = [8, 48], strides = [1, 1]} : vector<8x64xf32> to vector<8x48xf32>
    %205 = arith.negf %204 : vector<8x48xf32>
    %206 = math.exp %205 : vector<8x48xf32>
    %cst_37 = arith.constant 1.000000e+00 : f32
    %207 = vector.broadcast %cst_37 : f32 to vector<8x48xf32>
    %208 = arith.addf %207, %206 : vector<8x48xf32>
    %209 = arith.divf %207, %208 : vector<8x48xf32>
    %210 = vector.extract_strided_slice %209 {offsets = [0, 0], sizes = [8, 16], strides = [1, 1]} : vector<8x48xf32> to vector<8x16xf32>
    %211 = vector.extract_strided_slice %209 {offsets = [0, 16], sizes = [8, 16], strides = [1, 1]} : vector<8x48xf32> to vector<8x16xf32>
    %212 = vector.extract_strided_slice %209 {offsets = [0, 32], sizes = [8, 16], strides = [1, 1]} : vector<8x48xf32> to vector<8x16xf32>
    %213 = vector.extract_strided_slice %203 {offsets = [0, 48], sizes = [8, 16], strides = [1, 1]} : vector<8x64xf32> to vector<8x16xf32>
    %214 = math.tanh %213 : vector<8x16xf32>
    %215 = arith.mulf %211, %137 : vector<8x16xf32>
    %216 = arith.mulf %210, %214 : vector<8x16xf32>
    %217 = arith.addf %215, %216 : vector<8x16xf32>
    %218 = math.tanh %217 : vector<8x16xf32>
    %219 = arith.mulf %212, %218 : vector<8x16xf32>
    %cst_38 = arith.constant dense<0.000000e+00> : vector<8x16xf32>
    %220 = tpu.matmul %219, %7, %cst_38 {dimension_numbers = #tpu.dot_dimension_numbers<[1], [0], [0], [1], [0, 0, 1, 1], [], []>} : vector<8x16xf32>, vector<16x16xf32>, vector<8x16xf32> -> vector<8x16xf32>
    %221 = arith.addf %220, %18 : vector<8x16xf32>
    %cst_39 = arith.constant dense<0xFF800000> : vector<8xf32>
    %222 = vector.multi_reduction <maximumf>, %221, %cst_39 [1] : vector<8x16xf32> to vector<8xf32>
    %223 = vector.shape_cast %222 : vector<8xf32> to vector<8x1xf32>
    %224 = vector.broadcast %223 : vector<8x1xf32> to vector<8x16xf32>
    %225 = arith.subf %221, %224 : vector<8x16xf32>
    %226 = math.exp %225 : vector<8x16xf32>
    %cst_40 = arith.constant dense<0.000000e+00> : vector<8xf32>
    %227 = vector.multi_reduction <add>, %226, %cst_40 [1] : vector<8x16xf32> to vector<8xf32>
    %228 = vector.shape_cast %227 : vector<8xf32> to vector<8x1xf32>
    %229 = tpu.reciprocal %228 {approx = true} : vector<8x1xf32> -> vector<8x1xf32>
    %230 = math.log %228 : vector<8x1xf32>
    %231 = vector.broadcast %223 : vector<8x1xf32> to vector<8x16xf32>
    %232 = arith.subf %221, %231 : vector<8x16xf32>
    %233 = arith.mulf %226, %232 : vector<8x16xf32>
    %cst_41 = arith.constant dense<0.000000e+00> : vector<8xf32>
    %234 = vector.multi_reduction <add>, %233, %cst_41 [1] : vector<8x16xf32> to vector<8xf32>
    %235 = vector.shape_cast %234 : vector<8xf32> to vector<8x1xf32>
    %236 = arith.mulf %229, %235 : vector<8x1xf32>
    %237 = arith.subf %230, %236 : vector<8x1xf32>
    %cst_42 = arith.constant 0.000000e+00 : f32
    %238 = vector.broadcast %cst_42 : f32 to vector<8x1xf32>
    %239 = arith.subf %238, %230 : vector<8x1xf32>
    %240 = vector.broadcast %223 : vector<8x1xf32> to vector<8x16xf32>
    %241 = arith.cmpf oge, %221, %240 : vector<8x16xf32>
    %c16_i32_43 = arith.constant 16 : i32
    %242 = vector.broadcast %c16_i32_43 : i32 to vector<8x16xi32>
    %243 = arith.select %241, %38, %242 : vector<8x16xi1>, vector<8x16xi32>
    %cst_44 = arith.constant dense<2147483647> : vector<8xi32>
    %244 = vector.multi_reduction <minsi>, %243, %cst_44 [1] : vector<8x16xi32> to vector<8xi32>
    %245 = vector.shape_cast %244 : vector<8xi32> to vector<8x1xi32>
    %246 = vector.broadcast %245 : vector<8x1xi32> to vector<8x16xi32>
    %247 = arith.cmpi eq, %38, %246 : vector<8x16xi32>
    %248 = arith.extui %247 : vector<8x16xi1> to vector<8x16xi32>
    %249 = arith.sitofp %248 : vector<8x16xi32> to vector<8x16xf32>
    %c2_i32 = arith.constant 2 : i32
    %250 = vector.broadcast %c2_i32 : i32 to vector<8x9xi32>
    %251 = arith.cmpi eq, %39, %250 : vector<8x9xi32>
    %252 = vector.shape_cast %245 : vector<8x1xi32> to vector<8x1xi32>
    %253 = vector.broadcast %252 : vector<8x1xi32> to vector<8x9xi32>
    %254 = arith.select %251, %253, %174 : vector<8x9xi1>, vector<8x9xi32>
    %c2_i32_45 = arith.constant 2 : i32
    %255 = vector.broadcast %c2_i32_45 : i32 to vector<8x9xi32>
    %256 = arith.cmpi eq, %39, %255 : vector<8x9xi32>
    %257 = vector.shape_cast %237 : vector<8x1xf32> to vector<8x1xf32>
    %258 = vector.broadcast %257 : vector<8x1xf32> to vector<8x9xf32>
    %259 = arith.select %256, %258, %179 : vector<8x9xi1>, vector<8x9xf32>
    %260 = arith.mulf %237, %200 : vector<8x1xf32>
    %261 = arith.addf %181, %260 : vector<8x1xf32>
    %262 = arith.mulf %239, %200 : vector<8x1xf32>
    %263 = arith.addf %183, %262 : vector<8x1xf32>
    %264 = arith.addf %184, %200 : vector<8x1xf32>
    %265 = tpu.concatenate %249, %195 in 1 : vector<8x16xf32>, vector<8x8xf32> -> vector<8x24xf32>
    %cst_46 = arith.constant dense<0.000000e+00> : vector<8x8xf32>
    %266 = tpu.matmul %265, %4, %cst_46 {dimension_numbers = #tpu.dot_dimension_numbers<[1], [0], [0], [1], [0, 0, 1, 1], [], []>} : vector<8x24xf32>, vector<24x8xf32>, vector<8x8xf32> -> vector<8x8xf32>
    %267 = arith.addf %266, %21 : vector<8x8xf32>
    %268 = math.tanh %267 : vector<8x8xf32>
    %269 = vector.broadcast %200 : vector<8x1xf32> to vector<8x8xf32>
    %270 = arith.mulf %269, %268 : vector<8x8xf32>
    %cst_47 = arith.constant 1.000000e+00 : f32
    %271 = vector.broadcast %cst_47 : f32 to vector<8x1xf32>
    %272 = arith.subf %271, %200 : vector<8x1xf32>
    %273 = vector.broadcast %272 : vector<8x1xf32> to vector<8x8xf32>
    %274 = arith.mulf %273, %195 : vector<8x8xf32>
    %275 = arith.addf %270, %274 : vector<8x8xf32>
    %c0_i32_48 = arith.constant 0 : i32
    %276 = vector.broadcast %c0_i32_48 : i32 to vector<8x1xi32>
    %277 = arith.cmpi ne, %245, %276 : vector<8x1xi32>
    %278 = arith.extui %277 : vector<8x1xi1> to vector<8x1xi32>
    %279 = arith.sitofp %278 : vector<8x1xi32> to vector<8x1xf32>
    %280 = arith.mulf %200, %279 : vector<8x1xf32>
    %281 = tpu.concatenate %249, %219 in 1 : vector<8x16xf32>, vector<8x16xf32> -> vector<8x32xf32>
    %cst_49 = arith.constant dense<0.000000e+00> : vector<8x64xf32>
    %282 = tpu.matmul %281, %2, %cst_49 {dimension_numbers = #tpu.dot_dimension_numbers<[1], [0], [0], [1], [0, 0, 1, 1], [], []>} : vector<8x32xf32>, vector<32x64xf32>, vector<8x64xf32> -> vector<8x64xf32>
    %283 = arith.addf %282, %12 : vector<8x64xf32>
    %284 = vector.extract_strided_slice %283 {offsets = [0, 0], sizes = [8, 48], strides = [1, 1]} : vector<8x64xf32> to vector<8x48xf32>
    %285 = arith.negf %284 : vector<8x48xf32>
    %286 = math.exp %285 : vector<8x48xf32>
    %cst_50 = arith.constant 1.000000e+00 : f32
    %287 = vector.broadcast %cst_50 : f32 to vector<8x48xf32>
    %288 = arith.addf %287, %286 : vector<8x48xf32>
    %289 = arith.divf %287, %288 : vector<8x48xf32>
    %290 = vector.extract_strided_slice %289 {offsets = [0, 0], sizes = [8, 16], strides = [1, 1]} : vector<8x48xf32> to vector<8x16xf32>
    %291 = vector.extract_strided_slice %289 {offsets = [0, 16], sizes = [8, 16], strides = [1, 1]} : vector<8x48xf32> to vector<8x16xf32>
    %292 = vector.extract_strided_slice %289 {offsets = [0, 32], sizes = [8, 16], strides = [1, 1]} : vector<8x48xf32> to vector<8x16xf32>
    %293 = vector.extract_strided_slice %283 {offsets = [0, 48], sizes = [8, 16], strides = [1, 1]} : vector<8x64xf32> to vector<8x16xf32>
    %294 = math.tanh %293 : vector<8x16xf32>
    %295 = arith.mulf %291, %217 : vector<8x16xf32>
    %296 = arith.mulf %290, %294 : vector<8x16xf32>
    %297 = arith.addf %295, %296 : vector<8x16xf32>
    %298 = math.tanh %297 : vector<8x16xf32>
    %299 = arith.mulf %292, %298 : vector<8x16xf32>
    %cst_51 = arith.constant dense<0.000000e+00> : vector<8x16xf32>
    %300 = tpu.matmul %299, %7, %cst_51 {dimension_numbers = #tpu.dot_dimension_numbers<[1], [0], [0], [1], [0, 0, 1, 1], [], []>} : vector<8x16xf32>, vector<16x16xf32>, vector<8x16xf32> -> vector<8x16xf32>
    %301 = arith.addf %300, %18 : vector<8x16xf32>
    %cst_52 = arith.constant dense<0xFF800000> : vector<8xf32>
    %302 = vector.multi_reduction <maximumf>, %301, %cst_52 [1] : vector<8x16xf32> to vector<8xf32>
    %303 = vector.shape_cast %302 : vector<8xf32> to vector<8x1xf32>
    %304 = vector.broadcast %303 : vector<8x1xf32> to vector<8x16xf32>
    %305 = arith.subf %301, %304 : vector<8x16xf32>
    %306 = math.exp %305 : vector<8x16xf32>
    %cst_53 = arith.constant dense<0.000000e+00> : vector<8xf32>
    %307 = vector.multi_reduction <add>, %306, %cst_53 [1] : vector<8x16xf32> to vector<8xf32>
    %308 = vector.shape_cast %307 : vector<8xf32> to vector<8x1xf32>
    %309 = tpu.reciprocal %308 {approx = true} : vector<8x1xf32> -> vector<8x1xf32>
    %310 = math.log %308 : vector<8x1xf32>
    %311 = vector.broadcast %303 : vector<8x1xf32> to vector<8x16xf32>
    %312 = arith.subf %301, %311 : vector<8x16xf32>
    %313 = arith.mulf %306, %312 : vector<8x16xf32>
    %cst_54 = arith.constant dense<0.000000e+00> : vector<8xf32>
    %314 = vector.multi_reduction <add>, %313, %cst_54 [1] : vector<8x16xf32> to vector<8xf32>
    %315 = vector.shape_cast %314 : vector<8xf32> to vector<8x1xf32>
    %316 = arith.mulf %309, %315 : vector<8x1xf32>
    %317 = arith.subf %310, %316 : vector<8x1xf32>
    %cst_55 = arith.constant 0.000000e+00 : f32
    %318 = vector.broadcast %cst_55 : f32 to vector<8x1xf32>
    %319 = arith.subf %318, %310 : vector<8x1xf32>
    %320 = vector.broadcast %303 : vector<8x1xf32> to vector<8x16xf32>
    %321 = arith.cmpf oge, %301, %320 : vector<8x16xf32>
    %c16_i32_56 = arith.constant 16 : i32
    %322 = vector.broadcast %c16_i32_56 : i32 to vector<8x16xi32>
    %323 = arith.select %321, %38, %322 : vector<8x16xi1>, vector<8x16xi32>
    %cst_57 = arith.constant dense<2147483647> : vector<8xi32>
    %324 = vector.multi_reduction <minsi>, %323, %cst_57 [1] : vector<8x16xi32> to vector<8xi32>
    %325 = vector.shape_cast %324 : vector<8xi32> to vector<8x1xi32>
    %326 = vector.broadcast %325 : vector<8x1xi32> to vector<8x16xi32>
    %327 = arith.cmpi eq, %38, %326 : vector<8x16xi32>
    %328 = arith.extui %327 : vector<8x16xi1> to vector<8x16xi32>
    %329 = arith.sitofp %328 : vector<8x16xi32> to vector<8x16xf32>
    %c3_i32 = arith.constant 3 : i32
    %330 = vector.broadcast %c3_i32 : i32 to vector<8x9xi32>
    %331 = arith.cmpi eq, %39, %330 : vector<8x9xi32>
    %332 = vector.shape_cast %325 : vector<8x1xi32> to vector<8x1xi32>
    %333 = vector.broadcast %332 : vector<8x1xi32> to vector<8x9xi32>
    %334 = arith.select %331, %333, %254 : vector<8x9xi1>, vector<8x9xi32>
    %c3_i32_58 = arith.constant 3 : i32
    %335 = vector.broadcast %c3_i32_58 : i32 to vector<8x9xi32>
    %336 = arith.cmpi eq, %39, %335 : vector<8x9xi32>
    %337 = vector.shape_cast %317 : vector<8x1xf32> to vector<8x1xf32>
    %338 = vector.broadcast %337 : vector<8x1xf32> to vector<8x9xf32>
    %339 = arith.select %336, %338, %259 : vector<8x9xi1>, vector<8x9xf32>
    %340 = arith.mulf %317, %280 : vector<8x1xf32>
    %341 = arith.addf %261, %340 : vector<8x1xf32>
    %342 = arith.mulf %319, %280 : vector<8x1xf32>
    %343 = arith.addf %263, %342 : vector<8x1xf32>
    %344 = arith.addf %264, %280 : vector<8x1xf32>
    %345 = tpu.concatenate %329, %275 in 1 : vector<8x16xf32>, vector<8x8xf32> -> vector<8x24xf32>
    %cst_59 = arith.constant dense<0.000000e+00> : vector<8x8xf32>
    %346 = tpu.matmul %345, %4, %cst_59 {dimension_numbers = #tpu.dot_dimension_numbers<[1], [0], [0], [1], [0, 0, 1, 1], [], []>} : vector<8x24xf32>, vector<24x8xf32>, vector<8x8xf32> -> vector<8x8xf32>
    %347 = arith.addf %346, %21 : vector<8x8xf32>
    %348 = math.tanh %347 : vector<8x8xf32>
    %349 = vector.broadcast %280 : vector<8x1xf32> to vector<8x8xf32>
    %350 = arith.mulf %349, %348 : vector<8x8xf32>
    %cst_60 = arith.constant 1.000000e+00 : f32
    %351 = vector.broadcast %cst_60 : f32 to vector<8x1xf32>
    %352 = arith.subf %351, %280 : vector<8x1xf32>
    %353 = vector.broadcast %352 : vector<8x1xf32> to vector<8x8xf32>
    %354 = arith.mulf %353, %275 : vector<8x8xf32>
    %355 = arith.addf %350, %354 : vector<8x8xf32>
    %c0_i32_61 = arith.constant 0 : i32
    %356 = vector.broadcast %c0_i32_61 : i32 to vector<8x1xi32>
    %357 = arith.cmpi ne, %325, %356 : vector<8x1xi32>
    %358 = arith.extui %357 : vector<8x1xi1> to vector<8x1xi32>
    %359 = arith.sitofp %358 : vector<8x1xi32> to vector<8x1xf32>
    %360 = arith.mulf %280, %359 : vector<8x1xf32>
    %361 = tpu.concatenate %329, %299 in 1 : vector<8x16xf32>, vector<8x16xf32> -> vector<8x32xf32>
    %cst_62 = arith.constant dense<0.000000e+00> : vector<8x64xf32>
    %362 = tpu.matmul %361, %2, %cst_62 {dimension_numbers = #tpu.dot_dimension_numbers<[1], [0], [0], [1], [0, 0, 1, 1], [], []>} : vector<8x32xf32>, vector<32x64xf32>, vector<8x64xf32> -> vector<8x64xf32>
    %363 = arith.addf %362, %12 : vector<8x64xf32>
    %364 = vector.extract_strided_slice %363 {offsets = [0, 0], sizes = [8, 48], strides = [1, 1]} : vector<8x64xf32> to vector<8x48xf32>
    %365 = arith.negf %364 : vector<8x48xf32>
    %366 = math.exp %365 : vector<8x48xf32>
    %cst_63 = arith.constant 1.000000e+00 : f32
    %367 = vector.broadcast %cst_63 : f32 to vector<8x48xf32>
    %368 = arith.addf %367, %366 : vector<8x48xf32>
    %369 = arith.divf %367, %368 : vector<8x48xf32>
    %370 = vector.extract_strided_slice %369 {offsets = [0, 0], sizes = [8, 16], strides = [1, 1]} : vector<8x48xf32> to vector<8x16xf32>
    %371 = vector.extract_strided_slice %369 {offsets = [0, 16], sizes = [8, 16], strides = [1, 1]} : vector<8x48xf32> to vector<8x16xf32>
    %372 = vector.extract_strided_slice %369 {offsets = [0, 32], sizes = [8, 16], strides = [1, 1]} : vector<8x48xf32> to vector<8x16xf32>
    %373 = vector.extract_strided_slice %363 {offsets = [0, 48], sizes = [8, 16], strides = [1, 1]} : vector<8x64xf32> to vector<8x16xf32>
    %374 = math.tanh %373 : vector<8x16xf32>
    %375 = arith.mulf %371, %297 : vector<8x16xf32>
    %376 = arith.mulf %370, %374 : vector<8x16xf32>
    %377 = arith.addf %375, %376 : vector<8x16xf32>
    %378 = math.tanh %377 : vector<8x16xf32>
    %379 = arith.mulf %372, %378 : vector<8x16xf32>
    %cst_64 = arith.constant dense<0.000000e+00> : vector<8x16xf32>
    %380 = tpu.matmul %379, %7, %cst_64 {dimension_numbers = #tpu.dot_dimension_numbers<[1], [0], [0], [1], [0, 0, 1, 1], [], []>} : vector<8x16xf32>, vector<16x16xf32>, vector<8x16xf32> -> vector<8x16xf32>
    %381 = arith.addf %380, %18 : vector<8x16xf32>
    %cst_65 = arith.constant dense<0xFF800000> : vector<8xf32>
    %382 = vector.multi_reduction <maximumf>, %381, %cst_65 [1] : vector<8x16xf32> to vector<8xf32>
    %383 = vector.shape_cast %382 : vector<8xf32> to vector<8x1xf32>
    %384 = vector.broadcast %383 : vector<8x1xf32> to vector<8x16xf32>
    %385 = arith.subf %381, %384 : vector<8x16xf32>
    %386 = math.exp %385 : vector<8x16xf32>
    %cst_66 = arith.constant dense<0.000000e+00> : vector<8xf32>
    %387 = vector.multi_reduction <add>, %386, %cst_66 [1] : vector<8x16xf32> to vector<8xf32>
    %388 = vector.shape_cast %387 : vector<8xf32> to vector<8x1xf32>
    %389 = tpu.reciprocal %388 {approx = true} : vector<8x1xf32> -> vector<8x1xf32>
    %390 = math.log %388 : vector<8x1xf32>
    %391 = vector.broadcast %383 : vector<8x1xf32> to vector<8x16xf32>
    %392 = arith.subf %381, %391 : vector<8x16xf32>
    %393 = arith.mulf %386, %392 : vector<8x16xf32>
    %cst_67 = arith.constant dense<0.000000e+00> : vector<8xf32>
    %394 = vector.multi_reduction <add>, %393, %cst_67 [1] : vector<8x16xf32> to vector<8xf32>
    %395 = vector.shape_cast %394 : vector<8xf32> to vector<8x1xf32>
    %396 = arith.mulf %389, %395 : vector<8x1xf32>
    %397 = arith.subf %390, %396 : vector<8x1xf32>
    %cst_68 = arith.constant 0.000000e+00 : f32
    %398 = vector.broadcast %cst_68 : f32 to vector<8x1xf32>
    %399 = arith.subf %398, %390 : vector<8x1xf32>
    %400 = vector.broadcast %383 : vector<8x1xf32> to vector<8x16xf32>
    %401 = arith.cmpf oge, %381, %400 : vector<8x16xf32>
    %c16_i32_69 = arith.constant 16 : i32
    %402 = vector.broadcast %c16_i32_69 : i32 to vector<8x16xi32>
    %403 = arith.select %401, %38, %402 : vector<8x16xi1>, vector<8x16xi32>
    %cst_70 = arith.constant dense<2147483647> : vector<8xi32>
    %404 = vector.multi_reduction <minsi>, %403, %cst_70 [1] : vector<8x16xi32> to vector<8xi32>
    %405 = vector.shape_cast %404 : vector<8xi32> to vector<8x1xi32>
    %406 = vector.broadcast %405 : vector<8x1xi32> to vector<8x16xi32>
    %407 = arith.cmpi eq, %38, %406 : vector<8x16xi32>
    %408 = arith.extui %407 : vector<8x16xi1> to vector<8x16xi32>
    %409 = arith.sitofp %408 : vector<8x16xi32> to vector<8x16xf32>
    %c4_i32 = arith.constant 4 : i32
    %410 = vector.broadcast %c4_i32 : i32 to vector<8x9xi32>
    %411 = arith.cmpi eq, %39, %410 : vector<8x9xi32>
    %412 = vector.shape_cast %405 : vector<8x1xi32> to vector<8x1xi32>
    %413 = vector.broadcast %412 : vector<8x1xi32> to vector<8x9xi32>
    %414 = arith.select %411, %413, %334 : vector<8x9xi1>, vector<8x9xi32>
    %c4_i32_71 = arith.constant 4 : i32
    %415 = vector.broadcast %c4_i32_71 : i32 to vector<8x9xi32>
    %416 = arith.cmpi eq, %39, %415 : vector<8x9xi32>
    %417 = vector.shape_cast %397 : vector<8x1xf32> to vector<8x1xf32>
    %418 = vector.broadcast %417 : vector<8x1xf32> to vector<8x9xf32>
    %419 = arith.select %416, %418, %339 : vector<8x9xi1>, vector<8x9xf32>
    %420 = arith.mulf %397, %360 : vector<8x1xf32>
    %421 = arith.addf %341, %420 : vector<8x1xf32>
    %422 = arith.mulf %399, %360 : vector<8x1xf32>
    %423 = arith.addf %343, %422 : vector<8x1xf32>
    %424 = arith.addf %344, %360 : vector<8x1xf32>
    %425 = tpu.concatenate %409, %355 in 1 : vector<8x16xf32>, vector<8x8xf32> -> vector<8x24xf32>
    %cst_72 = arith.constant dense<0.000000e+00> : vector<8x8xf32>
    %426 = tpu.matmul %425, %4, %cst_72 {dimension_numbers = #tpu.dot_dimension_numbers<[1], [0], [0], [1], [0, 0, 1, 1], [], []>} : vector<8x24xf32>, vector<24x8xf32>, vector<8x8xf32> -> vector<8x8xf32>
    %427 = arith.addf %426, %21 : vector<8x8xf32>
    %428 = math.tanh %427 : vector<8x8xf32>
    %429 = vector.broadcast %360 : vector<8x1xf32> to vector<8x8xf32>
    %430 = arith.mulf %429, %428 : vector<8x8xf32>
    %cst_73 = arith.constant 1.000000e+00 : f32
    %431 = vector.broadcast %cst_73 : f32 to vector<8x1xf32>
    %432 = arith.subf %431, %360 : vector<8x1xf32>
    %433 = vector.broadcast %432 : vector<8x1xf32> to vector<8x8xf32>
    %434 = arith.mulf %433, %355 : vector<8x8xf32>
    %435 = arith.addf %430, %434 : vector<8x8xf32>
    %c0_i32_74 = arith.constant 0 : i32
    %436 = vector.broadcast %c0_i32_74 : i32 to vector<8x1xi32>
    %437 = arith.cmpi ne, %405, %436 : vector<8x1xi32>
    %438 = arith.extui %437 : vector<8x1xi1> to vector<8x1xi32>
    %439 = arith.sitofp %438 : vector<8x1xi32> to vector<8x1xf32>
    %440 = arith.mulf %360, %439 : vector<8x1xf32>
    %441 = tpu.concatenate %409, %379 in 1 : vector<8x16xf32>, vector<8x16xf32> -> vector<8x32xf32>
    %cst_75 = arith.constant dense<0.000000e+00> : vector<8x64xf32>
    %442 = tpu.matmul %441, %2, %cst_75 {dimension_numbers = #tpu.dot_dimension_numbers<[1], [0], [0], [1], [0, 0, 1, 1], [], []>} : vector<8x32xf32>, vector<32x64xf32>, vector<8x64xf32> -> vector<8x64xf32>
    %443 = arith.addf %442, %12 : vector<8x64xf32>
    %444 = vector.extract_strided_slice %443 {offsets = [0, 0], sizes = [8, 48], strides = [1, 1]} : vector<8x64xf32> to vector<8x48xf32>
    %445 = arith.negf %444 : vector<8x48xf32>
    %446 = math.exp %445 : vector<8x48xf32>
    %cst_76 = arith.constant 1.000000e+00 : f32
    %447 = vector.broadcast %cst_76 : f32 to vector<8x48xf32>
    %448 = arith.addf %447, %446 : vector<8x48xf32>
    %449 = arith.divf %447, %448 : vector<8x48xf32>
    %450 = vector.extract_strided_slice %449 {offsets = [0, 0], sizes = [8, 16], strides = [1, 1]} : vector<8x48xf32> to vector<8x16xf32>
    %451 = vector.extract_strided_slice %449 {offsets = [0, 16], sizes = [8, 16], strides = [1, 1]} : vector<8x48xf32> to vector<8x16xf32>
    %452 = vector.extract_strided_slice %449 {offsets = [0, 32], sizes = [8, 16], strides = [1, 1]} : vector<8x48xf32> to vector<8x16xf32>
    %453 = vector.extract_strided_slice %443 {offsets = [0, 48], sizes = [8, 16], strides = [1, 1]} : vector<8x64xf32> to vector<8x16xf32>
    %454 = math.tanh %453 : vector<8x16xf32>
    %455 = arith.mulf %451, %377 : vector<8x16xf32>
    %456 = arith.mulf %450, %454 : vector<8x16xf32>
    %457 = arith.addf %455, %456 : vector<8x16xf32>
    %458 = math.tanh %457 : vector<8x16xf32>
    %459 = arith.mulf %452, %458 : vector<8x16xf32>
    %cst_77 = arith.constant dense<0.000000e+00> : vector<8x16xf32>
    %460 = tpu.matmul %459, %7, %cst_77 {dimension_numbers = #tpu.dot_dimension_numbers<[1], [0], [0], [1], [0, 0, 1, 1], [], []>} : vector<8x16xf32>, vector<16x16xf32>, vector<8x16xf32> -> vector<8x16xf32>
    %461 = arith.addf %460, %18 : vector<8x16xf32>
    %cst_78 = arith.constant dense<0xFF800000> : vector<8xf32>
    %462 = vector.multi_reduction <maximumf>, %461, %cst_78 [1] : vector<8x16xf32> to vector<8xf32>
    %463 = vector.shape_cast %462 : vector<8xf32> to vector<8x1xf32>
    %464 = vector.broadcast %463 : vector<8x1xf32> to vector<8x16xf32>
    %465 = arith.subf %461, %464 : vector<8x16xf32>
    %466 = math.exp %465 : vector<8x16xf32>
    %cst_79 = arith.constant dense<0.000000e+00> : vector<8xf32>
    %467 = vector.multi_reduction <add>, %466, %cst_79 [1] : vector<8x16xf32> to vector<8xf32>
    %468 = vector.shape_cast %467 : vector<8xf32> to vector<8x1xf32>
    %469 = tpu.reciprocal %468 {approx = true} : vector<8x1xf32> -> vector<8x1xf32>
    %470 = math.log %468 : vector<8x1xf32>
    %471 = vector.broadcast %463 : vector<8x1xf32> to vector<8x16xf32>
    %472 = arith.subf %461, %471 : vector<8x16xf32>
    %473 = arith.mulf %466, %472 : vector<8x16xf32>
    %cst_80 = arith.constant dense<0.000000e+00> : vector<8xf32>
    %474 = vector.multi_reduction <add>, %473, %cst_80 [1] : vector<8x16xf32> to vector<8xf32>
    %475 = vector.shape_cast %474 : vector<8xf32> to vector<8x1xf32>
    %476 = arith.mulf %469, %475 : vector<8x1xf32>
    %477 = arith.subf %470, %476 : vector<8x1xf32>
    %cst_81 = arith.constant 0.000000e+00 : f32
    %478 = vector.broadcast %cst_81 : f32 to vector<8x1xf32>
    %479 = arith.subf %478, %470 : vector<8x1xf32>
    %480 = vector.broadcast %463 : vector<8x1xf32> to vector<8x16xf32>
    %481 = arith.cmpf oge, %461, %480 : vector<8x16xf32>
    %c16_i32_82 = arith.constant 16 : i32
    %482 = vector.broadcast %c16_i32_82 : i32 to vector<8x16xi32>
    %483 = arith.select %481, %38, %482 : vector<8x16xi1>, vector<8x16xi32>
    %cst_83 = arith.constant dense<2147483647> : vector<8xi32>
    %484 = vector.multi_reduction <minsi>, %483, %cst_83 [1] : vector<8x16xi32> to vector<8xi32>
    %485 = vector.shape_cast %484 : vector<8xi32> to vector<8x1xi32>
    %486 = vector.broadcast %485 : vector<8x1xi32> to vector<8x16xi32>
    %487 = arith.cmpi eq, %38, %486 : vector<8x16xi32>
    %488 = arith.extui %487 : vector<8x16xi1> to vector<8x16xi32>
    %489 = arith.sitofp %488 : vector<8x16xi32> to vector<8x16xf32>
    %c5_i32 = arith.constant 5 : i32
    %490 = vector.broadcast %c5_i32 : i32 to vector<8x9xi32>
    %491 = arith.cmpi eq, %39, %490 : vector<8x9xi32>
    %492 = vector.shape_cast %485 : vector<8x1xi32> to vector<8x1xi32>
    %493 = vector.broadcast %492 : vector<8x1xi32> to vector<8x9xi32>
    %494 = arith.select %491, %493, %414 : vector<8x9xi1>, vector<8x9xi32>
    %c5_i32_84 = arith.constant 5 : i32
    %495 = vector.broadcast %c5_i32_84 : i32 to vector<8x9xi32>
    %496 = arith.cmpi eq, %39, %495 : vector<8x9xi32>
    %497 = vector.shape_cast %477 : vector<8x1xf32> to vector<8x1xf32>
    %498 = vector.broadcast %497 : vector<8x1xf32> to vector<8x9xf32>
    %499 = arith.select %496, %498, %419 : vector<8x9xi1>, vector<8x9xf32>
    %500 = arith.mulf %477, %440 : vector<8x1xf32>
    %501 = arith.addf %421, %500 : vector<8x1xf32>
    %502 = arith.mulf %479, %440 : vector<8x1xf32>
    %503 = arith.addf %423, %502 : vector<8x1xf32>
    %504 = arith.addf %424, %440 : vector<8x1xf32>
    %505 = tpu.concatenate %489, %435 in 1 : vector<8x16xf32>, vector<8x8xf32> -> vector<8x24xf32>
    %cst_85 = arith.constant dense<0.000000e+00> : vector<8x8xf32>
    %506 = tpu.matmul %505, %4, %cst_85 {dimension_numbers = #tpu.dot_dimension_numbers<[1], [0], [0], [1], [0, 0, 1, 1], [], []>} : vector<8x24xf32>, vector<24x8xf32>, vector<8x8xf32> -> vector<8x8xf32>
    %507 = arith.addf %506, %21 : vector<8x8xf32>
    %508 = math.tanh %507 : vector<8x8xf32>
    %509 = vector.broadcast %440 : vector<8x1xf32> to vector<8x8xf32>
    %510 = arith.mulf %509, %508 : vector<8x8xf32>
    %cst_86 = arith.constant 1.000000e+00 : f32
    %511 = vector.broadcast %cst_86 : f32 to vector<8x1xf32>
    %512 = arith.subf %511, %440 : vector<8x1xf32>
    %513 = vector.broadcast %512 : vector<8x1xf32> to vector<8x8xf32>
    %514 = arith.mulf %513, %435 : vector<8x8xf32>
    %515 = arith.addf %510, %514 : vector<8x8xf32>
    %c0_i32_87 = arith.constant 0 : i32
    %516 = vector.broadcast %c0_i32_87 : i32 to vector<8x1xi32>
    %517 = arith.cmpi ne, %485, %516 : vector<8x1xi32>
    %518 = arith.extui %517 : vector<8x1xi1> to vector<8x1xi32>
    %519 = arith.sitofp %518 : vector<8x1xi32> to vector<8x1xf32>
    %520 = arith.mulf %440, %519 : vector<8x1xf32>
    %521 = tpu.concatenate %489, %459 in 1 : vector<8x16xf32>, vector<8x16xf32> -> vector<8x32xf32>
    %cst_88 = arith.constant dense<0.000000e+00> : vector<8x64xf32>
    %522 = tpu.matmul %521, %2, %cst_88 {dimension_numbers = #tpu.dot_dimension_numbers<[1], [0], [0], [1], [0, 0, 1, 1], [], []>} : vector<8x32xf32>, vector<32x64xf32>, vector<8x64xf32> -> vector<8x64xf32>
    %523 = arith.addf %522, %12 : vector<8x64xf32>
    %524 = vector.extract_strided_slice %523 {offsets = [0, 0], sizes = [8, 48], strides = [1, 1]} : vector<8x64xf32> to vector<8x48xf32>
    %525 = arith.negf %524 : vector<8x48xf32>
    %526 = math.exp %525 : vector<8x48xf32>
    %cst_89 = arith.constant 1.000000e+00 : f32
    %527 = vector.broadcast %cst_89 : f32 to vector<8x48xf32>
    %528 = arith.addf %527, %526 : vector<8x48xf32>
    %529 = arith.divf %527, %528 : vector<8x48xf32>
    %530 = vector.extract_strided_slice %529 {offsets = [0, 0], sizes = [8, 16], strides = [1, 1]} : vector<8x48xf32> to vector<8x16xf32>
    %531 = vector.extract_strided_slice %529 {offsets = [0, 16], sizes = [8, 16], strides = [1, 1]} : vector<8x48xf32> to vector<8x16xf32>
    %532 = vector.extract_strided_slice %529 {offsets = [0, 32], sizes = [8, 16], strides = [1, 1]} : vector<8x48xf32> to vector<8x16xf32>
    %533 = vector.extract_strided_slice %523 {offsets = [0, 48], sizes = [8, 16], strides = [1, 1]} : vector<8x64xf32> to vector<8x16xf32>
    %534 = math.tanh %533 : vector<8x16xf32>
    %535 = arith.mulf %531, %457 : vector<8x16xf32>
    %536 = arith.mulf %530, %534 : vector<8x16xf32>
    %537 = arith.addf %535, %536 : vector<8x16xf32>
    %538 = math.tanh %537 : vector<8x16xf32>
    %539 = arith.mulf %532, %538 : vector<8x16xf32>
    %cst_90 = arith.constant dense<0.000000e+00> : vector<8x16xf32>
    %540 = tpu.matmul %539, %7, %cst_90 {dimension_numbers = #tpu.dot_dimension_numbers<[1], [0], [0], [1], [0, 0, 1, 1], [], []>} : vector<8x16xf32>, vector<16x16xf32>, vector<8x16xf32> -> vector<8x16xf32>
    %541 = arith.addf %540, %18 : vector<8x16xf32>
    %cst_91 = arith.constant dense<0xFF800000> : vector<8xf32>
    %542 = vector.multi_reduction <maximumf>, %541, %cst_91 [1] : vector<8x16xf32> to vector<8xf32>
    %543 = vector.shape_cast %542 : vector<8xf32> to vector<8x1xf32>
    %544 = vector.broadcast %543 : vector<8x1xf32> to vector<8x16xf32>
    %545 = arith.subf %541, %544 : vector<8x16xf32>
    %546 = math.exp %545 : vector<8x16xf32>
    %cst_92 = arith.constant dense<0.000000e+00> : vector<8xf32>
    %547 = vector.multi_reduction <add>, %546, %cst_92 [1] : vector<8x16xf32> to vector<8xf32>
    %548 = vector.shape_cast %547 : vector<8xf32> to vector<8x1xf32>
    %549 = tpu.reciprocal %548 {approx = true} : vector<8x1xf32> -> vector<8x1xf32>
    %550 = math.log %548 : vector<8x1xf32>
    %551 = vector.broadcast %543 : vector<8x1xf32> to vector<8x16xf32>
    %552 = arith.subf %541, %551 : vector<8x16xf32>
    %553 = arith.mulf %546, %552 : vector<8x16xf32>
    %cst_93 = arith.constant dense<0.000000e+00> : vector<8xf32>
    %554 = vector.multi_reduction <add>, %553, %cst_93 [1] : vector<8x16xf32> to vector<8xf32>
    %555 = vector.shape_cast %554 : vector<8xf32> to vector<8x1xf32>
    %556 = arith.mulf %549, %555 : vector<8x1xf32>
    %557 = arith.subf %550, %556 : vector<8x1xf32>
    %cst_94 = arith.constant 0.000000e+00 : f32
    %558 = vector.broadcast %cst_94 : f32 to vector<8x1xf32>
    %559 = arith.subf %558, %550 : vector<8x1xf32>
    %560 = vector.broadcast %543 : vector<8x1xf32> to vector<8x16xf32>
    %561 = arith.cmpf oge, %541, %560 : vector<8x16xf32>
    %c16_i32_95 = arith.constant 16 : i32
    %562 = vector.broadcast %c16_i32_95 : i32 to vector<8x16xi32>
    %563 = arith.select %561, %38, %562 : vector<8x16xi1>, vector<8x16xi32>
    %cst_96 = arith.constant dense<2147483647> : vector<8xi32>
    %564 = vector.multi_reduction <minsi>, %563, %cst_96 [1] : vector<8x16xi32> to vector<8xi32>
    %565 = vector.shape_cast %564 : vector<8xi32> to vector<8x1xi32>
    %566 = vector.broadcast %565 : vector<8x1xi32> to vector<8x16xi32>
    %567 = arith.cmpi eq, %38, %566 : vector<8x16xi32>
    %568 = arith.extui %567 : vector<8x16xi1> to vector<8x16xi32>
    %569 = arith.sitofp %568 : vector<8x16xi32> to vector<8x16xf32>
    %c6_i32 = arith.constant 6 : i32
    %570 = vector.broadcast %c6_i32 : i32 to vector<8x9xi32>
    %571 = arith.cmpi eq, %39, %570 : vector<8x9xi32>
    %572 = vector.shape_cast %565 : vector<8x1xi32> to vector<8x1xi32>
    %573 = vector.broadcast %572 : vector<8x1xi32> to vector<8x9xi32>
    %574 = arith.select %571, %573, %494 : vector<8x9xi1>, vector<8x9xi32>
    %c6_i32_97 = arith.constant 6 : i32
    %575 = vector.broadcast %c6_i32_97 : i32 to vector<8x9xi32>
    %576 = arith.cmpi eq, %39, %575 : vector<8x9xi32>
    %577 = vector.shape_cast %557 : vector<8x1xf32> to vector<8x1xf32>
    %578 = vector.broadcast %577 : vector<8x1xf32> to vector<8x9xf32>
    %579 = arith.select %576, %578, %499 : vector<8x9xi1>, vector<8x9xf32>
    %580 = arith.mulf %557, %520 : vector<8x1xf32>
    %581 = arith.addf %501, %580 : vector<8x1xf32>
    %582 = arith.mulf %559, %520 : vector<8x1xf32>
    %583 = arith.addf %503, %582 : vector<8x1xf32>
    %584 = arith.addf %504, %520 : vector<8x1xf32>
    %585 = tpu.concatenate %569, %515 in 1 : vector<8x16xf32>, vector<8x8xf32> -> vector<8x24xf32>
    %cst_98 = arith.constant dense<0.000000e+00> : vector<8x8xf32>
    %586 = tpu.matmul %585, %4, %cst_98 {dimension_numbers = #tpu.dot_dimension_numbers<[1], [0], [0], [1], [0, 0, 1, 1], [], []>} : vector<8x24xf32>, vector<24x8xf32>, vector<8x8xf32> -> vector<8x8xf32>
    %587 = arith.addf %586, %21 : vector<8x8xf32>
    %588 = math.tanh %587 : vector<8x8xf32>
    %589 = vector.broadcast %520 : vector<8x1xf32> to vector<8x8xf32>
    %590 = arith.mulf %589, %588 : vector<8x8xf32>
    %cst_99 = arith.constant 1.000000e+00 : f32
    %591 = vector.broadcast %cst_99 : f32 to vector<8x1xf32>
    %592 = arith.subf %591, %520 : vector<8x1xf32>
    %593 = vector.broadcast %592 : vector<8x1xf32> to vector<8x8xf32>
    %594 = arith.mulf %593, %515 : vector<8x8xf32>
    %595 = arith.addf %590, %594 : vector<8x8xf32>
    %c0_i32_100 = arith.constant 0 : i32
    %596 = vector.broadcast %c0_i32_100 : i32 to vector<8x1xi32>
    %597 = arith.cmpi ne, %565, %596 : vector<8x1xi32>
    %598 = arith.extui %597 : vector<8x1xi1> to vector<8x1xi32>
    %599 = arith.sitofp %598 : vector<8x1xi32> to vector<8x1xf32>
    %600 = arith.mulf %520, %599 : vector<8x1xf32>
    %601 = tpu.concatenate %569, %539 in 1 : vector<8x16xf32>, vector<8x16xf32> -> vector<8x32xf32>
    %cst_101 = arith.constant dense<0.000000e+00> : vector<8x64xf32>
    %602 = tpu.matmul %601, %2, %cst_101 {dimension_numbers = #tpu.dot_dimension_numbers<[1], [0], [0], [1], [0, 0, 1, 1], [], []>} : vector<8x32xf32>, vector<32x64xf32>, vector<8x64xf32> -> vector<8x64xf32>
    %603 = arith.addf %602, %12 : vector<8x64xf32>
    %604 = vector.extract_strided_slice %603 {offsets = [0, 0], sizes = [8, 48], strides = [1, 1]} : vector<8x64xf32> to vector<8x48xf32>
    %605 = arith.negf %604 : vector<8x48xf32>
    %606 = math.exp %605 : vector<8x48xf32>
    %cst_102 = arith.constant 1.000000e+00 : f32
    %607 = vector.broadcast %cst_102 : f32 to vector<8x48xf32>
    %608 = arith.addf %607, %606 : vector<8x48xf32>
    %609 = arith.divf %607, %608 : vector<8x48xf32>
    %610 = vector.extract_strided_slice %609 {offsets = [0, 0], sizes = [8, 16], strides = [1, 1]} : vector<8x48xf32> to vector<8x16xf32>
    %611 = vector.extract_strided_slice %609 {offsets = [0, 16], sizes = [8, 16], strides = [1, 1]} : vector<8x48xf32> to vector<8x16xf32>
    %612 = vector.extract_strided_slice %609 {offsets = [0, 32], sizes = [8, 16], strides = [1, 1]} : vector<8x48xf32> to vector<8x16xf32>
    %613 = vector.extract_strided_slice %603 {offsets = [0, 48], sizes = [8, 16], strides = [1, 1]} : vector<8x64xf32> to vector<8x16xf32>
    %614 = math.tanh %613 : vector<8x16xf32>
    %615 = arith.mulf %611, %537 : vector<8x16xf32>
    %616 = arith.mulf %610, %614 : vector<8x16xf32>
    %617 = arith.addf %615, %616 : vector<8x16xf32>
    %618 = math.tanh %617 : vector<8x16xf32>
    %619 = arith.mulf %612, %618 : vector<8x16xf32>
    %cst_103 = arith.constant dense<0.000000e+00> : vector<8x16xf32>
    %620 = tpu.matmul %619, %7, %cst_103 {dimension_numbers = #tpu.dot_dimension_numbers<[1], [0], [0], [1], [0, 0, 1, 1], [], []>} : vector<8x16xf32>, vector<16x16xf32>, vector<8x16xf32> -> vector<8x16xf32>
    %621 = arith.addf %620, %18 : vector<8x16xf32>
    %cst_104 = arith.constant dense<0xFF800000> : vector<8xf32>
    %622 = vector.multi_reduction <maximumf>, %621, %cst_104 [1] : vector<8x16xf32> to vector<8xf32>
    %623 = vector.shape_cast %622 : vector<8xf32> to vector<8x1xf32>
    %624 = vector.broadcast %623 : vector<8x1xf32> to vector<8x16xf32>
    %625 = arith.subf %621, %624 : vector<8x16xf32>
    %626 = math.exp %625 : vector<8x16xf32>
    %cst_105 = arith.constant dense<0.000000e+00> : vector<8xf32>
    %627 = vector.multi_reduction <add>, %626, %cst_105 [1] : vector<8x16xf32> to vector<8xf32>
    %628 = vector.shape_cast %627 : vector<8xf32> to vector<8x1xf32>
    %629 = tpu.reciprocal %628 {approx = true} : vector<8x1xf32> -> vector<8x1xf32>
    %630 = math.log %628 : vector<8x1xf32>
    %631 = vector.broadcast %623 : vector<8x1xf32> to vector<8x16xf32>
    %632 = arith.subf %621, %631 : vector<8x16xf32>
    %633 = arith.mulf %626, %632 : vector<8x16xf32>
    %cst_106 = arith.constant dense<0.000000e+00> : vector<8xf32>
    %634 = vector.multi_reduction <add>, %633, %cst_106 [1] : vector<8x16xf32> to vector<8xf32>
    %635 = vector.shape_cast %634 : vector<8xf32> to vector<8x1xf32>
    %636 = arith.mulf %629, %635 : vector<8x1xf32>
    %637 = arith.subf %630, %636 : vector<8x1xf32>
    %cst_107 = arith.constant 0.000000e+00 : f32
    %638 = vector.broadcast %cst_107 : f32 to vector<8x1xf32>
    %639 = arith.subf %638, %630 : vector<8x1xf32>
    %640 = vector.broadcast %623 : vector<8x1xf32> to vector<8x16xf32>
    %641 = arith.cmpf oge, %621, %640 : vector<8x16xf32>
    %c16_i32_108 = arith.constant 16 : i32
    %642 = vector.broadcast %c16_i32_108 : i32 to vector<8x16xi32>
    %643 = arith.select %641, %38, %642 : vector<8x16xi1>, vector<8x16xi32>
    %cst_109 = arith.constant dense<2147483647> : vector<8xi32>
    %644 = vector.multi_reduction <minsi>, %643, %cst_109 [1] : vector<8x16xi32> to vector<8xi32>
    %645 = vector.shape_cast %644 : vector<8xi32> to vector<8x1xi32>
    %646 = vector.broadcast %645 : vector<8x1xi32> to vector<8x16xi32>
    %647 = arith.cmpi eq, %38, %646 : vector<8x16xi32>
    %648 = arith.extui %647 : vector<8x16xi1> to vector<8x16xi32>
    %649 = arith.sitofp %648 : vector<8x16xi32> to vector<8x16xf32>
    %c7_i32 = arith.constant 7 : i32
    %650 = vector.broadcast %c7_i32 : i32 to vector<8x9xi32>
    %651 = arith.cmpi eq, %39, %650 : vector<8x9xi32>
    %652 = vector.shape_cast %645 : vector<8x1xi32> to vector<8x1xi32>
    %653 = vector.broadcast %652 : vector<8x1xi32> to vector<8x9xi32>
    %654 = arith.select %651, %653, %574 : vector<8x9xi1>, vector<8x9xi32>
    %c7_i32_110 = arith.constant 7 : i32
    %655 = vector.broadcast %c7_i32_110 : i32 to vector<8x9xi32>
    %656 = arith.cmpi eq, %39, %655 : vector<8x9xi32>
    %657 = vector.shape_cast %637 : vector<8x1xf32> to vector<8x1xf32>
    %658 = vector.broadcast %657 : vector<8x1xf32> to vector<8x9xf32>
    %659 = arith.select %656, %658, %579 : vector<8x9xi1>, vector<8x9xf32>
    %660 = arith.mulf %637, %600 : vector<8x1xf32>
    %661 = arith.addf %581, %660 : vector<8x1xf32>
    %662 = arith.mulf %639, %600 : vector<8x1xf32>
    %663 = arith.addf %583, %662 : vector<8x1xf32>
    %664 = arith.addf %584, %600 : vector<8x1xf32>
    %665 = tpu.concatenate %649, %595 in 1 : vector<8x16xf32>, vector<8x8xf32> -> vector<8x24xf32>
    %cst_111 = arith.constant dense<0.000000e+00> : vector<8x8xf32>
    %666 = tpu.matmul %665, %4, %cst_111 {dimension_numbers = #tpu.dot_dimension_numbers<[1], [0], [0], [1], [0, 0, 1, 1], [], []>} : vector<8x24xf32>, vector<24x8xf32>, vector<8x8xf32> -> vector<8x8xf32>
    %667 = arith.addf %666, %21 : vector<8x8xf32>
    %668 = math.tanh %667 : vector<8x8xf32>
    %669 = vector.broadcast %600 : vector<8x1xf32> to vector<8x8xf32>
    %670 = arith.mulf %669, %668 : vector<8x8xf32>
    %cst_112 = arith.constant 1.000000e+00 : f32
    %671 = vector.broadcast %cst_112 : f32 to vector<8x1xf32>
    %672 = arith.subf %671, %600 : vector<8x1xf32>
    %673 = vector.broadcast %672 : vector<8x1xf32> to vector<8x8xf32>
    %674 = arith.mulf %673, %595 : vector<8x8xf32>
    %675 = arith.addf %670, %674 : vector<8x8xf32>
    %c0_i32_113 = arith.constant 0 : i32
    %676 = vector.broadcast %c0_i32_113 : i32 to vector<8x1xi32>
    %677 = arith.cmpi ne, %645, %676 : vector<8x1xi32>
    %678 = arith.extui %677 : vector<8x1xi1> to vector<8x1xi32>
    %679 = arith.sitofp %678 : vector<8x1xi32> to vector<8x1xf32>
    %680 = arith.mulf %600, %679 : vector<8x1xf32>
    %681 = arith.addf %664, %680 : vector<8x1xf32>
    %cst_114 = arith.constant dense<0.000000e+00> : vector<8x8xf32>
    %682 = tpu.matmul %675, %5, %cst_114 {dimension_numbers = #tpu.dot_dimension_numbers<[1], [0], [0], [1], [0, 0, 1, 1], [], []>} : vector<8x8xf32>, vector<8x8xf32>, vector<8x8xf32> -> vector<8x8xf32>
    %683 = arith.addf %27, %682 : vector<8x8xf32>
    %684 = math.tanh %683 : vector<8x8xf32>
    %685 = vector.broadcast %680 : vector<8x1xf32> to vector<8x8xf32>
    %686 = arith.mulf %685, %684 : vector<8x8xf32>
    %cst_115 = arith.constant 1.000000e+00 : f32
    %687 = vector.broadcast %cst_115 : f32 to vector<8x1xf32>
    %688 = arith.subf %687, %680 : vector<8x1xf32>
    %689 = vector.broadcast %688 : vector<8x1xf32> to vector<8x8xf32>
    %690 = arith.mulf %689, %675 : vector<8x8xf32>
    %691 = arith.addf %686, %690 : vector<8x8xf32>
    %cst_116 = arith.constant dense<0.000000e+00> : vector<8x8xf32>
    %692 = tpu.matmul %691, %9, %cst_116 {dimension_numbers = #tpu.dot_dimension_numbers<[1], [0], [0], [1], [0, 0, 1, 1], [], []>} : vector<8x8xf32>, vector<8x8xf32>, vector<8x8xf32> -> vector<8x8xf32>
    %693 = arith.addf %692, %24 : vector<8x8xf32>
    %694 = arith.subf %1, %693 : vector<8x8xf32>
    %695 = arith.mulf %694, %694 : vector<8x8xf32>
    %cst_117 = arith.constant dense<0.000000e+00> : vector<8xf32>
    %696 = vector.multi_reduction <add>, %695, %cst_117 [1] : vector<8x8xf32> to vector<8xf32>
    %697 = vector.shape_cast %696 : vector<8xf32> to vector<8x1xf32>
    %cst_118 = arith.constant 8.000000e+00 : f32
    %698 = vector.broadcast %cst_118 : f32 to vector<8x1xf32>
    %699 = arith.divf %697, %698 : vector<8x1xf32>
    %700 = arith.divf %661, %681 : vector<8x1xf32>
    %701 = vector.shape_cast %700 : vector<8x1xf32> to vector<1x8x1xf32>
    %cst_119 = arith.constant dense<0.000000e+00> : vector<1xf32>
    %702 = vector.multi_reduction <add>, %701, %cst_119 [1, 2] : vector<1x8x1xf32> to vector<1xf32>
    %703 = vector.shape_cast %702 : vector<1xf32> to vector<1x1x1xf32>
    %704 = vector.extract %703[0, 0, 0] : f32 from vector<1x1x1xf32>
    %cst_120 = arith.constant 8.000000e+00 : f32
    %705 = arith.divf %704, %cst_120 : f32
    %cst_121 = arith.constant 1.000000e-01 : f32
    %706 = arith.mulf %705, %cst_121 : f32
    %cst_122 = arith.constant 0.000000e+00 : f32
    %707 = arith.addf %706, %cst_122 : f32
    %cst_123 = arith.constant 0.00999999977 : f32
    %708 = vector.broadcast %cst_123 : f32 to vector<8x1xf32>
    %709 = arith.mulf %681, %708 : vector<8x1xf32>
    %710 = arith.mulf %709, %663 : vector<8x1xf32>
    %711 = vector.shape_cast %710 : vector<8x1xf32> to vector<1x8x1xf32>
    %cst_124 = arith.constant dense<0.000000e+00> : vector<1xf32>
    %712 = vector.multi_reduction <add>, %711, %cst_124 [1, 2] : vector<1x8x1xf32> to vector<1xf32>
    %713 = vector.shape_cast %712 : vector<1xf32> to vector<1x1x1xf32>
    %714 = vector.extract %713[0, 0, 0] : f32 from vector<1x1x1xf32>
    %cst_125 = arith.constant 8.000000e+00 : f32
    %715 = arith.divf %714, %cst_125 : f32
    %716 = arith.mulf %699, %663 : vector<8x1xf32>
    %717 = vector.shape_cast %716 : vector<8x1xf32> to vector<1x8x1xf32>
    %cst_126 = arith.constant dense<0.000000e+00> : vector<1xf32>
    %718 = vector.multi_reduction <add>, %717, %cst_126 [1, 2] : vector<1x8x1xf32> to vector<1xf32>
    %719 = vector.shape_cast %718 : vector<1xf32> to vector<1x1x1xf32>
    %720 = vector.extract %719[0, 0, 0] : f32 from vector<1x1x1xf32>
    %cst_127 = arith.constant 8.000000e+00 : f32
    %721 = arith.divf %720, %cst_127 : f32
    %722 = arith.addf %715, %721 : f32
    %723 = arith.subf %722, %707 : f32
    %724 = vector.shape_cast %699 : vector<8x1xf32> to vector<1x8x1xf32>
    %cst_128 = arith.constant dense<0.000000e+00> : vector<1xf32>
    %725 = vector.multi_reduction <add>, %724, %cst_128 [1, 2] : vector<1x8x1xf32> to vector<1xf32>
    %726 = vector.shape_cast %725 : vector<1xf32> to vector<1x1x1xf32>
    %727 = vector.extract %726[0, 0, 0] : f32 from vector<1x1x1xf32>
    %cst_129 = arith.constant 8.000000e+00 : f32
    %728 = arith.divf %727, %cst_129 : f32
    %729 = arith.addf %723, %728 : f32
    %c0_130 = arith.constant 0 : index
    %c0_131 = arith.constant 0 : index
    %730 = vector.load %arg2[%c0_130, %c0_131] : memref<8x9xi32, #tpu.memory_space<vmem>>, vector<8x9xi32>
    tpu.vector_store %arg2[%c0_130, %c0_131], %654 {strides = array<i32>} : memref<8x9xi32, #tpu.memory_space<vmem>>, vector<8x9xi32>,
    %c0_132 = arith.constant 0 : index
    %c0_133 = arith.constant 0 : index
    %731 = vector.load %arg3[%c0_132, %c0_133] : memref<8x9xf32, #tpu.memory_space<vmem>>, vector<8x9xf32>
    tpu.vector_store %arg3[%c0_132, %c0_133], %659 {strides = array<i32>} : memref<8x9xf32, #tpu.memory_space<vmem>>, vector<8x9xf32>,
    %c0_134 = arith.constant 0 : index
    %c0_135 = arith.constant 0 : index
    %732 = vector.load %arg4[%c0_134, %c0_135] : memref<8x8xf32, #tpu.memory_space<vmem>>, vector<8x8xf32>
    tpu.vector_store %arg4[%c0_134, %c0_135], %693 {strides = array<i32>} : memref<8x8xf32, #tpu.memory_space<vmem>>, vector<8x8xf32>,
    %c0_136 = arith.constant 0 : index
    %c0_137 = arith.constant 0 : index
    %733 = vector.load %arg5[%c0_136, %c0_137] : memref<8x1xf32, #tpu.memory_space<vmem>>, vector<8x1xf32>
    tpu.vector_store %arg5[%c0_136, %c0_137], %699 {strides = array<i32>} : memref<8x1xf32, #tpu.memory_space<vmem>>, vector<8x1xf32>,
    %c0_138 = arith.constant 0 : index
    %c0_139 = arith.constant 0 : index
    %734 = vector.load %arg6[%c0_138, %c0_139] : memref<8x1xf32, #tpu.memory_space<vmem>>, vector<8x1xf32>
    tpu.vector_store %arg6[%c0_138, %c0_139], %681 {strides = array<i32>} : memref<8x1xf32, #tpu.memory_space<vmem>>, vector<8x1xf32>,
    %735 = vector.broadcast %729 : f32 to vector<1x1xf32>
    %c0_140 = arith.constant 0 : index
    %c0_141 = arith.constant 0 : index
    %736 = vector.load %arg7[%c0_140, %c0_141] : memref<1x1xf32, #tpu.memory_space<vmem>>, vector<1x1xf32>
    tpu.vector_store %arg7[%c0_140, %c0_141], %735 {strides = array<i32>} : memref<1x1xf32, #tpu.memory_space<vmem>>, vector<1x1xf32>,
    return
  }
}

</mosaic_0001>

<llo_original>
// kernel: game_forward.1
$region0: #{game_forward.1}
  #allocation0 [shape = 'u32[]', space=smem, size = 0x4, offset = 0x4, fixed_abs, tag = 'smem constant byte address 0x4 - core index']
  #allocation1 [shape = 'u32[144,128]{1,0:T(1,128)}', space=vmem, size = 0x12000, scoped, tag = 'internal scratch']
  %s0 = inlined_call_operand.vmem [shape: f32[8,8], index: 0, kind: input, shape index: {}]
  %s1 = inlined_call_operand.vmem [shape: f32[48,128], index: 1, kind: input, shape index: {}]
  %s2 = inlined_call_operand.hbm [shape: s32[8,9], index: 2, kind: output, shape index: {0}]
  %s3 = inlined_call_operand.hbm [shape: f32[8,9], index: 3, kind: output, shape index: {1}]
  %s4 = inlined_call_operand.hbm [shape: f32[8,8], index: 4, kind: output, shape index: {2}]
  %s5 = inlined_call_operand.vmem [shape: f32[8,1], index: 5, kind: output, shape index: {3}]
  %s6 = inlined_call_operand.vmem [shape: f32[8,1], index: 6, kind: output, shape index: {4}]
  %s7 = inlined_call_operand.hbm [shape: f32[1,1], index: 7, kind: output, shape index: {5}]
  %8 = xla_tuple %s2, %s3, %s4, %s5, %s6, %s7
  %s9 = sld [smem:[#allocation0]]
  $region58: #{game_forward.1} parent=0
    _
  %s11 = ssub.s32 1, %s9
  %s12 = scalar_select 0, %s11, %s9
  $region1: #{game_forward.1} parent=0
    #allocation2 [shape = 'u8[4096]{0}', space=vmem, size = 0x1000, scoped, tag = 'output window, operand 0, single buffered']
    #allocation3 [shape = 's32[1]{0}', space=sflag, size = 0x4, scoped, tag = 'scoped memory for game_forward.1']
    #allocation4 [shape = 'u8[4096]{0}', space=vmem, size = 0x1000, scoped, tag = 'output window, operand 1, single buffered']
    #allocation5 [shape = 's32[1]{0}', space=sflag, size = 0x4, scoped, tag = 'scoped memory for game_forward.1']
    #allocation6 [shape = 'u8[4096]{0}', space=vmem, size = 0x1000, scoped, tag = 'output window, operand 2, single buffered']
    #allocation7 [shape = 'u8[512]{0}', space=vmem, size = 0x400, scoped, tag = 'output window, operand 5, single buffered']
    #allocation8 [shape = 's32[1]{0}', space=sflag, size = 0x4, scoped, tag = 'scoped memory for game_forward.1']
    %13 = vsyncpa [#allocation3], 0
    %14 = vsyncpa [#allocation5], 0
    %15 = vsyncpa [#allocation8], 0
    // Predicated region
    $region2: #{game_forward.1} parent=1 // pred_check
      _
    $region3: #{game_forward.1} parent=1 // pred_check_branch
      %17 = sbr.rel (0) target = $region5
    $region4: #{game_forward.1} parent=1 // pred_region
      _
    $region5: #{game_forward.1} parent=1 // pred_fallthru
      _
    // Predicated region
    $region6: #{game_forward.1} parent=1 // pred_check
      _
    $region7: #{game_forward.1} parent=1 // pred_check_branch
      %19 = sbr.rel (0) target = $region9
    $region8: #{game_forward.1} parent=1 // pred_region
      _
    $region9: #{game_forward.1} parent=1 // pred_fallthru
      _
    %v20 = vld [vmem:[%s1] sm:$0xff]
    %v21 = vld [vmem:[%s1 + $0x8] sm:$0xff]
    %v22 = vld [vmem:[%s1 + $0x10] sm:$0xff]
    %v23 = vld [vmem:[%s1 + $0x18] sm:$0xff]
    %v24 = vld [vmem:[%s1 + $0x20] sm:$0xff]
    %v25 = vld [vmem:[%s1 + $0x28] sm:$0xff]
    %v26 = vld [vmem:[%s0] sm:$0xff]
    %v27 = vlaneseq
    %v28 = vshrl.u32 %v27, 7
    %v29 = vsub.s32 0, %v28
    %v30 = vrot.slane %v24, %v29
    %v31 = vlaneseq
    %v32 = vshrl.u32 %v31, 7
    %v33 = vsub.s32 0, %v32
    %v34 = vrot.slane %v25, %v33
    %v35 = vlaneseq
    %v36 = vshrl.u32 %v35, 7
    %v37 = vsub.s32 0, %v36
    %v38 = vrot.slane %v20, %v37
    %v39 = vadd.f32 %v38, %v30
    %41 = vrot.lane.b32.xlu0 %v20, 40
    %v42 = vpop.permute.xlu0 %41
    %45 = vrot.lane.b32.xlu0 %v30, 40
    %v46 = vpop.permute.xlu0 %45
    %vm48 = vcmask 64512
    %v50 = vsel %vm48, %v26, 0
    %52 = vmatprep.subr.mxu0 0.0
    %53 = vmatpush1.msra.mxu0 %v42
    %54 = vmatprep.subr.mxu0 0.0
    %55 = vmatpush1.msra.mxu0 0.0
    %56 = vmatprep.subr.mxu0 0.0
    %57 = vmatpush1.msra.mxu0 0.0
    %58 = vmatprep.subr.mxu0 0.0
    %59 = vmatpush1.msra.mxu0 0.0
    %60 = vmatprep.subr.mxu0 0.0
    %61 = vmatpush1.msra.mxu0 0.0
    %62 = vmatprep.subr.mxu0 0.0
    %63 = vmatpush1.msra.mxu0 0.0
    %64 = vmatprep.subr.mxu0 0.0
    %65 = vmatpush1.msra.mxu0 0.0
    %66 = vmatprep.subr.mxu0 0.0
    %67 = vmatpush1.msra.mxu0 0.0
    %68 = vmatprep.subr.mxu0 0.0
    %69 = vmatpush1.msra.mxu0 0.0
    %70 = vmatprep.subr.mxu0 0.0
    %71 = vmatpush1.msra.mxu0 0.0
    %72 = vmatprep.subr.mxu0 0.0
    %73 = vmatpush1.msra.mxu0 0.0
    %74 = vmatprep.subr.mxu0 0.0
    %75 = vmatpush1.msra.mxu0 0.0
    %76 = vmatprep.subr.mxu0 0.0
    %77 = vmatpush1.msra.mxu0 0.0
    %78 = vmatprep.subr.mxu0 0.0
    %79 = vmatpush1.msra.mxu0 0.0
    %80 = vmatprep.subr.mxu0 0.0
    %81 = vmatpush1.msra.mxu0 0.0
    %82 = vmatprep.subr.mxu0 0.0
    %83 = vmatpush1.msra.mxu0 0.0
    %84 = vmatprep.subr.mxu0 0.0
    %85 = vmatpush1.msra.mxu0 0.0
    %86 = vmatprep.subr.mxu0 0.0
    %87 = vmatpush1.msra.mxu0 0.0
    %88 = vmatprep.subr.mxu0 0.0
    %89 = vmatpush1.msra.mxu0 0.0
    %90 = vmatprep.subr.mxu0 0.0
    %91 = vmatpush1.msra.mxu0 0.0
    %92 = vmatprep.subr.mxu0 0.0
    %93 = vmatpush1.msra.mxu0 0.0
    %94 = vmatprep.subr.mxu0 0.0
    %95 = vmatpush1.msra.mxu0 0.0
    %96 = vmatprep.subr.mxu0 0.0
    %97 = vmatpush1.msra.mxu0 0.0
    %98 = vmatprep.subr.mxu0 0.0
    %99 = vmatpush1.msra.mxu0 0.0
    %100 = vmatprep.subr.mxu0 0.0
    %101 = vmatpush1.msra.mxu0 0.0
    %102 = vmatprep.subr.mxu0 0.0
    %103 = vmatpush1.msra.mxu0 0.0
    %104 = vmatprep.subr.mxu0 0.0
    %105 = vmatpush1.msra.mxu0 0.0
    %106 = vmatprep.subr.mxu0 0.0
    %107 = vmatpush1.msra.mxu0 0.0
    %108 = vmatprep.subr.mxu0 0.0
    %109 = vmatpush1.msra.mxu0 0.0
    %110 = vmatprep.subr.mxu0 0.0
    %111 = vmatpush1.msra.mxu0 0.0
    %112 = vmatprep.subr.mxu0 0.0
    %113 = vmatpush1.msra.mxu0 0.0
    %114 = vmatprep.subr.mxu0 0.0
    %115 = vmatpush1.msra.mxu0 0.0
    %116 = vmatprep.mubr.f32.mxu0 0.0
    %117 = vmatmul.mubr.f32.gmra.mrb[0].mxu0 %v50
    %v118 = vpop.f32.mrb[0].mxu0
    %v119 = vadd.f32 %v46, %v118
    %v120 = vpop.f32.mrb[0].mxu0
    %121 = vdwg.mxu0
    %v122 = vlaneseq
    %v123 = vand.u32 %v122, 127
    %vm124 = vcmask 130048
    %v126 = vsel %vm124, %v119, 0
    %128 = vmatprep.subr.mxu0 0.0
    %129 = vmatpush1.msra.mxu0 %v22
    %130 = vmatprep.subr.mxu0 0.0
    %131 = vmatpush1.msra.mxu0 %v23
    %132 = vmatprep.subr.mxu0 0.0
    %133 = vmatpush1.msra.mxu0 0.0
    %134 = vmatprep.subr.mxu0 0.0
    %135 = vmatpush1.msra.mxu0 0.0
    %136 = vmatprep.subr.mxu0 0.0
    %137 = vmatpush1.msra.mxu0 0.0
    %138 = vmatprep.subr.mxu0 0.0
    %139 = vmatpush1.msra.mxu0 0.0
    %140 = vmatprep.subr.mxu0 0.0
    %141 = vmatpush1.msra.mxu0 0.0
    %142 = vmatprep.subr.mxu0 0.0
    %143 = vmatpush1.msra.mxu0 0.0
    %144 = vmatprep.subr.mxu0 0.0
    %145 = vmatpush1.msra.mxu0 0.0
    %146 = vmatprep.subr.mxu0 0.0
    %147 = vmatpush1.msra.mxu0 0.0
    %148 = vmatprep.subr.mxu0 0.0
    %149 = vmatpush1.msra.mxu0 0.0
    %150 = vmatprep.subr.mxu0 0.0
    %151 = vmatpush1.msra.mxu0 0.0
    %152 = vmatprep.subr.mxu0 0.0
    %153 = vmatpush1.msra.mxu0 0.0
    %154 = vmatprep.subr.mxu0 0.0
    %155 = vmatpush1.msra.mxu0 0.0
    %156 = vmatprep.subr.mxu0 0.0
    %157 = vmatpush1.msra.mxu0 0.0
    %158 = vmatprep.subr.mxu0 0.0
    %159 = vmatpush1.msra.mxu0 0.0
    %160 = vmatprep.subr.mxu0 0.0
    %161 = vmatpush1.msra.mxu0 0.0
    %162 = vmatprep.subr.mxu0 0.0
    %163 = vmatpush1.msra.mxu0 0.0
    %164 = vmatprep.subr.mxu0 0.0
    %165 = vmatpush1.msra.mxu0 0.0
    %166 = vmatprep.subr.mxu0 0.0
    %167 = vmatpush1.msra.mxu0 0.0
    %168 = vmatprep.subr.mxu0 0.0
    %169 = vmatpush1.msra.mxu0 0.0
    %170 = vmatprep.subr.mxu0 0.0
    %171 = vmatpush1.msra.mxu0 0.0
    %172 = vmatprep.subr.mxu0 0.0
    %173 = vmatpush1.msra.mxu0 0.0
    %174 = vmatprep.subr.mxu0 0.0
    %175 = vmatpush1.msra.mxu0 0.0
    %176 = vmatprep.subr.mxu0 0.0
    %177 = vmatpush1.msra.mxu0 0.0
    %178 = vmatprep.subr.mxu0 0.0
    %179 = vmatpush1.msra.mxu0 0.0
    %180 = vmatprep.subr.mxu0 0.0
    %181 = vmatpush1.msra.mxu0 0.0
    %182 = vmatprep.subr.mxu0 0.0
    %183 = vmatpush1.msra.mxu0 0.0
    %184 = vmatprep.subr.mxu0 0.0
    %185 = vmatpush1.msra.mxu0 0.0
    %186 = vmatprep.subr.mxu0 0.0
    %187 = vmatpush1.msra.mxu0 0.0
    %188 = vmatprep.subr.mxu0 0.0
    %189 = vmatpush1.msra.mxu0 0.0
    %190 = vmatprep.subr.mxu0 0.0
    %191 = vmatpush1.msra.mxu0 0.0
    %192 = vmatprep.mubr.f32.mxu0 0.0
    %193 = vmatmul.mubr.f32.gmra.mrb[0].mxu0 %v126
    %v194 = vpop.f32.mrb[0].mxu0
    %v195 = vadd.f32 %v34, %v194
    %v196 = vpop.f32.mrb[0].mxu0
    %197 = vdwg.mxu0
    %v198 = vxor.u32 %v195, 2147483648
    %v199 = vmul.f32 %v198, 1.442695
    %v200 = vpow.pop %v199
    %v201 = vadd.f32 %v200, 1.0
    %v202 = vrcp.pop %v201
    %v203 = vmul.f32 1.0, %v202
    %v204 = vtanh.pop %v195
    %v205 = vmul.f32 %v203, 0.0
    %207 = vrot.lane.b32.xlu0 %v204, 80
    %v208 = vpop.permute.xlu0 %207
    %v210 = vmul.f32 %v203, %v208
    %212 = vrot.lane.b32.xlu0 %v210, 16
    %v213 = vpop.permute.xlu0 %212
    %v215 = vadd.f32 %v205, %v213
    %v216 = vtanh.pop %v215
    %218 = vrot.lane.b32.xlu0 %v216, 16
    %v219 = vpop.permute.xlu0 %218
    %v221 = vmul.f32 %v203, %v219
    %223 = vrot.lane.b32.xlu0 %v221, 96
    %v224 = vpop.permute.xlu0 %223
    %226 = vrot.lane.b32.xlu0 %v20, 56
    %v227 = vpop.permute.xlu0 %226
    %228 = vrot.lane.b32.xlu0 %v21, 56
    %v229 = vpop.permute.xlu0 %228
    %232 = vrot.lane.b32.xlu0 %v30, 56
    %v233 = vpop.permute.xlu0 %232
    %v235 = vsel %vm124, %v224, 0
    %237 = vmatprep.subr.mxu0 0.0
    %238 = vmatpush1.msra.mxu0 %v227
    %239 = vmatprep.subr.mxu0 0.0
    %240 = vmatpush1.msra.mxu0 %v229
    %241 = vmatprep.subr.mxu0 0.0
    %242 = vmatpush1.msra.mxu0 0.0
    %243 = vmatprep.subr.mxu0 0.0
    %244 = vmatpush1.msra.mxu0 0.0
    %245 = vmatprep.subr.mxu0 0.0
    %246 = vmatpush1.msra.mxu0 0.0
    %247 = vmatprep.subr.mxu0 0.0
    %248 = vmatpush1.msra.mxu0 0.0
    %249 = vmatprep.subr.mxu0 0.0
    %250 = vmatpush1.msra.mxu0 0.0
    %251 = vmatprep.subr.mxu0 0.0
    %252 = vmatpush1.msra.mxu0 0.0
    %253 = vmatprep.subr.mxu0 0.0
    %254 = vmatpush1.msra.mxu0 0.0
    %255 = vmatprep.subr.mxu0 0.0
    %256 = vmatpush1.msra.mxu0 0.0
    %257 = vmatprep.subr.mxu0 0.0
    %258 = vmatpush1.msra.mxu0 0.0
    %259 = vmatprep.subr.mxu0 0.0
    %260 = vmatpush1.msra.mxu0 0.0
    %261 = vmatprep.subr.mxu0 0.0
    %262 = vmatpush1.msra.mxu0 0.0
    %263 = vmatprep.subr.mxu0 0.0
    %264 = vmatpush1.msra.mxu0 0.0
    %265 = vmatprep.subr.mxu0 0.0
    %266 = vmatpush1.msra.mxu0 0.0
    %267 = vmatprep.subr.mxu0 0.0
    %268 = vmatpush1.msra.mxu0 0.0
    %269 = vmatprep.subr.mxu0 0.0
    %270 = vmatpush1.msra.mxu0 0.0
    %271 = vmatprep.subr.mxu0 0.0
    %272 = vmatpush1.msra.mxu0 0.0
    %273 = vmatprep.subr.mxu0 0.0
    %274 = vmatpush1.msra.mxu0 0.0
    %275 = vmatprep.subr.mxu0 0.0
    %276 = vmatpush1.msra.mxu0 0.0
    %277 = vmatprep.subr.mxu0 0.0
    %278 = vmatpush1.msra.mxu0 0.0
    %279 = vmatprep.subr.mxu0 0.0
    %280 = vmatpush1.msra.mxu0 0.0
    %281 = vmatprep.subr.mxu0 0.0
    %282 = vmatpush1.msra.mxu0 0.0
    %283 = vmatprep.subr.mxu0 0.0
    %284 = vmatpush1.msra.mxu0 0.0
    %285 = vmatprep.subr.mxu0 0.0
    %286 = vmatpush1.msra.mxu0 0.0
    %287 = vmatprep.subr.mxu0 0.0
    %288 = vmatpush1.msra.mxu0 0.0
    %289 = vmatprep.subr.mxu0 0.0
    %290 = vmatpush1.msra.mxu0 0.0
    %291 = vmatprep.subr.mxu0 0.0
    %292 = vmatpush1.msra.mxu0 0.0
    %293 = vmatprep.subr.mxu0 0.0
    %294 = vmatpush1.msra.mxu0 0.0
    %295 = vmatprep.subr.mxu0 0.0
    %296 = vmatpush1.msra.mxu0 0.0
    %297 = vmatprep.subr.mxu0 0.0
    %298 = vmatpush1.msra.mxu0 0.0
    %299 = vmatprep.subr.mxu0 0.0
    %300 = vmatpush1.msra.mxu0 0.0
    %301 = vmatprep.mubr.f32.mxu0 0.0
    %302 = vmatmul.mubr.f32.gmra.mrb[0].mxu0 %v235
    %v303 = vpop.f32.mrb[0].mxu0
    %v304 = vadd.f32 %v233, %v303
    %v305 = vpop.f32.mrb[0].mxu0
    %306 = vdwg.mxu0
    %v307 = vsel %vm124, %v304, -inf
    %308 = vmax.xlane.f32.xlu0 %v307
    %v309 = vpop.xlane.xlu0 %308
    %v310 = vsub.f32 %v304, %v309
    %v311 = vmul.f32 %v310, 1.442695
    %v312 = vpow.pop %v311
    %v313 = vsel %vm124, %v312, 0.0
    %314 = vadd.xlane.f32.xlu0 %v313
    %v315 = vpop.xlane.xlu0 %314
    %v316 = vrcp.pop %v315
    %v317 = vlog2.pop %v315
    %v318 = vmul.f32 %v317, 0.6931472
    %v319 = vmul.f32 %v312, %v310
    %v320 = vsel %vm124, %v319, 0.0
    %321 = vadd.xlane.f32.xlu0 %v320
    %v322 = vpop.xlane.xlu0 %321
    %v323 = vmul.f32 %v316, %v322
    %v324 = vsub.f32 %v318, %v323
    %v325 = vsub.f32 0.0, %v318
    %vm326 = vcmp.ge.f32.partialorder %v304, %v309
    %v327 = vsel %vm326, %v123, 16
    %v328 = vsel %vm124, %v327, 2147483647
    %v329 = vand.u32 %v328, 65535
    %v330 = vshra.s32 %v328, 16
    %v331 = vcvt.s32.f32 %v329
    %v332 = vcvt.s32.f32 %v330
    %333 = vmin.xlane.f32.xlu0 %v332
    %v334 = vpop.xlane.xlu0 %333
    %vm335 = vcmp.eq.f32.partialorder %v332, %v334
    %v336 = vsel %vm335, %v331, inf
    %337 = vmin.xlane.f32.xlu0 %v336
    %v338 = vpop.xlane.xlu0 %337
    %v339 = vcvt.f32.s32 %v338
    %v340 = vcvt.f32.s32 %v334
    %v341 = vshll.u32 %v340, 16
    %v342 = vadd.s32 %v341, %v339
    %vm343 = vcmp.eq.s32.totalorder %v123, %v342
    %v344 = vsel %vm343, 1, 0
    %v345 = vcvt.s32.f32 %v344
    %vm346 = vcmp.eq.s32.totalorder %v123, 0
    %v347 = vsel %vm346, %v342, 0
    %v348 = vsel %vm346, %v324, 0.0
    %v349 = vadd.f32 %v324, 0.0
    %v350 = vadd.f32 %v325, 0.0
    %v351 = vsel %vm124, %v345, 0.0
    %353 = vrot.lane.b32.xlu0 %v20, 64
    %v354 = vpop.permute.xlu0 %353
    %355 = vrot.lane.b32.xlu0 %v21, 64
    %v356 = vpop.permute.xlu0 %355
    %357 = vrot.lane.b32.xlu0 %v22, 64
    %v358 = vpop.permute.xlu0 %357
    %362 = vrot.lane.b32.xlu0 %v30, 64
    %v363 = vpop.permute.xlu0 %362
    %vm365 = vcmask 195584
    %v367 = vsel %vm365, %v351, 0
    %369 = vmatprep.subr.mxu0 0.0
    %370 = vmatpush1.msra.mxu0 %v354
    %371 = vmatprep.subr.mxu0 0.0
    %372 = vmatpush1.msra.mxu0 %v356
    %373 = vmatprep.subr.mxu0 0.0
    %374 = vmatpush1.msra.mxu0 %v358
    %375 = vmatprep.subr.mxu0 0.0
    %376 = vmatpush1.msra.mxu0 0.0
    %377 = vmatprep.subr.mxu0 0.0
    %378 = vmatpush1.msra.mxu0 0.0
    %379 = vmatprep.subr.mxu0 0.0
    %380 = vmatpush1.msra.mxu0 0.0
    %381 = vmatprep.subr.mxu0 0.0
    %382 = vmatpush1.msra.mxu0 0.0
    %383 = vmatprep.subr.mxu0 0.0
    %384 = vmatpush1.msra.mxu0 0.0
    %385 = vmatprep.subr.mxu0 0.0
    %386 = vmatpush1.msra.mxu0 0.0
    %387 = vmatprep.subr.mxu0 0.0
    %388 = vmatpush1.msra.mxu0 0.0
    %389 = vmatprep.subr.mxu0 0.0
    %390 = vmatpush1.msra.mxu0 0.0
    %391 = vmatprep.subr.mxu0 0.0
    %392 = vmatpush1.msra.mxu0 0.0
    %393 = vmatprep.subr.mxu0 0.0
    %394 = vmatpush1.msra.mxu0 0.0
    %395 = vmatprep.subr.mxu0 0.0
    %396 = vmatpush1.msra.mxu0 0.0
    %397 = vmatprep.subr.mxu0 0.0
    %398 = vmatpush1.msra.mxu0 0.0
    %399 = vmatprep.subr.mxu0 0.0
    %400 = vmatpush1.msra.mxu0 0.0
    %401 = vmatprep.subr.mxu0 0.0
    %402 = vmatpush1.msra.mxu0 0.0
    %403 = vmatprep.subr.mxu0 0.0
    %404 = vmatpush1.msra.mxu0 0.0
    %405 = vmatprep.subr.mxu0 0.0
    %406 = vmatpush1.msra.mxu0 0.0
    %407 = vmatprep.subr.mxu0 0.0
    %408 = vmatpush1.msra.mxu0 0.0
    %409 = vmatprep.subr.mxu0 0.0
    %410 = vmatpush1.msra.mxu0 0.0
    %411 = vmatprep.subr.mxu0 0.0
    %412 = vmatpush1.msra.mxu0 0.0
    %413 = vmatprep.subr.mxu0 0.0
    %414 = vmatpush1.msra.mxu0 0.0
    %415 = vmatprep.subr.mxu0 0.0
    %416 = vmatpush1.msra.mxu0 0.0
    %417 = vmatprep.subr.mxu0 0.0
    %418 = vmatpush1.msra.mxu0 0.0
    %419 = vmatprep.subr.mxu0 0.0
    %420 = vmatpush1.msra.mxu0 0.0
    %421 = vmatprep.subr.mxu0 0.0
    %422 = vmatpush1.msra.mxu0 0.0
    %423 = vmatprep.subr.mxu0 0.0
    %424 = vmatpush1.msra.mxu0 0.0
    %425 = vmatprep.subr.mxu0 0.0
    %426 = vmatpush1.msra.mxu0 0.0
    %427 = vmatprep.subr.mxu0 0.0
    %428 = vmatpush1.msra.mxu0 0.0
    %429 = vmatprep.subr.mxu0 0.0
    %430 = vmatpush1.msra.mxu0 0.0
    %431 = vmatprep.subr.mxu0 0.0
    %432 = vmatpush1.msra.mxu0 0.0
    %433 = vmatprep.mubr.f32.mxu0 0.0
    %434 = vmatmul.mubr.f32.gmra.mrb[0].mxu0 %v367
    %v435 = vpop.f32.mrb[0].mxu0
    %v436 = vadd.f32 %v363, %v435
    %v437 = vpop.f32.mrb[0].mxu0
    %438 = vdwg.mxu0
    %v439 = vtanh.pop %v436
    %v440 = vadd.f32 %v439, 0.0
    %vm441 = vcmp.ne.s32.totalorder %v342, 0
    %v442 = vsel %vm441, 1, 0
    %v443 = vcvt.s32.f32 %v442
    %444 = vrot.lane.b32.xlu0 %v221, 112
    %v445 = vpop.permute.xlu0 %444
    %v447 = vsel %vm124, %v345, %v445
    %vm448 = vcmask 261120
    %v450 = vsel %vm448, %v447, 0
    %452 = vmatprep.subr.mxu0 0.0
    %453 = vmatpush1.msra.mxu0 %v20
    %454 = vmatprep.subr.mxu0 0.0
    %455 = vmatpush1.msra.mxu0 %v21
    %456 = vmatprep.subr.mxu0 0.0
    %457 = vmatpush1.msra.mxu0 %v22
    %458 = vmatprep.subr.mxu0 0.0
    %459 = vmatpush1.msra.mxu0 %v23
    %460 = vmatprep.subr.mxu0 0.0
    %461 = vmatpush1.msra.mxu0 0.0
    %462 = vmatprep.subr.mxu0 0.0
    %463 = vmatpush1.msra.mxu0 0.0
    %464 = vmatprep.subr.mxu0 0.0
    %465 = vmatpush1.msra.mxu0 0.0
    %466 = vmatprep.subr.mxu0 0.0
    %467 = vmatpush1.msra.mxu0 0.0
    %468 = vmatprep.subr.mxu0 0.0
    %469 = vmatpush1.msra.mxu0 0.0
    %470 = vmatprep.subr.mxu0 0.0
    %471 = vmatpush1.msra.mxu0 0.0
    %472 = vmatprep.subr.mxu0 0.0
    %473 = vmatpush1.msra.mxu0 0.0
    %474 = vmatprep.subr.mxu0 0.0
    %475 = vmatpush1.msra.mxu0 0.0
    %476 = vmatprep.subr.mxu0 0.0
    %477 = vmatpush1.msra.mxu0 0.0
    %478 = vmatprep.subr.mxu0 0.0
    %479 = vmatpush1.msra.mxu0 0.0
    %480 = vmatprep.subr.mxu0 0.0
    %481 = vmatpush1.msra.mxu0 0.0
    %482 = vmatprep.subr.mxu0 0.0
    %483 = vmatpush1.msra.mxu0 0.0
    %484 = vmatprep.subr.mxu0 0.0
    %485 = vmatpush1.msra.mxu0 0.0
    %486 = vmatprep.subr.mxu0 0.0
    %487 = vmatpush1.msra.mxu0 0.0
    %488 = vmatprep.subr.mxu0 0.0
    %489 = vmatpush1.msra.mxu0 0.0
    %490 = vmatprep.subr.mxu0 0.0
    %491 = vmatpush1.msra.mxu0 0.0
    %492 = vmatprep.subr.mxu0 0.0
    %493 = vmatpush1.msra.mxu0 0.0
    %494 = vmatprep.subr.mxu0 0.0
    %495 = vmatpush1.msra.mxu0 0.0
    %496 = vmatprep.subr.mxu0 0.0
    %497 = vmatpush1.msra.mxu0 0.0
    %498 = vmatprep.subr.mxu0 0.0
    %499 = vmatpush1.msra.mxu0 0.0
    %500 = vmatprep.subr.mxu0 0.0
    %501 = vmatpush1.msra.mxu0 0.0
    %502 = vmatprep.subr.mxu0 0.0
    %503 = vmatpush1.msra.mxu0 0.0
    %504 = vmatprep.subr.mxu0 0.0
    %505 = vmatpush1.msra.mxu0 0.0
    %506 = vmatprep.subr.mxu0 0.0
    %507 = vmatpush1.msra.mxu0 0.0
    %508 = vmatprep.subr.mxu0 0.0
    %509 = vmatpush1.msra.mxu0 0.0
    %510 = vmatprep.subr.mxu0 0.0
    %511 = vmatpush1.msra.mxu0 0.0
    %512 = vmatprep.subr.mxu0 0.0
    %513 = vmatpush1.msra.mxu0 0.0
    %514 = vmatprep.subr.mxu0 0.0
    %515 = vmatpush1.msra.mxu0 0.0
    %516 = vmatprep.mubr.f32.mxu0 0.0
    %517 = vmatmul.mubr.f32.gmra.mrb[0].mxu0 %v450
    %v518 = vpop.f32.mrb[0].mxu0
    %v519 = vadd.f32 %v30, %v518
    %v520 = vpop.f32.mrb[0].mxu0
    %521 = vdwg.mxu0
    %v522 = vxor.u32 %v519, 2147483648
    %v523 = vmul.f32 %v522, 1.442695
    %v524 = vpow.pop %v523
    %v525 = vadd.f32 %v524, 1.0
    %v526 = vrcp.pop %v525
    %v527 = vmul.f32 1.0, %v526
    %v528 = vtanh.pop %v519
    %v529 = vmul.f32 %v527, %v215
    %531 = vrot.lane.b32.xlu0 %v528, 80
    %v532 = vpop.permute.xlu0 %531
    %v534 = vmul.f32 %v527, %v532
    %536 = vrot.lane.b32.xlu0 %v534, 16
    %v537 = vpop.permute.xlu0 %536
    %v539 = vadd.f32 %v529, %v537
    %v540 = vtanh.pop %v539
    %542 = vrot.lane.b32.xlu0 %v540, 16
    %v543 = vpop.permute.xlu0 %542
    %v545 = vmul.f32 %v527, %v543
    %547 = vrot.lane.b32.xlu0 %v545, 96
    %v548 = vpop.permute.xlu0 %547
    %v549 = vsel %vm124, %v548, 0
    %551 = vmatprep.subr.mxu0 0.0
    %552 = vmatpush1.msra.mxu0 %v227
    %553 = vmatprep.subr.mxu0 0.0
    %554 = vmatpush1.msra.mxu0 %v229
    %555 = vmatprep.subr.mxu0 0.0
    %556 = vmatpush1.msra.mxu0 0.0
    %557 = vmatprep.subr.mxu0 0.0
    %558 = vmatpush1.msra.mxu0 0.0
    %559 = vmatprep.subr.mxu0 0.0
    %560 = vmatpush1.msra.mxu0 0.0
    %561 = vmatprep.subr.mxu0 0.0
    %562 = vmatpush1.msra.mxu0 0.0
    %563 = vmatprep.subr.mxu0 0.0
    %564 = vmatpush1.msra.mxu0 0.0
    %565 = vmatprep.subr.mxu0 0.0
    %566 = vmatpush1.msra.mxu0 0.0
    %567 = vmatprep.subr.mxu0 0.0
    %568 = vmatpush1.msra.mxu0 0.0
    %569 = vmatprep.subr.mxu0 0.0
    %570 = vmatpush1.msra.mxu0 0.0
    %571 = vmatprep.subr.mxu0 0.0
    %572 = vmatpush1.msra.mxu0 0.0
    %573 = vmatprep.subr.mxu0 0.0
    %574 = vmatpush1.msra.mxu0 0.0
    %575 = vmatprep.subr.mxu0 0.0
    %576 = vmatpush1.msra.mxu0 0.0
    %577 = vmatprep.subr.mxu0 0.0
    %578 = vmatpush1.msra.mxu0 0.0
    %579 = vmatprep.subr.mxu0 0.0
    %580 = vmatpush1.msra.mxu0 0.0
    %581 = vmatprep.subr.mxu0 0.0
    %582 = vmatpush1.msra.mxu0 0.0
    %583 = vmatprep.subr.mxu0 0.0
    %584 = vmatpush1.msra.mxu0 0.0
    %585 = vmatprep.subr.mxu0 0.0
    %586 = vmatpush1.msra.mxu0 0.0
    %587 = vmatprep.subr.mxu0 0.0
    %588 = vmatpush1.msra.mxu0 0.0
    %589 = vmatprep.subr.mxu0 0.0
    %590 = vmatpush1.msra.mxu0 0.0
    %591 = vmatprep.subr.mxu0 0.0
    %592 = vmatpush1.msra.mxu0 0.0
    %593 = vmatprep.subr.mxu0 0.0
    %594 = vmatpush1.msra.mxu0 0.0
    %595 = vmatprep.subr.mxu0 0.0
    %596 = vmatpush1.msra.mxu0 0.0
    %597 = vmatprep.subr.mxu0 0.0
    %598 = vmatpush1.msra.mxu0 0.0
    %599 = vmatprep.subr.mxu0 0.0
    %600 = vmatpush1.msra.mxu0 0.0
    %601 = vmatprep.subr.mxu0 0.0
    %602 = vmatpush1.msra.mxu0 0.0
    %603 = vmatprep.subr.mxu0 0.0
    %604 = vmatpush1.msra.mxu0 0.0
    %605 = vmatprep.subr.mxu0 0.0
    %606 = vmatpush1.msra.mxu0 0.0
    %607 = vmatprep.subr.mxu0 0.0
    %608 = vmatpush1.msra.mxu0 0.0
    %609 = vmatprep.subr.mxu0 0.0
    %610 = vmatpush1.msra.mxu0 0.0
    %611 = vmatprep.subr.mxu0 0.0
    %612 = vmatpush1.msra.mxu0 0.0
    %613 = vmatprep.subr.mxu0 0.0
    %614 = vmatpush1.msra.mxu0 0.0
    %615 = vmatprep.mubr.f32.mxu0 0.0
    %616 = vmatmul.mubr.f32.gmra.mrb[0].mxu0 %v549
    %v617 = vpop.f32.mrb[0].mxu0
    %v618 = vadd.f32 %v233, %v617
    %v619 = vpop.f32.mrb[0].mxu0
    %620 = vdwg.mxu0
    %v621 = vsel %vm124, %v618, -inf
    %622 = vmax.xlane.f32.xlu0 %v621
    %v623 = vpop.xlane.xlu0 %622
    %v624 = vsub.f32 %v618, %v623
    %v625 = vmul.f32 %v624, 1.442695
    %v626 = vpow.pop %v625
    %v627 = vsel %vm124, %v626, 0.0
    %628 = vadd.xlane.f32.xlu0 %v627
    %v629 = vpop.xlane.xlu0 %628
    %v630 = vrcp.pop %v629
    %v631 = vlog2.pop %v629
    %v632 = vmul.f32 %v631, 0.6931472
    %v633 = vmul.f32 %v626, %v624
    %v634 = vsel %vm124, %v633, 0.0
    %635 = vadd.xlane.f32.xlu0 %v634
    %v636 = vpop.xlane.xlu0 %635
    %v637 = vmul.f32 %v630, %v636
    %v638 = vsub.f32 %v632, %v637
    %v639 = vsub.f32 0.0, %v632
    %vm640 = vcmp.ge.f32.partialorder %v618, %v623
    %v641 = vsel %vm640, %v123, 16
    %v642 = vsel %vm124, %v641, 2147483647
    %v643 = vand.u32 %v642, 65535
    %v644 = vshra.s32 %v642, 16
    %v645 = vcvt.s32.f32 %v643
    %v646 = vcvt.s32.f32 %v644
    %647 = vmin.xlane.f32.xlu0 %v646
    %v648 = vpop.xlane.xlu0 %647
    %vm649 = vcmp.eq.f32.partialorder %v646, %v648
    %v650 = vsel %vm649, %v645, inf
    %651 = vmin.xlane.f32.xlu0 %v650
    %v652 = vpop.xlane.xlu0 %651
    %v653 = vcvt.f32.s32 %v652
    %v654 = vcvt.f32.s32 %v648
    %v655 = vshll.u32 %v654, 16
    %v656 = vadd.s32 %v655, %v653
    %vm657 = vcmp.eq.s32.totalorder %v123, %v656
    %v658 = vsel %vm657, 1, 0
    %v659 = vcvt.s32.f32 %v658
    %vm660 = vcmp.eq.s32.totalorder %v123, 1
    %v661 = vsel %vm660, %v656, %v347
    %v662 = vsel %vm660, %v638, %v348
    %v663 = vmul.f32 %v638, %v443
    %v664 = vadd.f32 %v349, %v663
    %v665 = vmul.f32 %v639, %v443
    %v666 = vadd.f32 %v350, %v665
    %v667 = vadd.f32 %v443, 1.0
    %669 = vrot.lane.b32.xlu0 %v440, 16
    %v670 = vpop.permute.xlu0 %669
    %v672 = vsel %vm124, %v659, %v670
    %v674 = vsel %vm365, %v672, 0
    %676 = vmatprep.subr.mxu0 0.0
    %677 = vmatpush1.msra.mxu0 %v354
    %678 = vmatprep.subr.mxu0 0.0
    %679 = vmatpush1.msra.mxu0 %v356
    %680 = vmatprep.subr.mxu0 0.0
    %681 = vmatpush1.msra.mxu0 %v358
    %682 = vmatprep.subr.mxu0 0.0
    %683 = vmatpush1.msra.mxu0 0.0
    %684 = vmatprep.subr.mxu0 0.0
    %685 = vmatpush1.msra.mxu0 0.0
    %686 = vmatprep.subr.mxu0 0.0
    %687 = vmatpush1.msra.mxu0 0.0
    %688 = vmatprep.subr.mxu0 0.0
    %689 = vmatpush1.msra.mxu0 0.0
    %690 = vmatprep.subr.mxu0 0.0
    %691 = vmatpush1.msra.mxu0 0.0
    %692 = vmatprep.subr.mxu0 0.0
    %693 = vmatpush1.msra.mxu0 0.0
    %694 = vmatprep.subr.mxu0 0.0
    %695 = vmatpush1.msra.mxu0 0.0
    %696 = vmatprep.subr.mxu0 0.0
    %697 = vmatpush1.msra.mxu0 0.0
    %698 = vmatprep.subr.mxu0 0.0
    %699 = vmatpush1.msra.mxu0 0.0
    %700 = vmatprep.subr.mxu0 0.0
    %701 = vmatpush1.msra.mxu0 0.0
    %702 = vmatprep.subr.mxu0 0.0
    %703 = vmatpush1.msra.mxu0 0.0
    %704 = vmatprep.subr.mxu0 0.0
    %705 = vmatpush1.msra.mxu0 0.0
    %706 = vmatprep.subr.mxu0 0.0
    %707 = vmatpush1.msra.mxu0 0.0
    %708 = vmatprep.subr.mxu0 0.0
    %709 = vmatpush1.msra.mxu0 0.0
    %710 = vmatprep.subr.mxu0 0.0
    %711 = vmatpush1.msra.mxu0 0.0
    %712 = vmatprep.subr.mxu0 0.0
    %713 = vmatpush1.msra.mxu0 0.0
    %714 = vmatprep.subr.mxu0 0.0
    %715 = vmatpush1.msra.mxu0 0.0
    %716 = vmatprep.subr.mxu0 0.0
    %717 = vmatpush1.msra.mxu0 0.0
    %718 = vmatprep.subr.mxu0 0.0
    %719 = vmatpush1.msra.mxu0 0.0
    %720 = vmatprep.subr.mxu0 0.0
    %721 = vmatpush1.msra.mxu0 0.0
    %722 = vmatprep.subr.mxu0 0.0
    %723 = vmatpush1.msra.mxu0 0.0
    %724 = vmatprep.subr.mxu0 0.0
    %725 = vmatpush1.msra.mxu0 0.0
    %726 = vmatprep.subr.mxu0 0.0
    %727 = vmatpush1.msra.mxu0 0.0
    %728 = vmatprep.subr.mxu0 0.0
    %729 = vmatpush1.msra.mxu0 0.0
    %730 = vmatprep.subr.mxu0 0.0
    %731 = vmatpush1.msra.mxu0 0.0
    %732 = vmatprep.subr.mxu0 0.0
    %733 = vmatpush1.msra.mxu0 0.0
    %734 = vmatprep.subr.mxu0 0.0
    %735 = vmatpush1.msra.mxu0 0.0
    %736 = vmatprep.subr.mxu0 0.0
    %737 = vmatpush1.msra.mxu0 0.0
    %738 = vmatprep.subr.mxu0 0.0
    %739 = vmatpush1.msra.mxu0 0.0
    %740 = vmatprep.mubr.f32.mxu0 0.0
    %741 = vmatmul.mubr.f32.gmra.mrb[0].mxu0 %v674
    %v742 = vpop.f32.mrb[0].mxu0
    %v743 = vadd.f32 %v363, %v742
    %v744 = vpop.f32.mrb[0].mxu0
    %745 = vdwg.mxu0
    %v746 = vtanh.pop %v743
    %v747 = vmul.f32 %v443, %v746
    %v748 = vsub.f32 1.0, %v443
    %v749 = vmul.f32 %v748, %v440
    %v750 = vadd.f32 %v747, %v749
    %vm751 = vcmp.ne.s32.totalorder %v656, 0
    %v752 = vsel %vm751, 1, 0
    %v753 = vcvt.s32.f32 %v752
    %v754 = vmul.f32 %v443, %v753
    %755 = vrot.lane.b32.xlu0 %v545, 112
    %v756 = vpop.permute.xlu0 %755
    %v758 = vsel %vm124, %v659, %v756
    %v760 = vsel %vm448, %v758, 0
    %762 = vmatprep.subr.mxu0 0.0
    %763 = vmatpush1.msra.mxu0 %v20
    %764 = vmatprep.subr.mxu0 0.0
    %765 = vmatpush1.msra.mxu0 %v21
    %766 = vmatprep.subr.mxu0 0.0
    %767 = vmatpush1.msra.mxu0 %v22
    %768 = vmatprep.subr.mxu0 0.0
    %769 = vmatpush1.msra.mxu0 %v23
    %770 = vmatprep.subr.mxu0 0.0
    %771 = vmatpush1.msra.mxu0 0.0
    %772 = vmatprep.subr.mxu0 0.0
    %773 = vmatpush1.msra.mxu0 0.0
    %774 = vmatprep.subr.mxu0 0.0
    %775 = vmatpush1.msra.mxu0 0.0
    %776 = vmatprep.subr.mxu0 0.0
    %777 = vmatpush1.msra.mxu0 0.0
    %778 = vmatprep.subr.mxu0 0.0
    %779 = vmatpush1.msra.mxu0 0.0
    %780 = vmatprep.subr.mxu0 0.0
    %781 = vmatpush1.msra.mxu0 0.0
    %782 = vmatprep.subr.mxu0 0.0
    %783 = vmatpush1.msra.mxu0 0.0
    %784 = vmatprep.subr.mxu0 0.0
    %785 = vmatpush1.msra.mxu0 0.0
    %786 = vmatprep.subr.mxu0 0.0
    %787 = vmatpush1.msra.mxu0 0.0
    %788 = vmatprep.subr.mxu0 0.0
    %789 = vmatpush1.msra.mxu0 0.0
    %790 = vmatprep.subr.mxu0 0.0
    %791 = vmatpush1.msra.mxu0 0.0
    %792 = vmatprep.subr.mxu0 0.0
    %793 = vmatpush1.msra.mxu0 0.0
    %794 = vmatprep.subr.mxu0 0.0
    %795 = vmatpush1.msra.mxu0 0.0
    %796 = vmatprep.subr.mxu0 0.0
    %797 = vmatpush1.msra.mxu0 0.0
    %798 = vmatprep.subr.mxu0 0.0
    %799 = vmatpush1.msra.mxu0 0.0
    %800 = vmatprep.subr.mxu0 0.0
    %801 = vmatpush1.msra.mxu0 0.0
    %802 = vmatprep.subr.mxu0 0.0
    %803 = vmatpush1.msra.mxu0 0.0
    %804 = vmatprep.subr.mxu0 0.0
    %805 = vmatpush1.msra.mxu0 0.0
    %806 = vmatprep.subr.mxu0 0.0
    %807 = vmatpush1.msra.mxu0 0.0
    %808 = vmatprep.subr.mxu0 0.0
    %809 = vmatpush1.msra.mxu0 0.0
    %810 = vmatprep.subr.mxu0 0.0
    %811 = vmatpush1.msra.mxu0 0.0
    %812 = vmatprep.subr.mxu0 0.0
    %813 = vmatpush1.msra.mxu0 0.0
    %814 = vmatprep.subr.mxu0 0.0
    %815 = vmatpush1.msra.mxu0 0.0
    %816 = vmatprep.subr.mxu0 0.0
    %817 = vmatpush1.msra.mxu0 0.0
    %818 = vmatprep.subr.mxu0 0.0
    %819 = vmatpush1.msra.mxu0 0.0
    %820 = vmatprep.subr.mxu0 0.0
    %821 = vmatpush1.msra.mxu0 0.0
    %822 = vmatprep.subr.mxu0 0.0
    %823 = vmatpush1.msra.mxu0 0.0
    %824 = vmatprep.subr.mxu0 0.0
    %825 = vmatpush1.msra.mxu0 0.0
    %826 = vmatprep.mubr.f32.mxu0 0.0
    %827 = vmatmul.mubr.f32.gmra.mrb[0].mxu0 %v760
    %v828 = vpop.f32.mrb[0].mxu0
    %v829 = vadd.f32 %v30, %v828
    %v830 = vpop.f32.mrb[0].mxu0
    %831 = vdwg.mxu0
    %v832 = vxor.u32 %v829, 2147483648
    %v833 = vmul.f32 %v832, 1.442695
    %v834 = vpow.pop %v833
    %v835 = vadd.f32 %v834, 1.0
    %v836 = vrcp.pop %v835
    %v837 = vmul.f32 1.0, %v836
    %v838 = vtanh.pop %v829
    %v839 = vmul.f32 %v837, %v539
    %841 = vrot.lane.b32.xlu0 %v838, 80
    %v842 = vpop.permute.xlu0 %841
    %v844 = vmul.f32 %v837, %v842
    %846 = vrot.lane.b32.xlu0 %v844, 16
    %v847 = vpop.permute.xlu0 %846
    %v849 = vadd.f32 %v839, %v847
    %v850 = vtanh.pop %v849
    %852 = vrot.lane.b32.xlu0 %v850, 16
    %v853 = vpop.permute.xlu0 %852
    %v855 = vmul.f32 %v837, %v853
    %857 = vrot.lane.b32.xlu0 %v855, 96
    %v858 = vpop.permute.xlu0 %857
    %v859 = vsel %vm124, %v858, 0
    %861 = vmatprep.subr.mxu0 0.0
    %862 = vmatpush1.msra.mxu0 %v227
    %863 = vmatprep.subr.mxu0 0.0
    %864 = vmatpush1.msra.mxu0 %v229
    %865 = vmatprep.subr.mxu0 0.0
    %866 = vmatpush1.msra.mxu0 0.0
    %867 = vmatprep.subr.mxu0 0.0
    %868 = vmatpush1.msra.mxu0 0.0
    %869 = vmatprep.subr.mxu0 0.0
    %870 = vmatpush1.msra.mxu0 0.0
    %871 = vmatprep.subr.mxu0 0.0
    %872 = vmatpush1.msra.mxu0 0.0
    %873 = vmatprep.subr.mxu0 0.0
    %874 = vmatpush1.msra.mxu0 0.0
    %875 = vmatprep.subr.mxu0 0.0
    %876 = vmatpush1.msra.mxu0 0.0
    %877 = vmatprep.subr.mxu0 0.0
    %878 = vmatpush1.msra.mxu0 0.0
    %879 = vmatprep.subr.mxu0 0.0
    %880 = vmatpush1.msra.mxu0 0.0
    %881 = vmatprep.subr.mxu0 0.0
    %882 = vmatpush1.msra.mxu0 0.0
    %883 = vmatprep.subr.mxu0 0.0
    %884 = vmatpush1.msra.mxu0 0.0
    %885 = vmatprep.subr.mxu0 0.0
    %886 = vmatpush1.msra.mxu0 0.0
    %887 = vmatprep.subr.mxu0 0.0
    %888 = vmatpush1.msra.mxu0 0.0
    %889 = vmatprep.subr.mxu0 0.0
    %890 = vmatpush1.msra.mxu0 0.0
    %891 = vmatprep.subr.mxu0 0.0
    %892 = vmatpush1.msra.mxu0 0.0
    %893 = vmatprep.subr.mxu0 0.0
    %894 = vmatpush1.msra.mxu0 0.0
    %895 = vmatprep.subr.mxu0 0.0
    %896 = vmatpush1.msra.mxu0 0.0
    %897 = vmatprep.subr.mxu0 0.0
    %898 = vmatpush1.msra.mxu0 0.0
    %899 = vmatprep.subr.mxu0 0.0
    %900 = vmatpush1.msra.mxu0 0.0
    %901 = vmatprep.subr.mxu0 0.0
    %902 = vmatpush1.msra.mxu0 0.0
    %903 = vmatprep.subr.mxu0 0.0
    %904 = vmatpush1.msra.mxu0 0.0
    %905 = vmatprep.subr.mxu0 0.0
    %906 = vmatpush1.msra.mxu0 0.0
    %907 = vmatprep.subr.mxu0 0.0
    %908 = vmatpush1.msra.mxu0 0.0
    %909 = vmatprep.subr.mxu0 0.0
    %910 = vmatpush1.msra.mxu0 0.0
    %911 = vmatprep.subr.mxu0 0.0
    %912 = vmatpush1.msra.mxu0 0.0
    %913 = vmatprep.subr.mxu0 0.0
    %914 = vmatpush1.msra.mxu0 0.0
    %915 = vmatprep.subr.mxu0 0.0
    %916 = vmatpush1.msra.mxu0 0.0
    %917 = vmatprep.subr.mxu0 0.0
    %918 = vmatpush1.msra.mxu0 0.0
    %919 = vmatprep.subr.mxu0 0.0
    %920 = vmatpush1.msra.mxu0 0.0
    %921 = vmatprep.subr.mxu0 0.0
    %922 = vmatpush1.msra.mxu0 0.0
    %923 = vmatprep.subr.mxu0 0.0
    %924 = vmatpush1.msra.mxu0 0.0
    %925 = vmatprep.mubr.f32.mxu0 0.0
    %926 = vmatmul.mubr.f32.gmra.mrb[0].mxu0 %v859
    %v927 = vpop.f32.mrb[0].mxu0
    %v928 = vadd.f32 %v233, %v927
    %v929 = vpop.f32.mrb[0].mxu0
    %930 = vdwg.mxu0
    %v931 = vsel %vm124, %v928, -inf
    %932 = vmax.xlane.f32.xlu0 %v931
    %v933 = vpop.xlane.xlu0 %932
    %v934 = vsub.f32 %v928, %v933
    %v935 = vmul.f32 %v934, 1.442695
    %v936 = vpow.pop %v935
    %v937 = vsel %vm124, %v936, 0.0
    %938 = vadd.xlane.f32.xlu0 %v937
    %v939 = vpop.xlane.xlu0 %938
    %v940 = vrcp.pop %v939
    %v941 = vlog2.pop %v939
    %v942 = vmul.f32 %v941, 0.6931472
    %v943 = vmul.f32 %v936, %v934
    %v944 = vsel %vm124, %v943, 0.0
    %945 = vadd.xlane.f32.xlu0 %v944
    %v946 = vpop.xlane.xlu0 %945
    %v947 = vmul.f32 %v940, %v946
    %v948 = vsub.f32 %v942, %v947
    %v949 = vsub.f32 0.0, %v942
    %vm950 = vcmp.ge.f32.partialorder %v928, %v933
    %v951 = vsel %vm950, %v123, 16
    %v952 = vsel %vm124, %v951, 2147483647
    %v953 = vand.u32 %v952, 65535
    %v954 = vshra.s32 %v952, 16
    %v955 = vcvt.s32.f32 %v953
    %v956 = vcvt.s32.f32 %v954
    %957 = vmin.xlane.f32.xlu0 %v956
    %v958 = vpop.xlane.xlu0 %957
    %vm959 = vcmp.eq.f32.partialorder %v956, %v958
    %v960 = vsel %vm959, %v955, inf
    %961 = vmin.xlane.f32.xlu0 %v960
    %v962 = vpop.xlane.xlu0 %961
    %v963 = vcvt.f32.s32 %v962
    %v964 = vcvt.f32.s32 %v958
    %v965 = vshll.u32 %v964, 16
    %v966 = vadd.s32 %v965, %v963
    %vm967 = vcmp.eq.s32.totalorder %v123, %v966
    %v968 = vsel %vm967, 1, 0
    %v969 = vcvt.s32.f32 %v968
    %vm970 = vcmp.eq.s32.totalorder %v123, 2
    %v971 = vsel %vm970, %v966, %v661
    %v972 = vsel %vm970, %v948, %v662
    %v973 = vmul.f32 %v948, %v754
    %v974 = vadd.f32 %v664, %v973
    %v975 = vmul.f32 %v949, %v754
    %v976 = vadd.f32 %v666, %v975
    %v977 = vadd.f32 %v667, %v754
    %979 = vrot.lane.b32.xlu0 %v750, 16
    %v980 = vpop.permute.xlu0 %979
    %v982 = vsel %vm124, %v969, %v980
    %v984 = vsel %vm365, %v982, 0
    %986 = vmatprep.subr.mxu0 0.0
    %987 = vmatpush1.msra.mxu0 %v354
    %988 = vmatprep.subr.mxu0 0.0
    %989 = vmatpush1.msra.mxu0 %v356
    %990 = vmatprep.subr.mxu0 0.0
    %991 = vmatpush1.msra.mxu0 %v358
    %992 = vmatprep.subr.mxu0 0.0
    %993 = vmatpush1.msra.mxu0 0.0
    %994 = vmatprep.subr.mxu0 0.0
    %995 = vmatpush1.msra.mxu0 0.0
    %996 = vmatprep.subr.mxu0 0.0
    %997 = vmatpush1.msra.mxu0 0.0
    %998 = vmatprep.subr.mxu0 0.0
    %999 = vmatpush1.msra.mxu0 0.0
    %1000 = vmatprep.subr.mxu0 0.0
    %1001 = vmatpush1.msra.mxu0 0.0
    %1002 = vmatprep.subr.mxu0 0.0
    %1003 = vmatpush1.msra.mxu0 0.0
    %1004 = vmatprep.subr.mxu0 0.0
    %1005 = vmatpush1.msra.mxu0 0.0
    %1006 = vmatprep.subr.mxu0 0.0
    %1007 = vmatpush1.msra.mxu0 0.0
    %1008 = vmatprep.subr.mxu0 0.0
    %1009 = vmatpush1.msra.mxu0 0.0
    %1010 = vmatprep.subr.mxu0 0.0
    %1011 = vmatpush1.msra.mxu0 0.0
    %1012 = vmatprep.subr.mxu0 0.0
    %1013 = vmatpush1.msra.mxu0 0.0
    %1014 = vmatprep.subr.mxu0 0.0
    %1015 = vmatpush1.msra.mxu0 0.0
    %1016 = vmatprep.subr.mxu0 0.0
    %1017 = vmatpush1.msra.mxu0 0.0
    %1018 = vmatprep.subr.mxu0 0.0
    %1019 = vmatpush1.msra.mxu0 0.0
    %1020 = vmatprep.subr.mxu0 0.0
    %1021 = vmatpush1.msra.mxu0 0.0
    %1022 = vmatprep.subr.mxu0 0.0
    %1023 = vmatpush1.msra.mxu0 0.0
    %1024 = vmatprep.subr.mxu0 0.0
    %1025 = vmatpush1.msra.mxu0 0.0
    %1026 = vmatprep.subr.mxu0 0.0
    %1027 = vmatpush1.msra.mxu0 0.0
    %1028 = vmatprep.subr.mxu0 0.0
    %1029 = vmatpush1.msra.mxu0 0.0
    %1030 = vmatprep.subr.mxu0 0.0
    %1031 = vmatpush1.msra.mxu0 0.0
    %1032 = vmatprep.subr.mxu0 0.0
    %1033 = vmatpush1.msra.mxu0 0.0
    %1034 = vmatprep.subr.mxu0 0.0
    %1035 = vmatpush1.msra.mxu0 0.0
    %1036 = vmatprep.subr.mxu0 0.0
    %1037 = vmatpush1.msra.mxu0 0.0
    %1038 = vmatprep.subr.mxu0 0.0
    %1039 = vmatpush1.msra.mxu0 0.0
    %1040 = vmatprep.subr.mxu0 0.0
    %1041 = vmatpush1.msra.mxu0 0.0
    %1042 = vmatprep.subr.mxu0 0.0
    %1043 = vmatpush1.msra.mxu0 0.0
    %1044 = vmatprep.subr.mxu0 0.0
    %1045 = vmatpush1.msra.mxu0 0.0
    %1046 = vmatprep.subr.mxu0 0.0
    %1047 = vmatpush1.msra.mxu0 0.0
    %1048 = vmatprep.subr.mxu0 0.0
    %1049 = vmatpush1.msra.mxu0 0.0
    %1050 = vmatprep.mubr.f32.mxu0 0.0
    %1051 = vmatmul.mubr.f32.gmra.mrb[0].mxu0 %v984
    %v1052 = vpop.f32.mrb[0].mxu0
    %v1053 = vadd.f32 %v363, %v1052
    %v1054 = vpop.f32.mrb[0].mxu0
    %1055 = vdwg.mxu0
    %v1056 = vtanh.pop %v1053
    %v1057 = vmul.f32 %v754, %v1056
    %v1058 = vsub.f32 1.0, %v754
    %v1059 = vmul.f32 %v1058, %v750
    %v1060 = vadd.f32 %v1057, %v1059
    %vm1061 = vcmp.ne.s32.totalorder %v966, 0
    %v1062 = vsel %vm1061, 1, 0
    %v1063 = vcvt.s32.f32 %v1062
    %v1064 = vmul.f32 %v754, %v1063
    %1065 = vrot.lane.b32.xlu0 %v855, 112
    %v1066 = vpop.permute.xlu0 %1065
    %v1068 = vsel %vm124, %v969, %v1066
    %v1070 = vsel %vm448, %v1068, 0
    %1072 = vmatprep.subr.mxu0 0.0
    %1073 = vmatpush1.msra.mxu0 %v20
    %1074 = vmatprep.subr.mxu0 0.0
    %1075 = vmatpush1.msra.mxu0 %v21
    %1076 = vmatprep.subr.mxu0 0.0
    %1077 = vmatpush1.msra.mxu0 %v22
    %1078 = vmatprep.subr.mxu0 0.0
    %1079 = vmatpush1.msra.mxu0 %v23
    %1080 = vmatprep.subr.mxu0 0.0
    %1081 = vmatpush1.msra.mxu0 0.0
    %1082 = vmatprep.subr.mxu0 0.0
    %1083 = vmatpush1.msra.mxu0 0.0
    %1084 = vmatprep.subr.mxu0 0.0
    %1085 = vmatpush1.msra.mxu0 0.0
    %1086 = vmatprep.subr.mxu0 0.0
    %1087 = vmatpush1.msra.mxu0 0.0
    %1088 = vmatprep.subr.mxu0 0.0
    %1089 = vmatpush1.msra.mxu0 0.0
    %1090 = vmatprep.subr.mxu0 0.0
    %1091 = vmatpush1.msra.mxu0 0.0
    %1092 = vmatprep.subr.mxu0 0.0
    %1093 = vmatpush1.msra.mxu0 0.0
    %1094 = vmatprep.subr.mxu0 0.0
    %1095 = vmatpush1.msra.mxu0 0.0
    %1096 = vmatprep.subr.mxu0 0.0
    %1097 = vmatpush1.msra.mxu0 0.0
    %1098 = vmatprep.subr.mxu0 0.0
    %1099 = vmatpush1.msra.mxu0 0.0
    %1100 = vmatprep.subr.mxu0 0.0
    %1101 = vmatpush1.msra.mxu0 0.0
    %1102 = vmatprep.subr.mxu0 0.0
    %1103 = vmatpush1.msra.mxu0 0.0
    %1104 = vmatprep.subr.mxu0 0.0
    %1105 = vmatpush1.msra.mxu0 0.0
    %1106 = vmatprep.subr.mxu0 0.0
    %1107 = vmatpush1.msra.mxu0 0.0
    %1108 = vmatprep.subr.mxu0 0.0
    %1109 = vmatpush1.msra.mxu0 0.0
    %1110 = vmatprep.subr.mxu0 0.0
    %1111 = vmatpush1.msra.mxu0 0.0
    %1112 = vmatprep.subr.mxu0 0.0
    %1113 = vmatpush1.msra.mxu0 0.0
    %1114 = vmatprep.subr.mxu0 0.0
    %1115 = vmatpush1.msra.mxu0 0.0
    %1116 = vmatprep.subr.mxu0 0.0
    %1117 = vmatpush1.msra.mxu0 0.0
    %1118 = vmatprep.subr.mxu0 0.0
    %1119 = vmatpush1.msra.mxu0 0.0
    %1120 = vmatprep.subr.mxu0 0.0
    %1121 = vmatpush1.msra.mxu0 0.0
    %1122 = vmatprep.subr.mxu0 0.0
    %1123 = vmatpush1.msra.mxu0 0.0
    %1124 = vmatprep.subr.mxu0 0.0
    %1125 = vmatpush1.msra.mxu0 0.0
    %1126 = vmatprep.subr.mxu0 0.0
    %1127 = vmatpush1.msra.mxu0 0.0
    %1128 = vmatprep.subr.mxu0 0.0
    %1129 = vmatpush1.msra.mxu0 0.0
    %1130 = vmatprep.subr.mxu0 0.0
    %1131 = vmatpush1.msra.mxu0 0.0
    %1132 = vmatprep.subr.mxu0 0.0
    %1133 = vmatpush1.msra.mxu0 0.0
    %1134 = vmatprep.subr.mxu0 0.0
    %1135 = vmatpush1.msra.mxu0 0.0
    %1136 = vmatprep.mubr.f32.mxu0 0.0
    %1137 = vmatmul.mubr.f32.gmra.mrb[0].mxu0 %v1070
    %v1138 = vpop.f32.mrb[0].mxu0
    %v1139 = vadd.f32 %v30, %v1138
    %v1140 = vpop.f32.mrb[0].mxu0
    %1141 = vdwg.mxu0
    %v1142 = vxor.u32 %v1139, 2147483648
    %v1143 = vmul.f32 %v1142, 1.442695
    %v1144 = vpow.pop %v1143
    %v1145 = vadd.f32 %v1144, 1.0
    %v1146 = vrcp.pop %v1145
    %v1147 = vmul.f32 1.0, %v1146
    %v1148 = vtanh.pop %v1139
    %v1149 = vmul.f32 %v1147, %v849
    %1151 = vrot.lane.b32.xlu0 %v1148, 80
    %v1152 = vpop.permute.xlu0 %1151
    %v1154 = vmul.f32 %v1147, %v1152
    %1156 = vrot.lane.b32.xlu0 %v1154, 16
    %v1157 = vpop.permute.xlu0 %1156
    %v1159 = vadd.f32 %v1149, %v1157
    %v1160 = vtanh.pop %v1159
    %1162 = vrot.lane.b32.xlu0 %v1160, 16
    %v1163 = vpop.permute.xlu0 %1162
    %v1165 = vmul.f32 %v1147, %v1163
    %1167 = vrot.lane.b32.xlu0 %v1165, 96
    %v1168 = vpop.permute.xlu0 %1167
    %v1169 = vsel %vm124, %v1168, 0
    %1171 = vmatprep.subr.mxu0 0.0
    %1172 = vmatpush1.msra.mxu0 %v227
    %1173 = vmatprep.subr.mxu0 0.0
    %1174 = vmatpush1.msra.mxu0 %v229
    %1175 = vmatprep.subr.mxu0 0.0
    %1176 = vmatpush1.msra.mxu0 0.0
    %1177 = vmatprep.subr.mxu0 0.0
    %1178 = vmatpush1.msra.mxu0 0.0
    %1179 = vmatprep.subr.mxu0 0.0
    %1180 = vmatpush1.msra.mxu0 0.0
    %1181 = vmatprep.subr.mxu0 0.0
    %1182 = vmatpush1.msra.mxu0 0.0
    %1183 = vmatprep.subr.mxu0 0.0
    %1184 = vmatpush1.msra.mxu0 0.0
    %1185 = vmatprep.subr.mxu0 0.0
    %1186 = vmatpush1.msra.mxu0 0.0
    %1187 = vmatprep.subr.mxu0 0.0
    %1188 = vmatpush1.msra.mxu0 0.0
    %1189 = vmatprep.subr.mxu0 0.0
    %1190 = vmatpush1.msra.mxu0 0.0
    %1191 = vmatprep.subr.mxu0 0.0
    %1192 = vmatpush1.msra.mxu0 0.0
    %1193 = vmatprep.subr.mxu0 0.0
    %1194 = vmatpush1.msra.mxu0 0.0
    %1195 = vmatprep.subr.mxu0 0.0
    %1196 = vmatpush1.msra.mxu0 0.0
    %1197 = vmatprep.subr.mxu0 0.0
    %1198 = vmatpush1.msra.mxu0 0.0
    %1199 = vmatprep.subr.mxu0 0.0
    %1200 = vmatpush1.msra.mxu0 0.0
    %1201 = vmatprep.subr.mxu0 0.0
    %1202 = vmatpush1.msra.mxu0 0.0
    %1203 = vmatprep.subr.mxu0 0.0
    %1204 = vmatpush1.msra.mxu0 0.0
    %1205 = vmatprep.subr.mxu0 0.0
    %1206 = vmatpush1.msra.mxu0 0.0
    %1207 = vmatprep.subr.mxu0 0.0
    %1208 = vmatpush1.msra.mxu0 0.0
    %1209 = vmatprep.subr.mxu0 0.0
    %1210 = vmatpush1.msra.mxu0 0.0
    %1211 = vmatprep.subr.mxu0 0.0
    %1212 = vmatpush1.msra.mxu0 0.0
    %1213 = vmatprep.subr.mxu0 0.0
    %1214 = vmatpush1.msra.mxu0 0.0
    %1215 = vmatprep.subr.mxu0 0.0
    %1216 = vmatpush1.msra.mxu0 0.0
    %1217 = vmatprep.subr.mxu0 0.0
    %1218 = vmatpush1.msra.mxu0 0.0
    %1219 = vmatprep.subr.mxu0 0.0
    %1220 = vmatpush1.msra.mxu0 0.0
    %1221 = vmatprep.subr.mxu0 0.0
    %1222 = vmatpush1.msra.mxu0 0.0
    %1223 = vmatprep.subr.mxu0 0.0
    %1224 = vmatpush1.msra.mxu0 0.0
    %1225 = vmatprep.subr.mxu0 0.0
    %1226 = vmatpush1.msra.mxu0 0.0
    %1227 = vmatprep.subr.mxu0 0.0
    %1228 = vmatpush1.msra.mxu0 0.0
    %1229 = vmatprep.subr.mxu0 0.0
    %1230 = vmatpush1.msra.mxu0 0.0
    %1231 = vmatprep.subr.mxu0 0.0
    %1232 = vmatpush1.msra.mxu0 0.0
    %1233 = vmatprep.subr.mxu0 0.0
    %1234 = vmatpush1.msra.mxu0 0.0
    %1235 = vmatprep.mubr.f32.mxu0 0.0
    %1236 = vmatmul.mubr.f32.gmra.mrb[0].mxu0 %v1169
    %v1237 = vpop.f32.mrb[0].mxu0
    %v1238 = vadd.f32 %v233, %v1237
    %v1239 = vpop.f32.mrb[0].mxu0
    %1240 = vdwg.mxu0
    %v1241 = vsel %vm124, %v1238, -inf
    %1242 = vmax.xlane.f32.xlu0 %v1241
    %v1243 = vpop.xlane.xlu0 %1242
    %v1244 = vsub.f32 %v1238, %v1243
    %v1245 = vmul.f32 %v1244, 1.442695
    %v1246 = vpow.pop %v1245
    %v1247 = vsel %vm124, %v1246, 0.0
    %1248 = vadd.xlane.f32.xlu0 %v1247
    %v1249 = vpop.xlane.xlu0 %1248
    %v1250 = vrcp.pop %v1249
    %v1251 = vlog2.pop %v1249
    %v1252 = vmul.f32 %v1251, 0.6931472
    %v1253 = vmul.f32 %v1246, %v1244
    %v1254 = vsel %vm124, %v1253, 0.0
    %1255 = vadd.xlane.f32.xlu0 %v1254
    %v1256 = vpop.xlane.xlu0 %1255
    %v1257 = vmul.f32 %v1250, %v1256
    %v1258 = vsub.f32 %v1252, %v1257
    %v1259 = vsub.f32 0.0, %v1252
    %vm1260 = vcmp.ge.f32.partialorder %v1238, %v1243
    %v1261 = vsel %vm1260, %v123, 16
    %v1262 = vsel %vm124, %v1261, 2147483647
    %v1263 = vand.u32 %v1262, 65535
    %v1264 = vshra.s32 %v1262, 16
    %v1265 = vcvt.s32.f32 %v1263
    %v1266 = vcvt.s32.f32 %v1264
    %1267 = vmin.xlane.f32.xlu0 %v1266
    %v1268 = vpop.xlane.xlu0 %1267
    %vm1269 = vcmp.eq.f32.partialorder %v1266, %v1268
    %v1270 = vsel %vm1269, %v1265, inf
    %1271 = vmin.xlane.f32.xlu0 %v1270
    %v1272 = vpop.xlane.xlu0 %1271
    %v1273 = vcvt.f32.s32 %v1272
    %v1274 = vcvt.f32.s32 %v1268
    %v1275 = vshll.u32 %v1274, 16
    %v1276 = vadd.s32 %v1275, %v1273
    %vm1277 = vcmp.eq.s32.totalorder %v123, %v1276
    %v1278 = vsel %vm1277, 1, 0
    %v1279 = vcvt.s32.f32 %v1278
    %vm1280 = vcmp.eq.s32.totalorder %v123, 3
    %v1281 = vsel %vm1280, %v1276, %v971
    %v1282 = vsel %vm1280, %v1258, %v972
    %v1283 = vmul.f32 %v1258, %v1064
    %v1284 = vadd.f32 %v974, %v1283
    %v1285 = vmul.f32 %v1259, %v1064
    %v1286 = vadd.f32 %v976, %v1285
    %v1287 = vadd.f32 %v977, %v1064
    %1289 = vrot.lane.b32.xlu0 %v1060, 16
    %v1290 = vpop.permute.xlu0 %1289
    %v1292 = vsel %vm124, %v1279, %v1290
    %v1294 = vsel %vm365, %v1292, 0
    %1296 = vmatprep.subr.mxu0 0.0
    %1297 = vmatpush1.msra.mxu0 %v354
    %1298 = vmatprep.subr.mxu0 0.0
    %1299 = vmatpush1.msra.mxu0 %v356
    %1300 = vmatprep.subr.mxu0 0.0
    %1301 = vmatpush1.msra.mxu0 %v358
    %1302 = vmatprep.subr.mxu0 0.0
    %1303 = vmatpush1.msra.mxu0 0.0
    %1304 = vmatprep.subr.mxu0 0.0
    %1305 = vmatpush1.msra.mxu0 0.0
    %1306 = vmatprep.subr.mxu0 0.0
    %1307 = vmatpush1.msra.mxu0 0.0
    %1308 = vmatprep.subr.mxu0 0.0
    %1309 = vmatpush1.msra.mxu0 0.0
    %1310 = vmatprep.subr.mxu0 0.0
    %1311 = vmatpush1.msra.mxu0 0.0
    %1312 = vmatprep.subr.mxu0 0.0
    %1313 = vmatpush1.msra.mxu0 0.0
    %1314 = vmatprep.subr.mxu0 0.0
    %1315 = vmatpush1.msra.mxu0 0.0
    %1316 = vmatprep.subr.mxu0 0.0
    %1317 = vmatpush1.msra.mxu0 0.0
    %1318 = vmatprep.subr.mxu0 0.0
    %1319 = vmatpush1.msra.mxu0 0.0
    %1320 = vmatprep.subr.mxu0 0.0
    %1321 = vmatpush1.msra.mxu0 0.0
    %1322 = vmatprep.subr.mxu0 0.0
    %1323 = vmatpush1.msra.mxu0 0.0
    %1324 = vmatprep.subr.mxu0 0.0
    %1325 = vmatpush1.msra.mxu0 0.0
    %1326 = vmatprep.subr.mxu0 0.0
    %1327 = vmatpush1.msra.mxu0 0.0
    %1328 = vmatprep.subr.mxu0 0.0
    %1329 = vmatpush1.msra.mxu0 0.0
    %1330 = vmatprep.subr.mxu0 0.0
    %1331 = vmatpush1.msra.mxu0 0.0
    %1332 = vmatprep.subr.mxu0 0.0
    %1333 = vmatpush1.msra.mxu0 0.0
    %1334 = vmatprep.subr.mxu0 0.0
    %1335 = vmatpush1.msra.mxu0 0.0
    %1336 = vmatprep.subr.mxu0 0.0
    %1337 = vmatpush1.msra.mxu0 0.0
    %1338 = vmatprep.subr.mxu0 0.0
    %1339 = vmatpush1.msra.mxu0 0.0
    %1340 = vmatprep.subr.mxu0 0.0
    %1341 = vmatpush1.msra.mxu0 0.0
    %1342 = vmatprep.subr.mxu0 0.0
    %1343 = vmatpush1.msra.mxu0 0.0
    %1344 = vmatprep.subr.mxu0 0.0
    %1345 = vmatpush1.msra.mxu0 0.0
    %1346 = vmatprep.subr.mxu0 0.0
    %1347 = vmatpush1.msra.mxu0 0.0
    %1348 = vmatprep.subr.mxu0 0.0
    %1349 = vmatpush1.msra.mxu0 0.0
    %1350 = vmatprep.subr.mxu0 0.0
    %1351 = vmatpush1.msra.mxu0 0.0
    %1352 = vmatprep.subr.mxu0 0.0
    %1353 = vmatpush1.msra.mxu0 0.0
    %1354 = vmatprep.subr.mxu0 0.0
    %1355 = vmatpush1.msra.mxu0 0.0
    %1356 = vmatprep.subr.mxu0 0.0
    %1357 = vmatpush1.msra.mxu0 0.0
    %1358 = vmatprep.subr.mxu0 0.0
    %1359 = vmatpush1.msra.mxu0 0.0
    %1360 = vmatprep.mubr.f32.mxu0 0.0
    %1361 = vmatmul.mubr.f32.gmra.mrb[0].mxu0 %v1294
    %v1362 = vpop.f32.mrb[0].mxu0
    %v1363 = vadd.f32 %v363, %v1362
    %v1364 = vpop.f32.mrb[0].mxu0
    %1365 = vdwg.mxu0
    %v1366 = vtanh.pop %v1363
    %v1367 = vmul.f32 %v1064, %v1366
    %v1368 = vsub.f32 1.0, %v1064
    %v1369 = vmul.f32 %v1368, %v1060
    %v1370 = vadd.f32 %v1367, %v1369
    %vm1371 = vcmp.ne.s32.totalorder %v1276, 0
    %v1372 = vsel %vm1371, 1, 0
    %v1373 = vcvt.s32.f32 %v1372
    %v1374 = vmul.f32 %v1064, %v1373
    %1375 = vrot.lane.b32.xlu0 %v1165, 112
    %v1376 = vpop.permute.xlu0 %1375
    %v1378 = vsel %vm124, %v1279, %v1376
    %v1380 = vsel %vm448, %v1378, 0
    %1382 = vmatprep.subr.mxu0 0.0
    %1383 = vmatpush1.msra.mxu0 %v20
    %1384 = vmatprep.subr.mxu0 0.0
    %1385 = vmatpush1.msra.mxu0 %v21
    %1386 = vmatprep.subr.mxu0 0.0
    %1387 = vmatpush1.msra.mxu0 %v22
    %1388 = vmatprep.subr.mxu0 0.0
    %1389 = vmatpush1.msra.mxu0 %v23
    %1390 = vmatprep.subr.mxu0 0.0
    %1391 = vmatpush1.msra.mxu0 0.0
    %1392 = vmatprep.subr.mxu0 0.0
    %1393 = vmatpush1.msra.mxu0 0.0
    %1394 = vmatprep.subr.mxu0 0.0
    %1395 = vmatpush1.msra.mxu0 0.0
    %1396 = vmatprep.subr.mxu0 0.0
    %1397 = vmatpush1.msra.mxu0 0.0
    %1398 = vmatprep.subr.mxu0 0.0
    %1399 = vmatpush1.msra.mxu0 0.0
    %1400 = vmatprep.subr.mxu0 0.0
    %1401 = vmatpush1.msra.mxu0 0.0
    %1402 = vmatprep.subr.mxu0 0.0
    %1403 = vmatpush1.msra.mxu0 0.0
    %1404 = vmatprep.subr.mxu0 0.0
    %1405 = vmatpush1.msra.mxu0 0.0
    %1406 = vmatprep.subr.mxu0 0.0
    %1407 = vmatpush1.msra.mxu0 0.0
    %1408 = vmatprep.subr.mxu0 0.0
    %1409 = vmatpush1.msra.mxu0 0.0
    %1410 = vmatprep.subr.mxu0 0.0
    %1411 = vmatpush1.msra.mxu0 0.0
    %1412 = vmatprep.subr.mxu0 0.0
    %1413 = vmatpush1.msra.mxu0 0.0
    %1414 = vmatprep.subr.mxu0 0.0
    %1415 = vmatpush1.msra.mxu0 0.0
    %1416 = vmatprep.subr.mxu0 0.0
    %1417 = vmatpush1.msra.mxu0 0.0
    %1418 = vmatprep.subr.mxu0 0.0
    %1419 = vmatpush1.msra.mxu0 0.0
    %1420 = vmatprep.subr.mxu0 0.0
    %1421 = vmatpush1.msra.mxu0 0.0
    %1422 = vmatprep.subr.mxu0 0.0
    %1423 = vmatpush1.msra.mxu0 0.0
    %1424 = vmatprep.subr.mxu0 0.0
    %1425 = vmatpush1.msra.mxu0 0.0
    %1426 = vmatprep.subr.mxu0 0.0
    %1427 = vmatpush1.msra.mxu0 0.0
    %1428 = vmatprep.subr.mxu0 0.0
    %1429 = vmatpush1.msra.mxu0 0.0
    %1430 = vmatprep.subr.mxu0 0.0
    %1431 = vmatpush1.msra.mxu0 0.0
    %1432 = vmatprep.subr.mxu0 0.0
    %1433 = vmatpush1.msra.mxu0 0.0
    %1434 = vmatprep.subr.mxu0 0.0
    %1435 = vmatpush1.msra.mxu0 0.0
    %1436 = vmatprep.subr.mxu0 0.0
    %1437 = vmatpush1.msra.mxu0 0.0
    %1438 = vmatprep.subr.mxu0 0.0
    %1439 = vmatpush1.msra.mxu0 0.0
    %1440 = vmatprep.subr.mxu0 0.0
    %1441 = vmatpush1.msra.mxu0 0.0
    %1442 = vmatprep.subr.mxu0 0.0
    %1443 = vmatpush1.msra.mxu0 0.0
    %1444 = vmatprep.subr.mxu0 0.0
    %1445 = vmatpush1.msra.mxu0 0.0
    %1446 = vmatprep.mubr.f32.mxu0 0.0
    %1447 = vmatmul.mubr.f32.gmra.mrb[0].mxu0 %v1380
    %v1448 = vpop.f32.mrb[0].mxu0
    %v1449 = vadd.f32 %v30, %v1448
    %v1450 = vpop.f32.mrb[0].mxu0
    %1451 = vdwg.mxu0
    %v1452 = vxor.u32 %v1449, 2147483648
    %v1453 = vmul.f32 %v1452, 1.442695
    %v1454 = vpow.pop %v1453
    %v1455 = vadd.f32 %v1454, 1.0
    %v1456 = vrcp.pop %v1455
    %v1457 = vmul.f32 1.0, %v1456
    %v1458 = vtanh.pop %v1449
    %v1459 = vmul.f32 %v1457, %v1159
    %1461 = vrot.lane.b32.xlu0 %v1458, 80
    %v1462 = vpop.permute.xlu0 %1461
    %v1464 = vmul.f32 %v1457, %v1462
    %1466 = vrot.lane.b32.xlu0 %v1464, 16
    %v1467 = vpop.permute.xlu0 %1466
    %v1469 = vadd.f32 %v1459, %v1467
    %v1470 = vtanh.pop %v1469
    %1472 = vrot.lane.b32.xlu0 %v1470, 16
    %v1473 = vpop.permute.xlu0 %1472
    %v1475 = vmul.f32 %v1457, %v1473
    %1477 = vrot.lane.b32.xlu0 %v1475, 96
    %v1478 = vpop.permute.xlu0 %1477
    %v1479 = vsel %vm124, %v1478, 0
    %1481 = vmatprep.subr.mxu0 0.0
    %1482 = vmatpush1.msra.mxu0 %v227
    %1483 = vmatprep.subr.mxu0 0.0
    %1484 = vmatpush1.msra.mxu0 %v229
    %1485 = vmatprep.subr.mxu0 0.0
    %1486 = vmatpush1.msra.mxu0 0.0
    %1487 = vmatprep.subr.mxu0 0.0
    %1488 = vmatpush1.msra.mxu0 0.0
    %1489 = vmatprep.subr.mxu0 0.0
    %1490 = vmatpush1.msra.mxu0 0.0
    %1491 = vmatprep.subr.mxu0 0.0
    %1492 = vmatpush1.msra.mxu0 0.0
    %1493 = vmatprep.subr.mxu0 0.0
    %1494 = vmatpush1.msra.mxu0 0.0
    %1495 = vmatprep.subr.mxu0 0.0
    %1496 = vmatpush1.msra.mxu0 0.0
    %1497 = vmatprep.subr.mxu0 0.0
    %1498 = vmatpush1.msra.mxu0 0.0
    %1499 = vmatprep.subr.mxu0 0.0
    %1500 = vmatpush1.msra.mxu0 0.0
    %1501 = vmatprep.subr.mxu0 0.0
    %1502 = vmatpush1.msra.mxu0 0.0
    %1503 = vmatprep.subr.mxu0 0.0
    %1504 = vmatpush1.msra.mxu0 0.0
    %1505 = vmatprep.subr.mxu0 0.0
    %1506 = vmatpush1.msra.mxu0 0.0
    %1507 = vmatprep.subr.mxu0 0.0
    %1508 = vmatpush1.msra.mxu0 0.0
    %1509 = vmatprep.subr.mxu0 0.0
    %1510 = vmatpush1.msra.mxu0 0.0
    %1511 = vmatprep.subr.mxu0 0.0
    %1512 = vmatpush1.msra.mxu0 0.0
    %1513 = vmatprep.subr.mxu0 0.0
    %1514 = vmatpush1.msra.mxu0 0.0
    %1515 = vmatprep.subr.mxu0 0.0
    %1516 = vmatpush1.msra.mxu0 0.0
    %1517 = vmatprep.subr.mxu0 0.0
    %1518 = vmatpush1.msra.mxu0 0.0
    %1519 = vmatprep.subr.mxu0 0.0
    %1520 = vmatpush1.msra.mxu0 0.0
    %1521 = vmatprep.subr.mxu0 0.0
    %1522 = vmatpush1.msra.mxu0 0.0
    %1523 = vmatprep.subr.mxu0 0.0
    %1524 = vmatpush1.msra.mxu0 0.0
    %1525 = vmatprep.subr.mxu0 0.0
    %1526 = vmatpush1.msra.mxu0 0.0
    %1527 = vmatprep.subr.mxu0 0.0
    %1528 = vmatpush1.msra.mxu0 0.0
    %1529 = vmatprep.subr.mxu0 0.0
    %1530 = vmatpush1.msra.mxu0 0.0
    %1531 = vmatprep.subr.mxu0 0.0
    %1532 = vmatpush1.msra.mxu0 0.0
    %1533 = vmatprep.subr.mxu0 0.0
    %1534 = vmatpush1.msra.mxu0 0.0
    %1535 = vmatprep.subr.mxu0 0.0
    %1536 = vmatpush1.msra.mxu0 0.0
    %1537 = vmatprep.subr.mxu0 0.0
    %1538 = vmatpush1.msra.mxu0 0.0
    %1539 = vmatprep.subr.mxu0 0.0
    %1540 = vmatpush1.msra.mxu0 0.0
    %1541 = vmatprep.subr.mxu0 0.0
    %1542 = vmatpush1.msra.mxu0 0.0
    %1543 = vmatprep.subr.mxu0 0.0
    %1544 = vmatpush1.msra.mxu0 0.0
    %1545 = vmatprep.mubr.f32.mxu0 0.0
    %1546 = vmatmul.mubr.f32.gmra.mrb[0].mxu0 %v1479
    %v1547 = vpop.f32.mrb[0].mxu0
    %v1548 = vadd.f32 %v233, %v1547
    %v1549 = vpop.f32.mrb[0].mxu0
    %1550 = vdwg.mxu0
    %v1551 = vsel %vm124, %v1548, -inf
    %1552 = vmax.xlane.f32.xlu0 %v1551
    %v1553 = vpop.xlane.xlu0 %1552
    %v1554 = vsub.f32 %v1548, %v1553
    %v1555 = vmul.f32 %v1554, 1.442695
    %v1556 = vpow.pop %v1555
    %v1557 = vsel %vm124, %v1556, 0.0
    %1558 = vadd.xlane.f32.xlu0 %v1557
    %v1559 = vpop.xlane.xlu0 %1558
    %v1560 = vrcp.pop %v1559
    %v1561 = vlog2.pop %v1559
    %v1562 = vmul.f32 %v1561, 0.6931472
    %v1563 = vmul.f32 %v1556, %v1554
    %v1564 = vsel %vm124, %v1563, 0.0
    %1565 = vadd.xlane.f32.xlu0 %v1564
    %v1566 = vpop.xlane.xlu0 %1565
    %v1567 = vmul.f32 %v1560, %v1566
    %v1568 = vsub.f32 %v1562, %v1567
    %v1569 = vsub.f32 0.0, %v1562
    %vm1570 = vcmp.ge.f32.partialorder %v1548, %v1553
    %v1571 = vsel %vm1570, %v123, 16
    %v1572 = vsel %vm124, %v1571, 2147483647
    %v1573 = vand.u32 %v1572, 65535
    %v1574 = vshra.s32 %v1572, 16
    %v1575 = vcvt.s32.f32 %v1573
    %v1576 = vcvt.s32.f32 %v1574
    %1577 = vmin.xlane.f32.xlu0 %v1576
    %v1578 = vpop.xlane.xlu0 %1577
    %vm1579 = vcmp.eq.f32.partialorder %v1576, %v1578
    %v1580 = vsel %vm1579, %v1575, inf
    %1581 = vmin.xlane.f32.xlu0 %v1580
    %v1582 = vpop.xlane.xlu0 %1581
    %v1583 = vcvt.f32.s32 %v1582
    %v1584 = vcvt.f32.s32 %v1578
    %v1585 = vshll.u32 %v1584, 16
    %v1586 = vadd.s32 %v1585, %v1583
    %vm1587 = vcmp.eq.s32.totalorder %v123, %v1586
    %v1588 = vsel %vm1587, 1, 0
    %v1589 = vcvt.s32.f32 %v1588
    %vm1590 = vcmp.eq.s32.totalorder %v123, 4
    %v1591 = vsel %vm1590, %v1586, %v1281
    %v1592 = vsel %vm1590, %v1568, %v1282
    %v1593 = vmul.f32 %v1568, %v1374
    %v1594 = vadd.f32 %v1284, %v1593
    %v1595 = vmul.f32 %v1569, %v1374
    %v1596 = vadd.f32 %v1286, %v1595
    %v1597 = vadd.f32 %v1287, %v1374
    %1599 = vrot.lane.b32.xlu0 %v1370, 16
    %v1600 = vpop.permute.xlu0 %1599
    %v1602 = vsel %vm124, %v1589, %v1600
    %v1604 = vsel %vm365, %v1602, 0
    %1606 = vmatprep.subr.mxu0 0.0
    %1607 = vmatpush1.msra.mxu0 %v354
    %1608 = vmatprep.subr.mxu0 0.0
    %1609 = vmatpush1.msra.mxu0 %v356
    %1610 = vmatprep.subr.mxu0 0.0
    %1611 = vmatpush1.msra.mxu0 %v358
    %1612 = vmatprep.subr.mxu0 0.0
    %1613 = vmatpush1.msra.mxu0 0.0
    %1614 = vmatprep.subr.mxu0 0.0
    %1615 = vmatpush1.msra.mxu0 0.0
    %1616 = vmatprep.subr.mxu0 0.0
    %1617 = vmatpush1.msra.mxu0 0.0
    %1618 = vmatprep.subr.mxu0 0.0
    %1619 = vmatpush1.msra.mxu0 0.0
    %1620 = vmatprep.subr.mxu0 0.0
    %1621 = vmatpush1.msra.mxu0 0.0
    %1622 = vmatprep.subr.mxu0 0.0
    %1623 = vmatpush1.msra.mxu0 0.0
    %1624 = vmatprep.subr.mxu0 0.0
    %1625 = vmatpush1.msra.mxu0 0.0
    %1626 = vmatprep.subr.mxu0 0.0
    %1627 = vmatpush1.msra.mxu0 0.0
    %1628 = vmatprep.subr.mxu0 0.0
    %1629 = vmatpush1.msra.mxu0 0.0
    %1630 = vmatprep.subr.mxu0 0.0
    %1631 = vmatpush1.msra.mxu0 0.0
    %1632 = vmatprep.subr.mxu0 0.0
    %1633 = vmatpush1.msra.mxu0 0.0
    %1634 = vmatprep.subr.mxu0 0.0
    %1635 = vmatpush1.msra.mxu0 0.0
    %1636 = vmatprep.subr.mxu0 0.0
    %1637 = vmatpush1.msra.mxu0 0.0
    %1638 = vmatprep.subr.mxu0 0.0
    %1639 = vmatpush1.msra.mxu0 0.0
    %1640 = vmatprep.subr.mxu0 0.0
    %1641 = vmatpush1.msra.mxu0 0.0
    %1642 = vmatprep.subr.mxu0 0.0
    %1643 = vmatpush1.msra.mxu0 0.0
    %1644 = vmatprep.subr.mxu0 0.0
    %1645 = vmatpush1.msra.mxu0 0.0
    %1646 = vmatprep.subr.mxu0 0.0
    %1647 = vmatpush1.msra.mxu0 0.0
    %1648 = vmatprep.subr.mxu0 0.0
    %1649 = vmatpush1.msra.mxu0 0.0
    %1650 = vmatprep.subr.mxu0 0.0
    %1651 = vmatpush1.msra.mxu0 0.0
    %1652 = vmatprep.subr.mxu0 0.0
    %1653 = vmatpush1.msra.mxu0 0.0
    %1654 = vmatprep.subr.mxu0 0.0
    %1655 = vmatpush1.msra.mxu0 0.0
    %1656 = vmatprep.subr.mxu0 0.0
    %1657 = vmatpush1.msra.mxu0 0.0
    %1658 = vmatprep.subr.mxu0 0.0
    %1659 = vmatpush1.msra.mxu0 0.0
    %1660 = vmatprep.subr.mxu0 0.0
    %1661 = vmatpush1.msra.mxu0 0.0
    %1662 = vmatprep.subr.mxu0 0.0
    %1663 = vmatpush1.msra.mxu0 0.0
    %1664 = vmatprep.subr.mxu0 0.0
    %1665 = vmatpush1.msra.mxu0 0.0
    %1666 = vmatprep.subr.mxu0 0.0
    %1667 = vmatpush1.msra.mxu0 0.0
    %1668 = vmatprep.subr.mxu0 0.0
    %1669 = vmatpush1.msra.mxu0 0.0
    %1670 = vmatprep.mubr.f32.mxu0 0.0
    %1671 = vmatmul.mubr.f32.gmra.mrb[0].mxu0 %v1604
    %v1672 = vpop.f32.mrb[0].mxu0
    %v1673 = vadd.f32 %v363, %v1672
    %v1674 = vpop.f32.mrb[0].mxu0
    %1675 = vdwg.mxu0
    %v1676 = vtanh.pop %v1673
    %v1677 = vmul.f32 %v1374, %v1676
    %v1678 = vsub.f32 1.0, %v1374
    %v1679 = vmul.f32 %v1678, %v1370
    %v1680 = vadd.f32 %v1677, %v1679
    %vm1681 = vcmp.ne.s32.totalorder %v1586, 0
    %v1682 = vsel %vm1681, 1, 0
    %v1683 = vcvt.s32.f32 %v1682
    %v1684 = vmul.f32 %v1374, %v1683
    %1685 = vrot.lane.b32.xlu0 %v1475, 112
    %v1686 = vpop.permute.xlu0 %1685
    %v1688 = vsel %vm124, %v1589, %v1686
    %v1690 = vsel %vm448, %v1688, 0
    %1692 = vmatprep.subr.mxu0 0.0
    %1693 = vmatpush1.msra.mxu0 %v20
    %1694 = vmatprep.subr.mxu0 0.0
    %1695 = vmatpush1.msra.mxu0 %v21
    %1696 = vmatprep.subr.mxu0 0.0
    %1697 = vmatpush1.msra.mxu0 %v22
    %1698 = vmatprep.subr.mxu0 0.0
    %1699 = vmatpush1.msra.mxu0 %v23
    %1700 = vmatprep.subr.mxu0 0.0
    %1701 = vmatpush1.msra.mxu0 0.0
    %1702 = vmatprep.subr.mxu0 0.0
    %1703 = vmatpush1.msra.mxu0 0.0
    %1704 = vmatprep.subr.mxu0 0.0
    %1705 = vmatpush1.msra.mxu0 0.0
    %1706 = vmatprep.subr.mxu0 0.0
    %1707 = vmatpush1.msra.mxu0 0.0
    %1708 = vmatprep.subr.mxu0 0.0
    %1709 = vmatpush1.msra.mxu0 0.0
    %1710 = vmatprep.subr.mxu0 0.0
    %1711 = vmatpush1.msra.mxu0 0.0
    %1712 = vmatprep.subr.mxu0 0.0
    %1713 = vmatpush1.msra.mxu0 0.0
    %1714 = vmatprep.subr.mxu0 0.0
    %1715 = vmatpush1.msra.mxu0 0.0
    %1716 = vmatprep.subr.mxu0 0.0
    %1717 = vmatpush1.msra.mxu0 0.0
    %1718 = vmatprep.subr.mxu0 0.0
    %1719 = vmatpush1.msra.mxu0 0.0
    %1720 = vmatprep.subr.mxu0 0.0
    %1721 = vmatpush1.msra.mxu0 0.0
    %1722 = vmatprep.subr.mxu0 0.0
    %1723 = vmatpush1.msra.mxu0 0.0
    %1724 = vmatprep.subr.mxu0 0.0
    %1725 = vmatpush1.msra.mxu0 0.0
    %1726 = vmatprep.subr.mxu0 0.0
    %1727 = vmatpush1.msra.mxu0 0.0
    %1728 = vmatprep.subr.mxu0 0.0
    %1729 = vmatpush1.msra.mxu0 0.0
    %1730 = vmatprep.subr.mxu0 0.0
    %1731 = vmatpush1.msra.mxu0 0.0
    %1732 = vmatprep.subr.mxu0 0.0
    %1733 = vmatpush1.msra.mxu0 0.0
    %1734 = vmatprep.subr.mxu0 0.0
    %1735 = vmatpush1.msra.mxu0 0.0
    %1736 = vmatprep.subr.mxu0 0.0
    %1737 = vmatpush1.msra.mxu0 0.0
    %1738 = vmatprep.subr.mxu0 0.0
    %1739 = vmatpush1.msra.mxu0 0.0
    %1740 = vmatprep.subr.mxu0 0.0
    %1741 = vmatpush1.msra.mxu0 0.0
    %1742 = vmatprep.subr.mxu0 0.0
    %1743 = vmatpush1.msra.mxu0 0.0
    %1744 = vmatprep.subr.mxu0 0.0
    %1745 = vmatpush1.msra.mxu0 0.0
    %1746 = vmatprep.subr.mxu0 0.0
    %1747 = vmatpush1.msra.mxu0 0.0
    %1748 = vmatprep.subr.mxu0 0.0
    %1749 = vmatpush1.msra.mxu0 0.0
    %1750 = vmatprep.subr.mxu0 0.0
    %1751 = vmatpush1.msra.mxu0 0.0
    %1752 = vmatprep.subr.mxu0 0.0
    %1753 = vmatpush1.msra.mxu0 0.0
    %1754 = vmatprep.subr.mxu0 0.0
    %1755 = vmatpush1.msra.mxu0 0.0
    %1756 = vmatprep.mubr.f32.mxu0 0.0
    %1757 = vmatmul.mubr.f32.gmra.mrb[0].mxu0 %v1690
    %v1758 = vpop.f32.mrb[0].mxu0
    %v1759 = vadd.f32 %v30, %v1758
    %v1760 = vpop.f32.mrb[0].mxu0
    %1761 = vdwg.mxu0
    %v1762 = vxor.u32 %v1759, 2147483648
    %v1763 = vmul.f32 %v1762, 1.442695
    %v1764 = vpow.pop %v1763
    %v1765 = vadd.f32 %v1764, 1.0
    %v1766 = vrcp.pop %v1765
    %v1767 = vmul.f32 1.0, %v1766
    %v1768 = vtanh.pop %v1759
    %v1769 = vmul.f32 %v1767, %v1469
    %1771 = vrot.lane.b32.xlu0 %v1768, 80
    %v1772 = vpop.permute.xlu0 %1771
    %v1774 = vmul.f32 %v1767, %v1772
    %1776 = vrot.lane.b32.xlu0 %v1774, 16
    %v1777 = vpop.permute.xlu0 %1776
    %v1779 = vadd.f32 %v1769, %v1777
    %v1780 = vtanh.pop %v1779
    %1782 = vrot.lane.b32.xlu0 %v1780, 16
    %v1783 = vpop.permute.xlu0 %1782
    %v1785 = vmul.f32 %v1767, %v1783
    %1787 = vrot.lane.b32.xlu0 %v1785, 96
    %v1788 = vpop.permute.xlu0 %1787
    %v1789 = vsel %vm124, %v1788, 0
    %1791 = vmatprep.subr.mxu0 0.0
    %1792 = vmatpush1.msra.mxu0 %v227
    %1793 = vmatprep.subr.mxu0 0.0
    %1794 = vmatpush1.msra.mxu0 %v229
    %1795 = vmatprep.subr.mxu0 0.0
    %1796 = vmatpush1.msra.mxu0 0.0
    %1797 = vmatprep.subr.mxu0 0.0
    %1798 = vmatpush1.msra.mxu0 0.0
    %1799 = vmatprep.subr.mxu0 0.0
    %1800 = vmatpush1.msra.mxu0 0.0
    %1801 = vmatprep.subr.mxu0 0.0
    %1802 = vmatpush1.msra.mxu0 0.0
    %1803 = vmatprep.subr.mxu0 0.0
    %1804 = vmatpush1.msra.mxu0 0.0
    %1805 = vmatprep.subr.mxu0 0.0
    %1806 = vmatpush1.msra.mxu0 0.0
    %1807 = vmatprep.subr.mxu0 0.0
    %1808 = vmatpush1.msra.mxu0 0.0
    %1809 = vmatprep.subr.mxu0 0.0
    %1810 = vmatpush1.msra.mxu0 0.0
    %1811 = vmatprep.subr.mxu0 0.0
    %1812 = vmatpush1.msra.mxu0 0.0
    %1813 = vmatprep.subr.mxu0 0.0
    %1814 = vmatpush1.msra.mxu0 0.0
    %1815 = vmatprep.subr.mxu0 0.0
    %1816 = vmatpush1.msra.mxu0 0.0
    %1817 = vmatprep.subr.mxu0 0.0
    %1818 = vmatpush1.msra.mxu0 0.0
    %1819 = vmatprep.subr.mxu0 0.0
    %1820 = vmatpush1.msra.mxu0 0.0
    %1821 = vmatprep.subr.mxu0 0.0
    %1822 = vmatpush1.msra.mxu0 0.0
    %1823 = vmatprep.subr.mxu0 0.0
    %1824 = vmatpush1.msra.mxu0 0.0
    %1825 = vmatprep.subr.mxu0 0.0
    %1826 = vmatpush1.msra.mxu0 0.0
    %1827 = vmatprep.subr.mxu0 0.0
    %1828 = vmatpush1.msra.mxu0 0.0
    %1829 = vmatprep.subr.mxu0 0.0
    %1830 = vmatpush1.msra.mxu0 0.0
    %1831 = vmatprep.subr.mxu0 0.0
    %1832 = vmatpush1.msra.mxu0 0.0
    %1833 = vmatprep.subr.mxu0 0.0
    %1834 = vmatpush1.msra.mxu0 0.0
    %1835 = vmatprep.subr.mxu0 0.0
    %1836 = vmatpush1.msra.mxu0 0.0
    %1837 = vmatprep.subr.mxu0 0.0
    %1838 = vmatpush1.msra.mxu0 0.0
    %1839 = vmatprep.subr.mxu0 0.0
    %1840 = vmatpush1.msra.mxu0 0.0
    %1841 = vmatprep.subr.mxu0 0.0
    %1842 = vmatpush1.msra.mxu0 0.0
    %1843 = vmatprep.subr.mxu0 0.0
    %1844 = vmatpush1.msra.mxu0 0.0
    %1845 = vmatprep.subr.mxu0 0.0
    %1846 = vmatpush1.msra.mxu0 0.0
    %1847 = vmatprep.subr.mxu0 0.0
    %1848 = vmatpush1.msra.mxu0 0.0
    %1849 = vmatprep.subr.mxu0 0.0
    %1850 = vmatpush1.msra.mxu0 0.0
    %1851 = vmatprep.subr.mxu0 0.0
    %1852 = vmatpush1.msra.mxu0 0.0
    %1853 = vmatprep.subr.mxu0 0.0
    %1854 = vmatpush1.msra.mxu0 0.0
    %1855 = vmatprep.mubr.f32.mxu0 0.0
    %1856 = vmatmul.mubr.f32.gmra.mrb[0].mxu0 %v1789
    %v1857 = vpop.f32.mrb[0].mxu0
    %v1858 = vadd.f32 %v233, %v1857
    %v1859 = vpop.f32.mrb[0].mxu0
    %1860 = vdwg.mxu0
    %v1861 = vsel %vm124, %v1858, -inf
    %1862 = vmax.xlane.f32.xlu0 %v1861
    %v1863 = vpop.xlane.xlu0 %1862
    %v1864 = vsub.f32 %v1858, %v1863
    %v1865 = vmul.f32 %v1864, 1.442695
    %v1866 = vpow.pop %v1865
    %v1867 = vsel %vm124, %v1866, 0.0
    %1868 = vadd.xlane.f32.xlu0 %v1867
    %v1869 = vpop.xlane.xlu0 %1868
    %v1870 = vrcp.pop %v1869
    %v1871 = vlog2.pop %v1869
    %v1872 = vmul.f32 %v1871, 0.6931472
    %v1873 = vmul.f32 %v1866, %v1864
    %v1874 = vsel %vm124, %v1873, 0.0
    %1875 = vadd.xlane.f32.xlu0 %v1874
    %v1876 = vpop.xlane.xlu0 %1875
    %v1877 = vmul.f32 %v1870, %v1876
    %v1878 = vsub.f32 %v1872, %v1877
    %v1879 = vsub.f32 0.0, %v1872
    %vm1880 = vcmp.ge.f32.partialorder %v1858, %v1863
    %v1881 = vsel %vm1880, %v123, 16
    %v1882 = vsel %vm124, %v1881, 2147483647
    %v1883 = vand.u32 %v1882, 65535
    %v1884 = vshra.s32 %v1882, 16
    %v1885 = vcvt.s32.f32 %v1883
    %v1886 = vcvt.s32.f32 %v1884
    %1887 = vmin.xlane.f32.xlu0 %v1886
    %v1888 = vpop.xlane.xlu0 %1887
    %vm1889 = vcmp.eq.f32.partialorder %v1886, %v1888
    %v1890 = vsel %vm1889, %v1885, inf
    %1891 = vmin.xlane.f32.xlu0 %v1890
    %v1892 = vpop.xlane.xlu0 %1891
    %v1893 = vcvt.f32.s32 %v1892
    %v1894 = vcvt.f32.s32 %v1888
    %v1895 = vshll.u32 %v1894, 16
    %v1896 = vadd.s32 %v1895, %v1893
    %vm1897 = vcmp.eq.s32.totalorder %v123, %v1896
    %v1898 = vsel %vm1897, 1, 0
    %v1899 = vcvt.s32.f32 %v1898
    %vm1900 = vcmp.eq.s32.totalorder %v123, 5
    %v1901 = vsel %vm1900, %v1896, %v1591
    %v1902 = vsel %vm1900, %v1878, %v1592
    %v1903 = vmul.f32 %v1878, %v1684
    %v1904 = vadd.f32 %v1594, %v1903
    %v1905 = vmul.f32 %v1879, %v1684
    %v1906 = vadd.f32 %v1596, %v1905
    %v1907 = vadd.f32 %v1597, %v1684
    %1909 = vrot.lane.b32.xlu0 %v1680, 16
    %v1910 = vpop.permute.xlu0 %1909
    %v1912 = vsel %vm124, %v1899, %v1910
    %v1914 = vsel %vm365, %v1912, 0
    %1916 = vmatprep.subr.mxu0 0.0
    %1917 = vmatpush1.msra.mxu0 %v354
    %1918 = vmatprep.subr.mxu0 0.0
    %1919 = vmatpush1.msra.mxu0 %v356
    %1920 = vmatprep.subr.mxu0 0.0
    %1921 = vmatpush1.msra.mxu0 %v358
    %1922 = vmatprep.subr.mxu0 0.0
    %1923 = vmatpush1.msra.mxu0 0.0
    %1924 = vmatprep.subr.mxu0 0.0
    %1925 = vmatpush1.msra.mxu0 0.0
    %1926 = vmatprep.subr.mxu0 0.0
    %1927 = vmatpush1.msra.mxu0 0.0
    %1928 = vmatprep.subr.mxu0 0.0
    %1929 = vmatpush1.msra.mxu0 0.0
    %1930 = vmatprep.subr.mxu0 0.0
    %1931 = vmatpush1.msra.mxu0 0.0
    %1932 = vmatprep.subr.mxu0 0.0
    %1933 = vmatpush1.msra.mxu0 0.0
    %1934 = vmatprep.subr.mxu0 0.0
    %1935 = vmatpush1.msra.mxu0 0.0
    %1936 = vmatprep.subr.mxu0 0.0
    %1937 = vmatpush1.msra.mxu0 0.0
    %1938 = vmatprep.subr.mxu0 0.0
    %1939 = vmatpush1.msra.mxu0 0.0
    %1940 = vmatprep.subr.mxu0 0.0
    %1941 = vmatpush1.msra.mxu0 0.0
    %1942 = vmatprep.subr.mxu0 0.0
    %1943 = vmatpush1.msra.mxu0 0.0
    %1944 = vmatprep.subr.mxu0 0.0
    %1945 = vmatpush1.msra.mxu0 0.0
    %1946 = vmatprep.subr.mxu0 0.0
    %1947 = vmatpush1.msra.mxu0 0.0
    %1948 = vmatprep.subr.mxu0 0.0
    %1949 = vmatpush1.msra.mxu0 0.0
    %1950 = vmatprep.subr.mxu0 0.0
    %1951 = vmatpush1.msra.mxu0 0.0
    %1952 = vmatprep.subr.mxu0 0.0
    %1953 = vmatpush1.msra.mxu0 0.0
    %1954 = vmatprep.subr.mxu0 0.0
    %1955 = vmatpush1.msra.mxu0 0.0
    %1956 = vmatprep.subr.mxu0 0.0
    %1957 = vmatpush1.msra.mxu0 0.0
    %1958 = vmatprep.subr.mxu0 0.0
    %1959 = vmatpush1.msra.mxu0 0.0
    %1960 = vmatprep.subr.mxu0 0.0
    %1961 = vmatpush1.msra.mxu0 0.0
    %1962 = vmatprep.subr.mxu0 0.0
    %1963 = vmatpush1.msra.mxu0 0.0
    %1964 = vmatprep.subr.mxu0 0.0
    %1965 = vmatpush1.msra.mxu0 0.0
    %1966 = vmatprep.subr.mxu0 0.0
    %1967 = vmatpush1.msra.mxu0 0.0
    %1968 = vmatprep.subr.mxu0 0.0
    %1969 = vmatpush1.msra.mxu0 0.0
    %1970 = vmatprep.subr.mxu0 0.0
    %1971 = vmatpush1.msra.mxu0 0.0
    %1972 = vmatprep.subr.mxu0 0.0
    %1973 = vmatpush1.msra.mxu0 0.0
    %1974 = vmatprep.subr.mxu0 0.0
    %1975 = vmatpush1.msra.mxu0 0.0
    %1976 = vmatprep.subr.mxu0 0.0
    %1977 = vmatpush1.msra.mxu0 0.0
    %1978 = vmatprep.subr.mxu0 0.0
    %1979 = vmatpush1.msra.mxu0 0.0
    %1980 = vmatprep.mubr.f32.mxu0 0.0
    %1981 = vmatmul.mubr.f32.gmra.mrb[0].mxu0 %v1914
    %v1982 = vpop.f32.mrb[0].mxu0
    %v1983 = vadd.f32 %v363, %v1982
    %v1984 = vpop.f32.mrb[0].mxu0
    %1985 = vdwg.mxu0
    %v1986 = vtanh.pop %v1983
    %v1987 = vmul.f32 %v1684, %v1986
    %v1988 = vsub.f32 1.0, %v1684
    %v1989 = vmul.f32 %v1988, %v1680
    %v1990 = vadd.f32 %v1987, %v1989
    %vm1991 = vcmp.ne.s32.totalorder %v1896, 0
    %v1992 = vsel %vm1991, 1, 0
    %v1993 = vcvt.s32.f32 %v1992
    %v1994 = vmul.f32 %v1684, %v1993
    %1995 = vrot.lane.b32.xlu0 %v1785, 112
    %v1996 = vpop.permute.xlu0 %1995
    %v1998 = vsel %vm124, %v1899, %v1996
    %v2000 = vsel %vm448, %v1998, 0
    %2002 = vmatprep.subr.mxu0 0.0
    %2003 = vmatpush1.msra.mxu0 %v20
    %2004 = vmatprep.subr.mxu0 0.0
    %2005 = vmatpush1.msra.mxu0 %v21
    %2006 = vmatprep.subr.mxu0 0.0
    %2007 = vmatpush1.msra.mxu0 %v22
    %2008 = vmatprep.subr.mxu0 0.0
    %2009 = vmatpush1.msra.mxu0 %v23
    %2010 = vmatprep.subr.mxu0 0.0
    %2011 = vmatpush1.msra.mxu0 0.0
    %2012 = vmatprep.subr.mxu0 0.0
    %2013 = vmatpush1.msra.mxu0 0.0
    %2014 = vmatprep.subr.mxu0 0.0
    %2015 = vmatpush1.msra.mxu0 0.0
    %2016 = vmatprep.subr.mxu0 0.0
    %2017 = vmatpush1.msra.mxu0 0.0
    %2018 = vmatprep.subr.mxu0 0.0
    %2019 = vmatpush1.msra.mxu0 0.0
    %2020 = vmatprep.subr.mxu0 0.0
    %2021 = vmatpush1.msra.mxu0 0.0
    %2022 = vmatprep.subr.mxu0 0.0
    %2023 = vmatpush1.msra.mxu0 0.0
    %2024 = vmatprep.subr.mxu0 0.0
    %2025 = vmatpush1.msra.mxu0 0.0
    %2026 = vmatprep.subr.mxu0 0.0
    %2027 = vmatpush1.msra.mxu0 0.0
    %2028 = vmatprep.subr.mxu0 0.0
    %2029 = vmatpush1.msra.mxu0 0.0
    %2030 = vmatprep.subr.mxu0 0.0
    %2031 = vmatpush1.msra.mxu0 0.0
    %2032 = vmatprep.subr.mxu0 0.0
    %2033 = vmatpush1.msra.mxu0 0.0
    %2034 = vmatprep.subr.mxu0 0.0
    %2035 = vmatpush1.msra.mxu0 0.0
    %2036 = vmatprep.subr.mxu0 0.0
    %2037 = vmatpush1.msra.mxu0 0.0
    %2038 = vmatprep.subr.mxu0 0.0
    %2039 = vmatpush1.msra.mxu0 0.0
    %2040 = vmatprep.subr.mxu0 0.0
    %2041 = vmatpush1.msra.mxu0 0.0
    %2042 = vmatprep.subr.mxu0 0.0
    %2043 = vmatpush1.msra.mxu0 0.0
    %2044 = vmatprep.subr.mxu0 0.0
    %2045 = vmatpush1.msra.mxu0 0.0
    %2046 = vmatprep.subr.mxu0 0.0
    %2047 = vmatpush1.msra.mxu0 0.0
    %2048 = vmatprep.subr.mxu0 0.0
    %2049 = vmatpush1.msra.mxu0 0.0
    %2050 = vmatprep.subr.mxu0 0.0
    %2051 = vmatpush1.msra.mxu0 0.0
    %2052 = vmatprep.subr.mxu0 0.0
    %2053 = vmatpush1.msra.mxu0 0.0
    %2054 = vmatprep.subr.mxu0 0.0
    %2055 = vmatpush1.msra.mxu0 0.0
    %2056 = vmatprep.subr.mxu0 0.0
    %2057 = vmatpush1.msra.mxu0 0.0
    %2058 = vmatprep.subr.mxu0 0.0
    %2059 = vmatpush1.msra.mxu0 0.0
    %2060 = vmatprep.subr.mxu0 0.0
    %2061 = vmatpush1.msra.mxu0 0.0
    %2062 = vmatprep.subr.mxu0 0.0
    %2063 = vmatpush1.msra.mxu0 0.0
    %2064 = vmatprep.subr.mxu0 0.0
    %2065 = vmatpush1.msra.mxu0 0.0
    %2066 = vmatprep.mubr.f32.mxu0 0.0
    %2067 = vmatmul.mubr.f32.gmra.mrb[0].mxu0 %v2000
    %v2068 = vpop.f32.mrb[0].mxu0
    %v2069 = vadd.f32 %v30, %v2068
    %v2070 = vpop.f32.mrb[0].mxu0
    %2071 = vdwg.mxu0
    %v2072 = vxor.u32 %v2069, 2147483648
    %v2073 = vmul.f32 %v2072, 1.442695
    %v2074 = vpow.pop %v2073
    %v2075 = vadd.f32 %v2074, 1.0
    %v2076 = vrcp.pop %v2075
    %v2077 = vmul.f32 1.0, %v2076
    %v2078 = vtanh.pop %v2069
    %v2079 = vmul.f32 %v2077, %v1779
    %2081 = vrot.lane.b32.xlu0 %v2078, 80
    %v2082 = vpop.permute.xlu0 %2081
    %v2084 = vmul.f32 %v2077, %v2082
    %2086 = vrot.lane.b32.xlu0 %v2084, 16
    %v2087 = vpop.permute.xlu0 %2086
    %v2089 = vadd.f32 %v2079, %v2087
    %v2090 = vtanh.pop %v2089
    %2092 = vrot.lane.b32.xlu0 %v2090, 16
    %v2093 = vpop.permute.xlu0 %2092
    %v2095 = vmul.f32 %v2077, %v2093
    %2097 = vrot.lane.b32.xlu0 %v2095, 96
    %v2098 = vpop.permute.xlu0 %2097
    %v2099 = vsel %vm124, %v2098, 0
    %2101 = vmatprep.subr.mxu0 0.0
    %2102 = vmatpush1.msra.mxu0 %v227
    %2103 = vmatprep.subr.mxu0 0.0
    %2104 = vmatpush1.msra.mxu0 %v229
    %2105 = vmatprep.subr.mxu0 0.0
    %2106 = vmatpush1.msra.mxu0 0.0
    %2107 = vmatprep.subr.mxu0 0.0
    %2108 = vmatpush1.msra.mxu0 0.0
    %2109 = vmatprep.subr.mxu0 0.0
    %2110 = vmatpush1.msra.mxu0 0.0
    %2111 = vmatprep.subr.mxu0 0.0
    %2112 = vmatpush1.msra.mxu0 0.0
    %2113 = vmatprep.subr.mxu0 0.0
    %2114 = vmatpush1.msra.mxu0 0.0
    %2115 = vmatprep.subr.mxu0 0.0
    %2116 = vmatpush1.msra.mxu0 0.0
    %2117 = vmatprep.subr.mxu0 0.0
    %2118 = vmatpush1.msra.mxu0 0.0
    %2119 = vmatprep.subr.mxu0 0.0
    %2120 = vmatpush1.msra.mxu0 0.0
    %2121 = vmatprep.subr.mxu0 0.0
    %2122 = vmatpush1.msra.mxu0 0.0
    %2123 = vmatprep.subr.mxu0 0.0
    %2124 = vmatpush1.msra.mxu0 0.0
    %2125 = vmatprep.subr.mxu0 0.0
    %2126 = vmatpush1.msra.mxu0 0.0
    %2127 = vmatprep.subr.mxu0 0.0
    %2128 = vmatpush1.msra.mxu0 0.0
    %2129 = vmatprep.subr.mxu0 0.0
    %2130 = vmatpush1.msra.mxu0 0.0
    %2131 = vmatprep.subr.mxu0 0.0
    %2132 = vmatpush1.msra.mxu0 0.0
    %2133 = vmatprep.subr.mxu0 0.0
    %2134 = vmatpush1.msra.mxu0 0.0
    %2135 = vmatprep.subr.mxu0 0.0
    %2136 = vmatpush1.msra.mxu0 0.0
    %2137 = vmatprep.subr.mxu0 0.0
    %2138 = vmatpush1.msra.mxu0 0.0
    %2139 = vmatprep.subr.mxu0 0.0
    %2140 = vmatpush1.msra.mxu0 0.0
    %2141 = vmatprep.subr.mxu0 0.0
    %2142 = vmatpush1.msra.mxu0 0.0
    %2143 = vmatprep.subr.mxu0 0.0
    %2144 = vmatpush1.msra.mxu0 0.0
    %2145 = vmatprep.subr.mxu0 0.0
    %2146 = vmatpush1.msra.mxu0 0.0
    %2147 = vmatprep.subr.mxu0 0.0
    %2148 = vmatpush1.msra.mxu0 0.0
    %2149 = vmatprep.subr.mxu0 0.0
    %2150 = vmatpush1.msra.mxu0 0.0
    %2151 = vmatprep.subr.mxu0 0.0
    %2152 = vmatpush1.msra.mxu0 0.0
    %2153 = vmatprep.subr.mxu0 0.0
    %2154 = vmatpush1.msra.mxu0 0.0
    %2155 = vmatprep.subr.mxu0 0.0
    %2156 = vmatpush1.msra.mxu0 0.0
    %2157 = vmatprep.subr.mxu0 0.0
    %2158 = vmatpush1.msra.mxu0 0.0
    %2159 = vmatprep.subr.mxu0 0.0
    %2160 = vmatpush1.msra.mxu0 0.0
    %2161 = vmatprep.subr.mxu0 0.0
    %2162 = vmatpush1.msra.mxu0 0.0
    %2163 = vmatprep.subr.mxu0 0.0
    %2164 = vmatpush1.msra.mxu0 0.0
    %2165 = vmatprep.mubr.f32.mxu0 0.0
    %2166 = vmatmul.mubr.f32.gmra.mrb[0].mxu0 %v2099
    %v2167 = vpop.f32.mrb[0].mxu0
    %v2168 = vadd.f32 %v233, %v2167
    %v2169 = vpop.f32.mrb[0].mxu0
    %2170 = vdwg.mxu0
    %v2171 = vsel %vm124, %v2168, -inf
    %2172 = vmax.xlane.f32.xlu0 %v2171
    %v2173 = vpop.xlane.xlu0 %2172
    %v2174 = vsub.f32 %v2168, %v2173
    %v2175 = vmul.f32 %v2174, 1.442695
    %v2176 = vpow.pop %v2175
    %v2177 = vsel %vm124, %v2176, 0.0
    %2178 = vadd.xlane.f32.xlu0 %v2177
    %v2179 = vpop.xlane.xlu0 %2178
    %v2180 = vrcp.pop %v2179
    %v2181 = vlog2.pop %v2179
    %v2182 = vmul.f32 %v2181, 0.6931472
    %v2183 = vmul.f32 %v2176, %v2174
    %v2184 = vsel %vm124, %v2183, 0.0
    %2185 = vadd.xlane.f32.xlu0 %v2184
    %v2186 = vpop.xlane.xlu0 %2185
    %v2187 = vmul.f32 %v2180, %v2186
    %v2188 = vsub.f32 %v2182, %v2187
    %v2189 = vsub.f32 0.0, %v2182
    %vm2190 = vcmp.ge.f32.partialorder %v2168, %v2173
    %v2191 = vsel %vm2190, %v123, 16
    %v2192 = vsel %vm124, %v2191, 2147483647
    %v2193 = vand.u32 %v2192, 65535
    %v2194 = vshra.s32 %v2192, 16
    %v2195 = vcvt.s32.f32 %v2193
    %v2196 = vcvt.s32.f32 %v2194
    %2197 = vmin.xlane.f32.xlu0 %v2196
    %v2198 = vpop.xlane.xlu0 %2197
    %vm2199 = vcmp.eq.f32.partialorder %v2196, %v2198
    %v2200 = vsel %vm2199, %v2195, inf
    %2201 = vmin.xlane.f32.xlu0 %v2200
    %v2202 = vpop.xlane.xlu0 %2201
    %v2203 = vcvt.f32.s32 %v2202
    %v2204 = vcvt.f32.s32 %v2198
    %v2205 = vshll.u32 %v2204, 16
    %v2206 = vadd.s32 %v2205, %v2203
    %vm2207 = vcmp.eq.s32.totalorder %v123, %v2206
    %v2208 = vsel %vm2207, 1, 0
    %v2209 = vcvt.s32.f32 %v2208
    %vm2210 = vcmp.eq.s32.totalorder %v123, 6
    %v2211 = vsel %vm2210, %v2206, %v1901
    %v2212 = vsel %vm2210, %v2188, %v1902
    %v2213 = vmul.f32 %v2188, %v1994
    %v2214 = vadd.f32 %v1904, %v2213
    %v2215 = vmul.f32 %v2189, %v1994
    %v2216 = vadd.f32 %v1906, %v2215
    %v2217 = vadd.f32 %v1907, %v1994
    %2219 = vrot.lane.b32.xlu0 %v1990, 16
    %v2220 = vpop.permute.xlu0 %2219
    %v2222 = vsel %vm124, %v2209, %v2220
    %v2224 = vsel %vm365, %v2222, 0
    %2226 = vmatprep.subr.mxu0 0.0
    %2227 = vmatpush1.msra.mxu0 %v354
    %2228 = vmatprep.subr.mxu0 0.0
    %2229 = vmatpush1.msra.mxu0 %v356
    %2230 = vmatprep.subr.mxu0 0.0
    %2231 = vmatpush1.msra.mxu0 %v358
    %2232 = vmatprep.subr.mxu0 0.0
    %2233 = vmatpush1.msra.mxu0 0.0
    %2234 = vmatprep.subr.mxu0 0.0
    %2235 = vmatpush1.msra.mxu0 0.0
    %2236 = vmatprep.subr.mxu0 0.0
    %2237 = vmatpush1.msra.mxu0 0.0
    %2238 = vmatprep.subr.mxu0 0.0
    %2239 = vmatpush1.msra.mxu0 0.0
    %2240 = vmatprep.subr.mxu0 0.0
    %2241 = vmatpush1.msra.mxu0 0.0
    %2242 = vmatprep.subr.mxu0 0.0
    %2243 = vmatpush1.msra.mxu0 0.0
    %2244 = vmatprep.subr.mxu0 0.0
    %2245 = vmatpush1.msra.mxu0 0.0
    %2246 = vmatprep.subr.mxu0 0.0
    %2247 = vmatpush1.msra.mxu0 0.0
    %2248 = vmatprep.subr.mxu0 0.0
    %2249 = vmatpush1.msra.mxu0 0.0
    %2250 = vmatprep.subr.mxu0 0.0
    %2251 = vmatpush1.msra.mxu0 0.0
    %2252 = vmatprep.subr.mxu0 0.0
    %2253 = vmatpush1.msra.mxu0 0.0
    %2254 = vmatprep.subr.mxu0 0.0
    %2255 = vmatpush1.msra.mxu0 0.0
    %2256 = vmatprep.subr.mxu0 0.0
    %2257 = vmatpush1.msra.mxu0 0.0
    %2258 = vmatprep.subr.mxu0 0.0
    %2259 = vmatpush1.msra.mxu0 0.0
    %2260 = vmatprep.subr.mxu0 0.0
    %2261 = vmatpush1.msra.mxu0 0.0
    %2262 = vmatprep.subr.mxu0 0.0
    %2263 = vmatpush1.msra.mxu0 0.0
    %2264 = vmatprep.subr.mxu0 0.0
    %2265 = vmatpush1.msra.mxu0 0.0
    %2266 = vmatprep.subr.mxu0 0.0
    %2267 = vmatpush1.msra.mxu0 0.0
    %2268 = vmatprep.subr.mxu0 0.0
    %2269 = vmatpush1.msra.mxu0 0.0
    %2270 = vmatprep.subr.mxu0 0.0
    %2271 = vmatpush1.msra.mxu0 0.0
    %2272 = vmatprep.subr.mxu0 0.0
    %2273 = vmatpush1.msra.mxu0 0.0
    %2274 = vmatprep.subr.mxu0 0.0
    %2275 = vmatpush1.msra.mxu0 0.0
    %2276 = vmatprep.subr.mxu0 0.0
    %2277 = vmatpush1.msra.mxu0 0.0
    %2278 = vmatprep.subr.mxu0 0.0
    %2279 = vmatpush1.msra.mxu0 0.0
    %2280 = vmatprep.subr.mxu0 0.0
    %2281 = vmatpush1.msra.mxu0 0.0
    %2282 = vmatprep.subr.mxu0 0.0
    %2283 = vmatpush1.msra.mxu0 0.0
    %2284 = vmatprep.subr.mxu0 0.0
    %2285 = vmatpush1.msra.mxu0 0.0
    %2286 = vmatprep.subr.mxu0 0.0
    %2287 = vmatpush1.msra.mxu0 0.0
    %2288 = vmatprep.subr.mxu0 0.0
    %2289 = vmatpush1.msra.mxu0 0.0
    %2290 = vmatprep.mubr.f32.mxu0 0.0
    %2291 = vmatmul.mubr.f32.gmra.mrb[0].mxu0 %v2224
    %v2292 = vpop.f32.mrb[0].mxu0
    %v2293 = vadd.f32 %v363, %v2292
    %v2294 = vpop.f32.mrb[0].mxu0
    %2295 = vdwg.mxu0
    %v2296 = vtanh.pop %v2293
    %v2297 = vmul.f32 %v1994, %v2296
    %v2298 = vsub.f32 1.0, %v1994
    %v2299 = vmul.f32 %v2298, %v1990
    %v2300 = vadd.f32 %v2297, %v2299
    %vm2301 = vcmp.ne.s32.totalorder %v2206, 0
    %v2302 = vsel %vm2301, 1, 0
    %v2303 = vcvt.s32.f32 %v2302
    %v2304 = vmul.f32 %v1994, %v2303
    %2305 = vrot.lane.b32.xlu0 %v2095, 112
    %v2306 = vpop.permute.xlu0 %2305
    %v2308 = vsel %vm124, %v2209, %v2306
    %v2310 = vsel %vm448, %v2308, 0
    %2312 = vmatprep.subr.mxu0 0.0
    %2313 = vmatpush1.msra.mxu0 %v20
    %2314 = vmatprep.subr.mxu0 0.0
    %2315 = vmatpush1.msra.mxu0 %v21
    %2316 = vmatprep.subr.mxu0 0.0
    %2317 = vmatpush1.msra.mxu0 %v22
    %2318 = vmatprep.subr.mxu0 0.0
    %2319 = vmatpush1.msra.mxu0 %v23
    %2320 = vmatprep.subr.mxu0 0.0
    %2321 = vmatpush1.msra.mxu0 0.0
    %2322 = vmatprep.subr.mxu0 0.0
    %2323 = vmatpush1.msra.mxu0 0.0
    %2324 = vmatprep.subr.mxu0 0.0
    %2325 = vmatpush1.msra.mxu0 0.0
    %2326 = vmatprep.subr.mxu0 0.0
    %2327 = vmatpush1.msra.mxu0 0.0
    %2328 = vmatprep.subr.mxu0 0.0
    %2329 = vmatpush1.msra.mxu0 0.0
    %2330 = vmatprep.subr.mxu0 0.0
    %2331 = vmatpush1.msra.mxu0 0.0
    %2332 = vmatprep.subr.mxu0 0.0
    %2333 = vmatpush1.msra.mxu0 0.0
    %2334 = vmatprep.subr.mxu0 0.0
    %2335 = vmatpush1.msra.mxu0 0.0
    %2336 = vmatprep.subr.mxu0 0.0
    %2337 = vmatpush1.msra.mxu0 0.0
    %2338 = vmatprep.subr.mxu0 0.0
    %2339 = vmatpush1.msra.mxu0 0.0
    %2340 = vmatprep.subr.mxu0 0.0
    %2341 = vmatpush1.msra.mxu0 0.0
    %2342 = vmatprep.subr.mxu0 0.0
    %2343 = vmatpush1.msra.mxu0 0.0
    %2344 = vmatprep.subr.mxu0 0.0
    %2345 = vmatpush1.msra.mxu0 0.0
    %2346 = vmatprep.subr.mxu0 0.0
    %2347 = vmatpush1.msra.mxu0 0.0
    %2348 = vmatprep.subr.mxu0 0.0
    %2349 = vmatpush1.msra.mxu0 0.0
    %2350 = vmatprep.subr.mxu0 0.0
    %2351 = vmatpush1.msra.mxu0 0.0
    %2352 = vmatprep.subr.mxu0 0.0
    %2353 = vmatpush1.msra.mxu0 0.0
    %2354 = vmatprep.subr.mxu0 0.0
    %2355 = vmatpush1.msra.mxu0 0.0
    %2356 = vmatprep.subr.mxu0 0.0
    %2357 = vmatpush1.msra.mxu0 0.0
    %2358 = vmatprep.subr.mxu0 0.0
    %2359 = vmatpush1.msra.mxu0 0.0
    %2360 = vmatprep.subr.mxu0 0.0
    %2361 = vmatpush1.msra.mxu0 0.0
    %2362 = vmatprep.subr.mxu0 0.0
    %2363 = vmatpush1.msra.mxu0 0.0
    %2364 = vmatprep.subr.mxu0 0.0
    %2365 = vmatpush1.msra.mxu0 0.0
    %2366 = vmatprep.subr.mxu0 0.0
    %2367 = vmatpush1.msra.mxu0 0.0
    %2368 = vmatprep.subr.mxu0 0.0
    %2369 = vmatpush1.msra.mxu0 0.0
    %2370 = vmatprep.subr.mxu0 0.0
    %2371 = vmatpush1.msra.mxu0 0.0
    %2372 = vmatprep.subr.mxu0 0.0
    %2373 = vmatpush1.msra.mxu0 0.0
    %2374 = vmatprep.subr.mxu0 0.0
    %2375 = vmatpush1.msra.mxu0 0.0
    %2376 = vmatprep.mubr.f32.mxu0 0.0
    %2377 = vmatmul.mubr.f32.gmra.mrb[0].mxu0 %v2310
    %v2378 = vpop.f32.mrb[0].mxu0
    %v2379 = vadd.f32 %v30, %v2378
    %v2380 = vpop.f32.mrb[0].mxu0
    %2381 = vdwg.mxu0
    %v2382 = vxor.u32 %v2379, 2147483648
    %v2383 = vmul.f32 %v2382, 1.442695
    %v2384 = vpow.pop %v2383
    %v2385 = vadd.f32 %v2384, 1.0
    %v2386 = vrcp.pop %v2385
    %v2387 = vmul.f32 1.0, %v2386
    %v2388 = vtanh.pop %v2379
    %v2389 = vmul.f32 %v2387, %v2089
    %2391 = vrot.lane.b32.xlu0 %v2388, 80
    %v2392 = vpop.permute.xlu0 %2391
    %v2394 = vmul.f32 %v2387, %v2392
    %2396 = vrot.lane.b32.xlu0 %v2394, 16
    %v2397 = vpop.permute.xlu0 %2396
    %v2399 = vadd.f32 %v2389, %v2397
    %v2400 = vtanh.pop %v2399
    %2402 = vrot.lane.b32.xlu0 %v2400, 16
    %v2403 = vpop.permute.xlu0 %2402
    %v2405 = vmul.f32 %v2387, %v2403
    %2407 = vrot.lane.b32.xlu0 %v2405, 96
    %v2408 = vpop.permute.xlu0 %2407
    %v2409 = vsel %vm124, %v2408, 0
    %2411 = vmatprep.subr.mxu0 0.0
    %2412 = vmatpush1.msra.mxu0 %v227
    %2413 = vmatprep.subr.mxu0 0.0
    %2414 = vmatpush1.msra.mxu0 %v229
    %2415 = vmatprep.subr.mxu0 0.0
    %2416 = vmatpush1.msra.mxu0 0.0
    %2417 = vmatprep.subr.mxu0 0.0
    %2418 = vmatpush1.msra.mxu0 0.0
    %2419 = vmatprep.subr.mxu0 0.0
    %2420 = vmatpush1.msra.mxu0 0.0
    %2421 = vmatprep.subr.mxu0 0.0
    %2422 = vmatpush1.msra.mxu0 0.0
    %2423 = vmatprep.subr.mxu0 0.0
    %2424 = vmatpush1.msra.mxu0 0.0
    %2425 = vmatprep.subr.mxu0 0.0
    %2426 = vmatpush1.msra.mxu0 0.0
    %2427 = vmatprep.subr.mxu0 0.0
    %2428 = vmatpush1.msra.mxu0 0.0
    %2429 = vmatprep.subr.mxu0 0.0
    %2430 = vmatpush1.msra.mxu0 0.0
    %2431 = vmatprep.subr.mxu0 0.0
    %2432 = vmatpush1.msra.mxu0 0.0
    %2433 = vmatprep.subr.mxu0 0.0
    %2434 = vmatpush1.msra.mxu0 0.0
    %2435 = vmatprep.subr.mxu0 0.0
    %2436 = vmatpush1.msra.mxu0 0.0
    %2437 = vmatprep.subr.mxu0 0.0
    %2438 = vmatpush1.msra.mxu0 0.0
    %2439 = vmatprep.subr.mxu0 0.0
    %2440 = vmatpush1.msra.mxu0 0.0
    %2441 = vmatprep.subr.mxu0 0.0
    %2442 = vmatpush1.msra.mxu0 0.0
    %2443 = vmatprep.subr.mxu0 0.0
    %2444 = vmatpush1.msra.mxu0 0.0
    %2445 = vmatprep.subr.mxu0 0.0
    %2446 = vmatpush1.msra.mxu0 0.0
    %2447 = vmatprep.subr.mxu0 0.0
    %2448 = vmatpush1.msra.mxu0 0.0
    %2449 = vmatprep.subr.mxu0 0.0
    %2450 = vmatpush1.msra.mxu0 0.0
    %2451 = vmatprep.subr.mxu0 0.0
    %2452 = vmatpush1.msra.mxu0 0.0
    %2453 = vmatprep.subr.mxu0 0.0
    %2454 = vmatpush1.msra.mxu0 0.0
    %2455 = vmatprep.subr.mxu0 0.0
    %2456 = vmatpush1.msra.mxu0 0.0
    %2457 = vmatprep.subr.mxu0 0.0
    %2458 = vmatpush1.msra.mxu0 0.0
    %2459 = vmatprep.subr.mxu0 0.0
    %2460 = vmatpush1.msra.mxu0 0.0
    %2461 = vmatprep.subr.mxu0 0.0
    %2462 = vmatpush1.msra.mxu0 0.0
    %2463 = vmatprep.subr.mxu0 0.0
    %2464 = vmatpush1.msra.mxu0 0.0
    %2465 = vmatprep.subr.mxu0 0.0
    %2466 = vmatpush1.msra.mxu0 0.0
    %2467 = vmatprep.subr.mxu0 0.0
    %2468 = vmatpush1.msra.mxu0 0.0
    %2469 = vmatprep.subr.mxu0 0.0
    %2470 = vmatpush1.msra.mxu0 0.0
    %2471 = vmatprep.subr.mxu0 0.0
    %2472 = vmatpush1.msra.mxu0 0.0
    %2473 = vmatprep.subr.mxu0 0.0
    %2474 = vmatpush1.msra.mxu0 0.0
    %2475 = vmatprep.mubr.f32.mxu0 0.0
    %2476 = vmatmul.mubr.f32.gmra.mrb[0].mxu0 %v2409
    %v2477 = vpop.f32.mrb[0].mxu0
    %v2478 = vadd.f32 %v233, %v2477
    %v2479 = vpop.f32.mrb[0].mxu0
    %2480 = vdwg.mxu0
    %v2481 = vsel %vm124, %v2478, -inf
    %2482 = vmax.xlane.f32.xlu0 %v2481
    %v2483 = vpop.xlane.xlu0 %2482
    %v2484 = vsub.f32 %v2478, %v2483
    %v2485 = vmul.f32 %v2484, 1.442695
    %v2486 = vpow.pop %v2485
    %v2487 = vsel %vm124, %v2486, 0.0
    %2488 = vadd.xlane.f32.xlu0 %v2487
    %v2489 = vpop.xlane.xlu0 %2488
    %v2490 = vrcp.pop %v2489
    %v2491 = vlog2.pop %v2489
    %v2492 = vmul.f32 %v2491, 0.6931472
    %v2493 = vmul.f32 %v2486, %v2484
    %v2494 = vsel %vm124, %v2493, 0.0
    %2495 = vadd.xlane.f32.xlu0 %v2494
    %v2496 = vpop.xlane.xlu0 %2495
    %v2497 = vmul.f32 %v2490, %v2496
    %v2498 = vsub.f32 %v2492, %v2497
    %v2499 = vsub.f32 0.0, %v2492
    %vm2500 = vcmp.ge.f32.partialorder %v2478, %v2483
    %v2501 = vsel %vm2500, %v123, 16
    %v2502 = vsel %vm124, %v2501, 2147483647
    %v2503 = vand.u32 %v2502, 65535
    %v2504 = vshra.s32 %v2502, 16
    %v2505 = vcvt.s32.f32 %v2503
    %v2506 = vcvt.s32.f32 %v2504
    %2507 = vmin.xlane.f32.xlu0 %v2506
    %v2508 = vpop.xlane.xlu0 %2507
    %vm2509 = vcmp.eq.f32.partialorder %v2506, %v2508
    %v2510 = vsel %vm2509, %v2505, inf
    %2511 = vmin.xlane.f32.xlu0 %v2510
    %v2512 = vpop.xlane.xlu0 %2511
    %v2513 = vcvt.f32.s32 %v2512
    %v2514 = vcvt.f32.s32 %v2508
    %v2515 = vshll.u32 %v2514, 16
    %v2516 = vadd.s32 %v2515, %v2513
    %vm2517 = vcmp.eq.s32.totalorder %v123, %v2516
    %v2518 = vsel %vm2517, 1, 0
    %v2519 = vcvt.s32.f32 %v2518
    %vm2520 = vcmp.eq.s32.totalorder %v123, 7
    %v2521 = vsel %vm2520, %v2516, %v2211
    %v2522 = vsel %vm2520, %v2498, %v2212
    %v2523 = vmul.f32 %v2498, %v2304
    %v2524 = vadd.f32 %v2214, %v2523
    %v2525 = vmul.f32 %v2499, %v2304
    %v2526 = vadd.f32 %v2216, %v2525
    %v2527 = vadd.f32 %v2217, %v2304
    %2529 = vrot.lane.b32.xlu0 %v2300, 16
    %v2530 = vpop.permute.xlu0 %2529
    %v2532 = vsel %vm124, %v2519, %v2530
    %v2534 = vsel %vm365, %v2532, 0
    %2536 = vmatprep.subr.mxu0 0.0
    %2537 = vmatpush1.msra.mxu0 %v354
    %2538 = vmatprep.subr.mxu0 0.0
    %2539 = vmatpush1.msra.mxu0 %v356
    %2540 = vmatprep.subr.mxu0 0.0
    %2541 = vmatpush1.msra.mxu0 %v358
    %2542 = vmatprep.subr.mxu0 0.0
    %2543 = vmatpush1.msra.mxu0 0.0
    %2544 = vmatprep.subr.mxu0 0.0
    %2545 = vmatpush1.msra.mxu0 0.0
    %2546 = vmatprep.subr.mxu0 0.0
    %2547 = vmatpush1.msra.mxu0 0.0
    %2548 = vmatprep.subr.mxu0 0.0
    %2549 = vmatpush1.msra.mxu0 0.0
    %2550 = vmatprep.subr.mxu0 0.0
    %2551 = vmatpush1.msra.mxu0 0.0
    %2552 = vmatprep.subr.mxu0 0.0
    %2553 = vmatpush1.msra.mxu0 0.0
    %2554 = vmatprep.subr.mxu0 0.0
    %2555 = vmatpush1.msra.mxu0 0.0
    %2556 = vmatprep.subr.mxu0 0.0
    %2557 = vmatpush1.msra.mxu0 0.0
    %2558 = vmatprep.subr.mxu0 0.0
    %2559 = vmatpush1.msra.mxu0 0.0
    %2560 = vmatprep.subr.mxu0 0.0
    %2561 = vmatpush1.msra.mxu0 0.0
    %2562 = vmatprep.subr.mxu0 0.0
    %2563 = vmatpush1.msra.mxu0 0.0
    %2564 = vmatprep.subr.mxu0 0.0
    %2565 = vmatpush1.msra.mxu0 0.0
    %2566 = vmatprep.subr.mxu0 0.0
    %2567 = vmatpush1.msra.mxu0 0.0
    %2568 = vmatprep.subr.mxu0 0.0
    %2569 = vmatpush1.msra.mxu0 0.0
    %2570 = vmatprep.subr.mxu0 0.0
    %2571 = vmatpush1.msra.mxu0 0.0
    %2572 = vmatprep.subr.mxu0 0.0
    %2573 = vmatpush1.msra.mxu0 0.0
    %2574 = vmatprep.subr.mxu0 0.0
    %2575 = vmatpush1.msra.mxu0 0.0
    %2576 = vmatprep.subr.mxu0 0.0
    %2577 = vmatpush1.msra.mxu0 0.0
    %2578 = vmatprep.subr.mxu0 0.0
    %2579 = vmatpush1.msra.mxu0 0.0
    %2580 = vmatprep.subr.mxu0 0.0
    %2581 = vmatpush1.msra.mxu0 0.0
    %2582 = vmatprep.subr.mxu0 0.0
    %2583 = vmatpush1.msra.mxu0 0.0
    %2584 = vmatprep.subr.mxu0 0.0
    %2585 = vmatpush1.msra.mxu0 0.0
    %2586 = vmatprep.subr.mxu0 0.0
    %2587 = vmatpush1.msra.mxu0 0.0
    %2588 = vmatprep.subr.mxu0 0.0
    %2589 = vmatpush1.msra.mxu0 0.0
    %2590 = vmatprep.subr.mxu0 0.0
    %2591 = vmatpush1.msra.mxu0 0.0
    %2592 = vmatprep.subr.mxu0 0.0
    %2593 = vmatpush1.msra.mxu0 0.0
    %2594 = vmatprep.subr.mxu0 0.0
    %2595 = vmatpush1.msra.mxu0 0.0
    %2596 = vmatprep.subr.mxu0 0.0
    %2597 = vmatpush1.msra.mxu0 0.0
    %2598 = vmatprep.subr.mxu0 0.0
    %2599 = vmatpush1.msra.mxu0 0.0
    %2600 = vmatprep.mubr.f32.mxu0 0.0
    %2601 = vmatmul.mubr.f32.gmra.mrb[0].mxu0 %v2534
    %v2602 = vpop.f32.mrb[0].mxu0
    %v2603 = vadd.f32 %v363, %v2602
    %v2604 = vpop.f32.mrb[0].mxu0
    %2605 = vdwg.mxu0
    %v2606 = vtanh.pop %v2603
    %v2607 = vmul.f32 %v2304, %v2606
    %v2608 = vsub.f32 1.0, %v2304
    %v2609 = vmul.f32 %v2608, %v2300
    %v2610 = vadd.f32 %v2607, %v2609
    %vm2611 = vcmp.ne.s32.totalorder %v2516, 0
    %v2612 = vsel %vm2611, 1, 0
    %v2613 = vcvt.s32.f32 %v2612
    %v2614 = vmul.f32 %v2304, %v2613
    %v2615 = vadd.f32 %v2527, %v2614
    %v2617 = vsel %vm48, %v2610, 0
    %2619 = vmatprep.subr.mxu0 0.0
    %2620 = vmatpush1.msra.mxu0 %v358
    %2621 = vmatprep.subr.mxu0 0.0
    %2622 = vmatpush1.msra.mxu0 0.0
    %2623 = vmatprep.subr.mxu0 0.0
    %2624 = vmatpush1.msra.mxu0 0.0
    %2625 = vmatprep.subr.mxu0 0.0
    %2626 = vmatpush1.msra.mxu0 0.0
    %2627 = vmatprep.subr.mxu0 0.0
    %2628 = vmatpush1.msra.mxu0 0.0
    %2629 = vmatprep.subr.mxu0 0.0
    %2630 = vmatpush1.msra.mxu0 0.0
    %2631 = vmatprep.subr.mxu0 0.0
    %2632 = vmatpush1.msra.mxu0 0.0
    %2633 = vmatprep.subr.mxu0 0.0
    %2634 = vmatpush1.msra.mxu0 0.0
    %2635 = vmatprep.subr.mxu0 0.0
    %2636 = vmatpush1.msra.mxu0 0.0
    %2637 = vmatprep.subr.mxu0 0.0
    %2638 = vmatpush1.msra.mxu0 0.0
    %2639 = vmatprep.subr.mxu0 0.0
    %2640 = vmatpush1.msra.mxu0 0.0
    %2641 = vmatprep.subr.mxu0 0.0
    %2642 = vmatpush1.msra.mxu0 0.0
    %2643 = vmatprep.subr.mxu0 0.0
    %2644 = vmatpush1.msra.mxu0 0.0
    %2645 = vmatprep.subr.mxu0 0.0
    %2646 = vmatpush1.msra.mxu0 0.0
    %2647 = vmatprep.subr.mxu0 0.0
    %2648 = vmatpush1.msra.mxu0 0.0
    %2649 = vmatprep.subr.mxu0 0.0
    %2650 = vmatpush1.msra.mxu0 0.0
    %2651 = vmatprep.subr.mxu0 0.0
    %2652 = vmatpush1.msra.mxu0 0.0
    %2653 = vmatprep.subr.mxu0 0.0
    %2654 = vmatpush1.msra.mxu0 0.0
    %2655 = vmatprep.subr.mxu0 0.0
    %2656 = vmatpush1.msra.mxu0 0.0
    %2657 = vmatprep.subr.mxu0 0.0
    %2658 = vmatpush1.msra.mxu0 0.0
    %2659 = vmatprep.subr.mxu0 0.0
    %2660 = vmatpush1.msra.mxu0 0.0
    %2661 = vmatprep.subr.mxu0 0.0
    %2662 = vmatpush1.msra.mxu0 0.0
    %2663 = vmatprep.subr.mxu0 0.0
    %2664 = vmatpush1.msra.mxu0 0.0
    %2665 = vmatprep.subr.mxu0 0.0
    %2666 = vmatpush1.msra.mxu0 0.0
    %2667 = vmatprep.subr.mxu0 0.0
    %2668 = vmatpush1.msra.mxu0 0.0
    %2669 = vmatprep.subr.mxu0 0.0
    %2670 = vmatpush1.msra.mxu0 0.0
    %2671 = vmatprep.subr.mxu0 0.0
    %2672 = vmatpush1.msra.mxu0 0.0
    %2673 = vmatprep.subr.mxu0 0.0
    %2674 = vmatpush1.msra.mxu0 0.0
    %2675 = vmatprep.subr.mxu0 0.0
    %2676 = vmatpush1.msra.mxu0 0.0
    %2677 = vmatprep.subr.mxu0 0.0
    %2678 = vmatpush1.msra.mxu0 0.0
    %2679 = vmatprep.subr.mxu0 0.0
    %2680 = vmatpush1.msra.mxu0 0.0
    %2681 = vmatprep.subr.mxu0 0.0
    %2682 = vmatpush1.msra.mxu0 0.0
    %2683 = vmatprep.mubr.f32.mxu0 0.0
    %2684 = vmatmul.mubr.f32.gmra.mrb[0].mxu0 %v2617
    %v2685 = vpop.f32.mrb[0].mxu0
    %v2686 = vadd.f32 0.0, %v2685
    %v2687 = vpop.f32.mrb[0].mxu0
    %2688 = vdwg.mxu0
    %2690 = vrot.lane.b32.xlu0 %v2686, 64
    %v2691 = vpop.permute.xlu0 %2690
    %v2693 = vadd.f32 %v39, %v2691
    %v2694 = vtanh.pop %v2693
    %v2695 = vmul.f32 %v2614, %v2694
    %v2696 = vsub.f32 1.0, %v2614
    %v2697 = vmul.f32 %v2696, %v2610
    %2699 = vrot.lane.b32.xlu0 %v2697, 64
    %v2700 = vpop.permute.xlu0 %2699
    %v2702 = vadd.f32 %v2695, %v2700
    %2704 = vrot.lane.b32.xlu0 %v2702, 64
    %v2705 = vpop.permute.xlu0 %2704
    %2706 = vrot.lane.b32.xlu0 %v20, 24
    %v2707 = vpop.permute.xlu0 %2706
    %2709 = vrot.lane.b32.xlu0 %v30, 24
    %v2710 = vpop.permute.xlu0 %2709
    %v2712 = vsel %vm48, %v2705, 0
    %2714 = vmatprep.subr.mxu0 0.0
    %2715 = vmatpush1.msra.mxu0 %v2707
    %2716 = vmatprep.subr.mxu0 0.0
    %2717 = vmatpush1.msra.mxu0 0.0
    %2718 = vmatprep.subr.mxu0 0.0
    %2719 = vmatpush1.msra.mxu0 0.0
    %2720 = vmatprep.subr.mxu0 0.0
    %2721 = vmatpush1.msra.mxu0 0.0
    %2722 = vmatprep.subr.mxu0 0.0
    %2723 = vmatpush1.msra.mxu0 0.0
    %2724 = vmatprep.subr.mxu0 0.0
    %2725 = vmatpush1.msra.mxu0 0.0
    %2726 = vmatprep.subr.mxu0 0.0
    %2727 = vmatpush1.msra.mxu0 0.0
    %2728 = vmatprep.subr.mxu0 0.0
    %2729 = vmatpush1.msra.mxu0 0.0
    %2730 = vmatprep.subr.mxu0 0.0
    %2731 = vmatpush1.msra.mxu0 0.0
    %2732 = vmatprep.subr.mxu0 0.0
    %2733 = vmatpush1.msra.mxu0 0.0
    %2734 = vmatprep.subr.mxu0 0.0
    %2735 = vmatpush1.msra.mxu0 0.0
    %2736 = vmatprep.subr.mxu0 0.0
    %2737 = vmatpush1.msra.mxu0 0.0
    %2738 = vmatprep.subr.mxu0 0.0
    %2739 = vmatpush1.msra.mxu0 0.0
    %2740 = vmatprep.subr.mxu0 0.0
    %2741 = vmatpush1.msra.mxu0 0.0
    %2742 = vmatprep.subr.mxu0 0.0
    %2743 = vmatpush1.msra.mxu0 0.0
    %2744 = vmatprep.subr.mxu0 0.0
    %2745 = vmatpush1.msra.mxu0 0.0
    %2746 = vmatprep.subr.mxu0 0.0
    %2747 = vmatpush1.msra.mxu0 0.0
    %2748 = vmatprep.subr.mxu0 0.0
    %2749 = vmatpush1.msra.mxu0 0.0
    %2750 = vmatprep.subr.mxu0 0.0
    %2751 = vmatpush1.msra.mxu0 0.0
    %2752 = vmatprep.subr.mxu0 0.0
    %2753 = vmatpush1.msra.mxu0 0.0
    %2754 = vmatprep.subr.mxu0 0.0
    %2755 = vmatpush1.msra.mxu0 0.0
    %2756 = vmatprep.subr.mxu0 0.0
    %2757 = vmatpush1.msra.mxu0 0.0
    %2758 = vmatprep.subr.mxu0 0.0
    %2759 = vmatpush1.msra.mxu0 0.0
    %2760 = vmatprep.subr.mxu0 0.0
    %2761 = vmatpush1.msra.mxu0 0.0
    %2762 = vmatprep.subr.mxu0 0.0
    %2763 = vmatpush1.msra.mxu0 0.0
    %2764 = vmatprep.subr.mxu0 0.0
    %2765 = vmatpush1.msra.mxu0 0.0
    %2766 = vmatprep.subr.mxu0 0.0
    %2767 = vmatpush1.msra.mxu0 0.0
    %2768 = vmatprep.subr.mxu0 0.0
    %2769 = vmatpush1.msra.mxu0 0.0
    %2770 = vmatprep.subr.mxu0 0.0
    %2771 = vmatpush1.msra.mxu0 0.0
    %2772 = vmatprep.subr.mxu0 0.0
    %2773 = vmatpush1.msra.mxu0 0.0
    %2774 = vmatprep.subr.mxu0 0.0
    %2775 = vmatpush1.msra.mxu0 0.0
    %2776 = vmatprep.subr.mxu0 0.0
    %2777 = vmatpush1.msra.mxu0 0.0
    %2778 = vmatprep.mubr.f32.mxu0 0.0
    %2779 = vmatmul.mubr.f32.gmra.mrb[0].mxu0 %v2712
    %v2780 = vpop.f32.mrb[0].mxu0
    %v2781 = vadd.f32 %v2710, %v2780
    %v2782 = vpop.f32.mrb[0].mxu0
    %2783 = vdwg.mxu0
    %v2784 = vsub.f32 %v26, %v2781
    %v2785 = vmul.f32 %v2784, %v2784
    %v2786 = vsel %vm48, %v2785, 0.0
    %2787 = vadd.xlane.f32.xlu0 %v2786
    %v2788 = vpop.xlane.xlu0 %2787
    %v2789 = vrcp.pop 8.0
    %v2790 = vmul.f32 %v2788, %v2789
    %v2791 = vrcp.pop %v2615
    %v2792 = vmul.f32 %v2524, %v2791
    %vm2793 = vcmask 7168
    %v2794 = vsel %vm2793, %v2792, 0.0
    %2795 = vadd.xlane.f32.xlu0 %v2794
    %v2796 = vpop.xlane.xlu0 %2795
    %v2797 = vrot.slane %v2796, 4
    %v2798 = vadd.f32 %v2796, %v2797
    %v2799 = vrot.slane %v2798, 2
    %v2800 = vadd.f32 %v2798, %v2799
    %v2801 = vrot.slane %v2800, 1
    %v2802 = vadd.f32 %v2800, %v2801
    %s2803 = vtos %v2802
    %v2804 = vrcp.pop 8.0
    %s2805 = vtos %v2804
    %s2806 = smul.f32 %s2803, %s2805
    %s2807 = smul.f32 %s2806, 0.1
    %s2808 = sadd.f32 %s2807, 0.0
    %v2809 = vmul.f32 %v2615, 0.01
    %v2810 = vmul.f32 %v2809, %v2526
    %v2811 = vsel %vm2793, %v2810, 0.0
    %2812 = vadd.xlane.f32.xlu0 %v2811
    %v2813 = vpop.xlane.xlu0 %2812
    %v2814 = vrot.slane %v2813, 4
    %v2815 = vadd.f32 %v2813, %v2814
    %v2816 = vrot.slane %v2815, 2
    %v2817 = vadd.f32 %v2815, %v2816
    %v2818 = vrot.slane %v2817, 1
    %v2819 = vadd.f32 %v2817, %v2818
    %s2820 = vtos %v2819
    %v2821 = vrcp.pop 8.0
    %s2822 = vtos %v2821
    %s2823 = smul.f32 %s2820, %s2822
    %v2824 = vmul.f32 %v2790, %v2526
    %v2825 = vsel %vm2793, %v2824, 0.0
    %2826 = vadd.xlane.f32.xlu0 %v2825
    %v2827 = vpop.xlane.xlu0 %2826
    %v2828 = vrot.slane %v2827, 4
    %v2829 = vadd.f32 %v2827, %v2828
    %v2830 = vrot.slane %v2829, 2
    %v2831 = vadd.f32 %v2829, %v2830
    %v2832 = vrot.slane %v2831, 1
    %v2833 = vadd.f32 %v2831, %v2832
    %s2834 = vtos %v2833
    %v2835 = vrcp.pop 8.0
    %s2836 = vtos %v2835
    %s2837 = smul.f32 %s2834, %s2836
    %s2838 = sadd.f32 %s2823, %s2837
    %s2839 = ssub.f32 %s2838, %s2808
    %v2840 = vsel %vm2793, %v2790, 0.0
    %2841 = vadd.xlane.f32.xlu0 %v2840
    %v2842 = vpop.xlane.xlu0 %2841
    %v2843 = vrot.slane %v2842, 4
    %v2844 = vadd.f32 %v2842, %v2843
    %v2845 = vrot.slane %v2844, 2
    %v2846 = vadd.f32 %v2844, %v2845
    %v2847 = vrot.slane %v2846, 1
    %v2848 = vadd.f32 %v2846, %v2847
    %s2849 = vtos %v2848
    %v2850 = vrcp.pop 8.0
    %s2851 = vtos %v2850
    %s2852 = smul.f32 %s2849, %s2851
    %s2853 = sadd.f32 %s2839, %s2852
    %vm2854 = vcmask 72704
    %2855 = vst.msk [vmem:[#allocation2] sm:$0xff] %vm2854, %v2521
    %2856 = vst.msk [vmem:[#allocation4] sm:$0xff] %vm2854, %v2522
    %2857 = vst.msk [vmem:[#allocation6] sm:$0xff] %vm48, %v2781
    %2858 = vst.msk [vmem:[%s5] sm:$0xff] %vm2793, %v2790
    %2859 = vst.msk [vmem:[%s6] sm:$0xff] %vm2793, %v2615
    %v2860 = vstv %s2853
    %vm2861 = vcmask 0
    %2862 = vst.msk [vmem:[#allocation7] sm:$0x1] %vm2861, %v2860
    // Predicated region
    $region10: #{game_forward.1} parent=1 // pred_check
      _
    $region11: #{game_forward.1} parent=1 // pred_check_branch
      %2864 = sbr.rel (0) target = $region13
    $region12: #{game_forward.1} parent=1 // pred_region
      %s2866 = ssub.s32 128, 128
      %2867 = vsyncadd [#allocation3], %s2866
      %s2869 = sshll.u32 [#allocation2], 4
      %s2870 = int_to_ptr.vmem [resolvable:$true] %s2869
      %2872 = dma.vmem_to_hbm [thread:$0]  %s2870, 128, %s2, [#allocation3]
    $region13: #{game_forward.1} parent=1 // pred_fallthru
      _
    // Predicated region
    $region14: #{game_forward.1} parent=1 // pred_check
      _
    $region15: #{game_forward.1} parent=1 // pred_check_branch
      %2874 = sbr.rel (0) target = $region17
    $region16: #{game_forward.1} parent=1 // pred_region
      %s2876 = ssub.s32 128, 128
      %2877 = vsyncadd [#allocation5], %s2876
      %s2879 = sshll.u32 [#allocation4], 4
      %s2880 = int_to_ptr.vmem [resolvable:$true] %s2879
      %2882 = dma.vmem_to_hbm [thread:$0]  %s2880, 128, %s3, [#allocation5]
    $region17: #{game_forward.1} parent=1 // pred_fallthru
      _
    // Predicated region
    $region18: #{game_forward.1} parent=1 // pred_check
      _
    $region19: #{game_forward.1} parent=1 // pred_check_branch
      %2884 = sbr.rel (0) target = $region21
    $region20: #{game_forward.1} parent=1 // pred_region
      %s2886 = ssub.s32 128, 128
      %2887 = vsyncadd [#allocation5], %s2886
      %s2889 = sshll.u32 [#allocation6], 4
      %s2890 = int_to_ptr.vmem [resolvable:$true] %s2889
      %2892 = dma.vmem_to_hbm [thread:$0]  %s2890, 128, %s4, [#allocation5]
    $region21: #{game_forward.1} parent=1 // pred_fallthru
      _
    // Predicated region
    $region22: #{game_forward.1} parent=1 // pred_check
      _
    $region23: #{game_forward.1} parent=1 // pred_check_branch
      %2894 = sbr.rel (0) target = $region25
    $region24: #{game_forward.1} parent=1 // pred_region
      _
    $region25: #{game_forward.1} parent=1 // pred_fallthru
      _
    // Predicated region
    $region26: #{game_forward.1} parent=1 // pred_check
      _
    $region27: #{game_forward.1} parent=1 // pred_check_branch
      %2896 = sbr.rel (0) target = $region29
    $region28: #{game_forward.1} parent=1 // pred_region
      _
    $region29: #{game_forward.1} parent=1 // pred_fallthru
      _
    // Predicated region
    $region30: #{game_forward.1} parent=1 // pred_check
      _
    $region31: #{game_forward.1} parent=1 // pred_check_branch
      %2898 = sbr.rel (0) target = $region33
    $region32: #{game_forward.1} parent=1 // pred_region
      %s2900 = ssub.s32 16, 16
      %2901 = vsyncadd [#allocation8], %s2900
      %s2903 = sshll.u32 [#allocation7], 4
      %s2904 = int_to_ptr.vmem [resolvable:$true] %s2903
      %2906 = dma.vmem_to_hbm [thread:$0]  %s2904, 16, %s7, [#allocation8]
    $region33: #{game_forward.1} parent=1 // pred_fallthru
      _
    // Predicated region
    $region34: #{game_forward.1} parent=1 // pred_check
      _
    $region35: #{game_forward.1} parent=1 // pred_check_branch
      %2908 = sbr.rel (0) target = $region37
    $region36: #{game_forward.1} parent=1 // pred_region
      %2909 = dma.done [#allocation3], 128
    $region37: #{game_forward.1} parent=1 // pred_fallthru
      _
    // Predicated region
    $region38: #{game_forward.1} parent=1 // pred_check
      _
    $region39: #{game_forward.1} parent=1 // pred_check_branch
      %2911 = sbr.rel (0) target = $region41
    $region40: #{game_forward.1} parent=1 // pred_region
      %2912 = dma.done [#allocation5], 128
    $region41: #{game_forward.1} parent=1 // pred_fallthru
      _
    // Predicated region
    $region42: #{game_forward.1} parent=1 // pred_check
      _
    $region43: #{game_forward.1} parent=1 // pred_check_branch
      %2914 = sbr.rel (0) target = $region45
    $region44: #{game_forward.1} parent=1 // pred_region
      %2915 = dma.done [#allocation5], 128
    $region45: #{game_forward.1} parent=1 // pred_fallthru
      _
    // Predicated region
    $region46: #{game_forward.1} parent=1 // pred_check
      _
    $region47: #{game_forward.1} parent=1 // pred_check_branch
      %2917 = sbr.rel (0) target = $region49
    $region48: #{game_forward.1} parent=1 // pred_region
      _
    $region49: #{game_forward.1} parent=1 // pred_fallthru
      _
    // Predicated region
    $region50: #{game_forward.1} parent=1 // pred_check
      _
    $region51: #{game_forward.1} parent=1 // pred_check_branch
      %2919 = sbr.rel (0) target = $region53
    $region52: #{game_forward.1} parent=1 // pred_region
      _
    $region53: #{game_forward.1} parent=1 // pred_fallthru
      _
    // Predicated region
    $region54: #{game_forward.1} parent=1 // pred_check
      _
    $region55: #{game_forward.1} parent=1 // pred_check_branch
      %2921 = sbr.rel (0) target = $region57
    $region56: #{game_forward.1} parent=1 // pred_region
      %2922 = dma.done [#allocation8], 16
    $region57: #{game_forward.1} parent=1 // pred_fallthru
      _
    %2923 = vsyncpa [#allocation3], 1
    %2924 = vsyncpa [#allocation5], 1
    %2925 = vsyncpa [#allocation8], 1

</llo_original>
